<compile_context>
chip_gen: v6e
topology: v6e:2x2x1
jax: 0.10.0
libtpu: 0.0.40
codegen_flags: <defaults>
</compile_context>

<pallas_src>
import functools

import numpy as np
import jax
import jax.numpy as jnp
from jax import lax
from jax.experimental import pallas as pl
from jax.experimental.pallas import tpu as pltpu  # noqa: F401  (kept for TPU-specific tuning hooks)

NUM_HEADS = 4
LN_EPS = 1e-5
# Softmax normalization uses the approximate EUP reciprocal (free slot).  Set to
# False for an exact divide if bit-closeness to the PyTorch reference matters.
APPROX_SOFTMAX_RECIP = True


# ---------------------------------------------------------------------------
# In-kernel building blocks (traced jnp, executed inside the Pallas kernel)
# ---------------------------------------------------------------------------
def _layer_norm(x, w, b):
    # x: (N, D); w, b: (1, D).  Biased variance + eps, like torch.nn.LayerNorm.
    mu = jnp.mean(x, axis=-1, keepdims=True)
    var = jnp.mean((x - mu) ** 2, axis=-1, keepdims=True)
    return (x - mu) * lax.rsqrt(var + LN_EPS) * w + b


def _mha(x, w_qkv, b_qkv, w_o, b_o, num_heads, batch, seq):
    """Multi-head self-attention on batch-folded rows.

    x: (batch*seq, D), batch-major rows (each sequence is a contiguous,
    sublane-aligned block of `seq` rows).  The QKV projection and the output
    projection run on all B*S rows at once; scores stay per-sequence via a
    batched einsum over the sequence dim.  Per-head contributions are folded
    directly through sublane-aligned row slices of w_o (no lane re-concat)."""
    N, D = x.shape
    Dh = D // num_heads
    scale = 1.0 / (Dh ** 0.5)

    qkv = jnp.dot(x, w_qkv, preferred_element_type=jnp.float32) + b_qkv    # (N, 3D)
    qkv3 = qkv.reshape(batch, seq, 3 * D)          # leading split; sublane-aligned (seq % 8 == 0)

    acc = None
    for h in range(num_heads):                     # static, tiny head count
        lo = h * Dh
        qh = qkv3[:, :, lo:lo + Dh] * scale                                # (B, S, Dh)
        kh = qkv3[:, :, D + lo:D + lo + Dh]
        vh = qkv3[:, :, 2 * D + lo:2 * D + lo + Dh]
        # per-sequence scores, batched over sequences (reference flash-attn pattern)
        s = jnp.einsum('bqd,bkd->bqk', qh, kh,
                       preferred_element_type=jnp.float32)                 # (B, S, S)
        s = s - jnp.max(s, axis=-1, keepdims=True)
        p = jnp.exp(s)
        denom = jnp.sum(p, axis=-1, keepdims=True)
        if APPROX_SOFTMAX_RECIP:
            p = p * pl.reciprocal(denom, approx=True)
        else:
            p = p / denom
        ctx = jnp.einsum('bqk,bkd->bqd', p, vh,
                         preferred_element_type=jnp.float32)               # (B, S, Dh)
        contrib = jnp.dot(ctx.reshape(N, Dh), w_o[lo:lo + Dh, :],
                          preferred_element_type=jnp.float32)              # (N, D)
        acc = contrib if acc is None else acc + contrib
    return acc + b_o


# ---------------------------------------------------------------------------
# Fused Pallas kernel: pos-add + 4 encoder layers + head attention + head FFN
# ---------------------------------------------------------------------------
def fused_forward_kernel(x_ref,      # (B*S, D)        batch-folded input rows
                         pos_ref,    # (S, D)          z-order positional embeddings
                         wqkv_ref,   # (L+1, D, 3D)    layer L = head attention
                         wo_ref,     # (L+1, D, D)
                         w1_ref,     # (L+1, D, F)
                         w2_ref,     # (L+1, F, max(D, O))
                         vecs_ref,   # (L+1, 8, W)     rows: b_qkv, b1, b_o, b2, lnA_w, lnA_b, lnB_w, lnB_b
                         o_ref,      # (B*S, O)
                         *, num_heads, num_layers, batch, seq, out_dim):
    D = x_ref.shape[-1]
    F = w1_ref.shape[-1]

    # x = x + z_order_embeddings (pos tiled over the folded batch rows)
    pos = pos_ref[...]
    x_emb = x_ref[...] + jnp.concatenate([pos] * batch, axis=0)            # (B*S, D)

    # transformer_encoder(x): fori_loop over layers, dynamic leading-axis ref reads
    def layer_body(l, t):
        vecs = vecs_ref[l]                                                 # (8, W)
        b_qkv = vecs[0:1, :3 * D]
        b1 = vecs[1:2, :F]
        b_o = vecs[2:3, :D]
        b2 = vecs[3:4, :D]
        attn = _mha(t, wqkv_ref[l], b_qkv, wo_ref[l], b_o, num_heads, batch, seq)
        t = _layer_norm(t + attn, vecs[4:5, :D], vecs[5:6, :D])            # norm1
        h = jnp.maximum(
            jnp.dot(t, w1_ref[l], preferred_element_type=jnp.float32) + b1, 0.0)
        ff = jnp.dot(h, w2_ref[l][:, :D], preferred_element_type=jnp.float32) + b2
        return _layer_norm(t + ff, vecs[6:7, :D], vecs[7:8, :D])           # norm2

    t = lax.fori_loop(0, num_layers, layer_body, x_emb)

    # Head (stacked as layer index `num_layers`):
    #   x = layer_norm(x_emb + encoder_out); x = x + attn(x); out = ffn(x)
    hl = num_layers
    hv = vecs_ref[hl]                                                      # (8, W)
    x = _layer_norm(x_emb + t, hv[4:5, :D], hv[5:6, :D])
    x = x + _mha(x, wqkv_ref[hl], hv[0:1, :3 * D], wo_ref[hl], hv[2:3, :D],
                 num_heads, batch, seq)
    h = jnp.maximum(
        jnp.dot(x, w1_ref[hl], preferred_element_type=jnp.float32) + hv[1:2, :F], 0.0)
    # O=16 lowers to masked partial stores; a lane-dense repack is not worth it here.
    o_ref[...] = (jnp.dot(h, w2_ref[hl][:, :out_dim],
                          preferred_element_type=jnp.float32) + hv[3:4, :out_dim])


# ---------------------------------------------------------------------------
# One-time parameter packing (NOT in the per-call path)
# ---------------------------------------------------------------------------
def prepare_params(params, seq_len):
    """Pack parameters for the fused kernel and precompute the z-order gather.

    Returns a dict of 7 arrays (the only pallas_call operands besides x)."""
    enc, head, emb = params["enc"], params["head"], params["emb"]
    D = emb.shape[1]
    F = enc["w1"].shape[-1]
    O = head["w2"].shape[-1]
    W2 = max(D, O)
    VW = max(3 * D, F, D, O)

    # z-order indices are static given seq_len; gather the embedding rows once.
    ids = np.arange(seq_len, dtype=np.int64)
    sq = int(seq_len ** 0.5)
    z = (ids // sq) | ((ids % sq) << 1)            # matches the reference formula
    pos = jnp.asarray(emb)[z]                      # (S, D)

    def pad_last(a, w):
        pads = [(0, 0)] * (a.ndim - 1) + [(0, w - a.shape[-1])]
        return jnp.pad(a, pads)

    # Head weights become "layer L" of each slab.
    w_qkv = jnp.concatenate([enc["w_qkv"], head["w_qkv"][None]], axis=0)   # (L+1, D, 3D)
    w_o = jnp.concatenate([enc["w_o"], head["w_o"][None]], axis=0)         # (L+1, D, D)
    w1 = jnp.concatenate([enc["w1"], head["w1"][None]], axis=0)            # (L+1, D, F)
    w2 = jnp.concatenate([pad_last(enc["w2"], W2),
                          pad_last(head["w2"], W2)[None]], axis=0)         # (L+1, F, W2)

    # All 1-row vectors packed with slices starting at lane offset 0.
    enc_vecs = jnp.concatenate(
        [pad_last(enc[k], VW) for k in
         ("b_qkv", "b1", "b_o", "b2", "ln1_w", "ln1_b", "ln2_w", "ln2_b")],
        axis=1)                                                            # (L, 8, VW)
    head_vecs = jnp.concatenate(
        [pad_last(head[k], VW) for k in
         ("b_qkv", "b1", "b_o", "b2", "ln_w", "ln_b")]
        + [jnp.zeros((2, VW), jnp.float32)],
        axis=0)[None]                                                      # (1, 8, VW)
    vecs = jnp.concatenate([enc_vecs, head_vecs], axis=0)                  # (L+1, 8, VW)

    return dict(pos=pos, w_qkv=w_qkv, w_o=w_o, w1=w1, w2=w2, vecs=vecs)


# ---------------------------------------------------------------------------
# Forward wrapper (per-call path: one transpose/reshape each side + pallas_call)
# ---------------------------------------------------------------------------
def transformer_mlp_forward(x_sbd, prep, *, out_dim, num_heads=NUM_HEADS):
    """x_sbd: (seq_len, batch, input_dim) -> (seq_len, batch, output_dim)."""
    S, B, D = x_sbd.shape
    L = prep["w_qkv"].shape[0] - 1                 # head weights stacked as layer L

    # Fold batch into matmul rows, batch-major so each sequence is a contiguous,
    # sublane-aligned block of S rows (S % 8 == 0).
    x2 = jnp.transpose(x_sbd, (1, 0, 2)).reshape(B * S, D)

    out = pl.pallas_call(
        functools.partial(fused_forward_kernel, num_heads=num_heads,
                          num_layers=L, batch=B, seq=S, out_dim=out_dim),
        # Collapsed grid: single invocation, every operand is a full-array VMEM
        # block (total footprint << 1 MiB), weights DMA'd exactly once.
        out_shape=jax.ShapeDtypeStruct((B * S, out_dim), jnp.float32),
    )(x2, prep["pos"], prep["w_qkv"], prep["w_o"], prep["w1"], prep["w2"],
      prep["vecs"])

    return jnp.transpose(out.reshape(B, S, out_dim), (1, 0, 2))


# ---------------------------------------------------------------------------
# Parameters (weights stacked along a leading layer axis)
# ---------------------------------------------------------------------------
def init_params(key, input_dim, output_dim, hidden, num_layers, max_positions):
    D, F, O, L = input_dim, hidden, output_dim, num_layers
    keys = iter(jax.random.split(key, 32))

    def w(shape, scale=0.02):
        return jax.random.normal(next(keys), shape, jnp.float32) * scale

    ones = lambda s: jnp.ones(s, jnp.float32)
    zeros = lambda s: jnp.zeros(s, jnp.float32)

    # NOTE: biases are random (not PyTorch-default) -- fine for a kernel demo.
    enc = dict(
        w_qkv=w((L, D, 3 * D)), b_qkv=w((L, 1, 3 * D)),
        w_o=w((L, D, D)), b_o=w((L, 1, D)),
        w1=w((L, D, F)), b1=w((L, 1, F)),
        w2=w((L, F, D)), b2=w((L, 1, D)),
        ln1_w=ones((L, 1, D)), ln1_b=zeros((L, 1, D)),
        ln2_w=ones((L, 1, D)), ln2_b=zeros((L, 1, D)),
    )
    head = dict(
        w_qkv=w((D, 3 * D)), b_qkv=w((1, 3 * D)),
        w_o=w((D, D)), b_o=w((1, D)),
        w1=w((D, F)), b1=w((1, F)),
        w2=w((F, O)), b2=w((1, O)),
        ln_w=ones((1, D)), ln_b=zeros((1, D)),
    )
    return dict(emb=w((max_positions, D)), enc=enc, head=head)


if __name__ == "__main__":
    # Small shapes consistent with the module:
    # seq_len=16, batch=2, input_dim=32, hidden_channels=[64], output_dim=16,
    # num_heads=4, num_layers=4, max_positions=1024.
    S, B, D = 16, 2, 32
    HIDDEN, OUT, LAYERS, MAXPOS = 64, 16, 4, 1024

    key = jax.random.PRNGKey(0)
    k_x, k_p = jax.random.split(key)
    x = jax.random.normal(k_x, (S, B, D), jnp.float32)
    params = init_params(k_p, D, OUT, HIDDEN, LAYERS, MAXPOS)

    # One-time packing + positional gather (outside the per-call path).
    prep = prepare_params(params, seq_len=S)

    fwd = jax.jit(transformer_mlp_forward, static_argnames=("out_dim", "num_heads"))
    y = fwd(x, prep, out_dim=OUT)
    jax.block_until_ready(y)
    assert y.shape == (S, B, OUT), y.shape
    print("KERNEL_OK")
</pallas_src>

<mosaic_0001>
module attributes {stable_mosaic.version = 11 : i64} {
  func.func @fused_forward_kernel(%arg0: memref<32x32xf32, #tpu.memory_space<vmem>>, %arg1: memref<16x32xf32, #tpu.memory_space<vmem>>, %arg2: memref<5x32x96xf32, #tpu.memory_space<vmem>>, %arg3: memref<5x32x32xf32, #tpu.memory_space<vmem>>, %arg4: memref<5x32x64xf32, #tpu.memory_space<vmem>>, %arg5: memref<5x64x32xf32, #tpu.memory_space<vmem>>, %arg6: memref<5x8x96xf32, #tpu.memory_space<vmem>>, %arg7: memref<32x16xf32, #tpu.memory_space<vmem>>) attributes {dimension_semantics = [], scalar_prefetch = 0 : i64, scratch_operands = 0 : i64, tpu.core_type = #tpu.core_type<tc>} {
    %c0 = arith.constant 0 : index
    %c0_0 = arith.constant 0 : index
    %0 = vector.load %arg1[%c0, %c0_0] : memref<16x32xf32, #tpu.memory_space<vmem>>, vector<16x32xf32>
    %c0_1 = arith.constant 0 : index
    %c0_2 = arith.constant 0 : index
    %1 = vector.load %arg0[%c0_1, %c0_2] : memref<32x32xf32, #tpu.memory_space<vmem>>, vector<32x32xf32>
    %2 = tpu.concatenate %0, %0 in 0 : vector<16x32xf32>, vector<16x32xf32> -> vector<32x32xf32>
    %3 = arith.addf %1, %2 : vector<32x32xf32>
    %c0_i32 = arith.constant 0 : i32
    %c4_i32 = arith.constant 4 : i32
    %4 = arith.addi %c0_i32, %c4_i32 : i32
    %c1_i32 = arith.constant 1 : i32
    %5 = scf.for %arg8 = %c0_i32 to %4 step %c1_i32 iter_args(%arg9 = %3) -> (vector<32x32xf32>)  : i32 {
      %145 = arith.index_cast %arg8 : i32 to index
      %c0_52 = arith.constant 0 : index
      %c0_53 = arith.constant 0 : index
      %146 = vector.load %arg6[%145, %c0_52, %c0_53] : memref<5x8x96xf32, #tpu.memory_space<vmem>>, vector<1x8x96xf32>
      %147 = vector.shape_cast %146 : vector<1x8x96xf32> to vector<8x96xf32>
      %148 = vector.extract_strided_slice %147 {offsets = [0, 0], sizes = [1, 96], strides = [1, 1]} : vector<8x96xf32> to vector<1x96xf32>
      %149 = vector.extract_strided_slice %147 {offsets = [1, 0], sizes = [1, 64], strides = [1, 1]} : vector<8x96xf32> to vector<1x64xf32>
      %150 = vector.extract_strided_slice %147 {offsets = [2, 0], sizes = [1, 32], strides = [1, 1]} : vector<8x96xf32> to vector<1x32xf32>
      %151 = vector.extract_strided_slice %147 {offsets = [3, 0], sizes = [1, 32], strides = [1, 1]} : vector<8x96xf32> to vector<1x32xf32>
      %152 = arith.index_cast %arg8 : i32 to index
      %c0_54 = arith.constant 0 : index
      %c0_55 = arith.constant 0 : index
      %153 = vector.load %arg2[%152, %c0_54, %c0_55] : memref<5x32x96xf32, #tpu.memory_space<vmem>>, vector<1x32x96xf32>
      %154 = vector.shape_cast %153 : vector<1x32x96xf32> to vector<32x96xf32>
      %155 = arith.index_cast %arg8 : i32 to index
      %c0_56 = arith.constant 0 : index
      %c0_57 = arith.constant 0 : index
      %156 = vector.load %arg3[%155, %c0_56, %c0_57] : memref<5x32x32xf32, #tpu.memory_space<vmem>>, vector<1x32x32xf32>
      %157 = vector.shape_cast %156 : vector<1x32x32xf32> to vector<32x32xf32>
      %cst_58 = arith.constant dense<0.000000e+00> : vector<32x96xf32>
      %158 = tpu.matmul %arg9, %154, %cst_58 {dimension_numbers = #tpu.dot_dimension_numbers<[1], [0], [0], [1], [0, 0, 1, 1], [], []>} : vector<32x32xf32>, vector<32x96xf32>, vector<32x96xf32> -> vector<32x96xf32>
      %159 = vector.broadcast %148 : vector<1x96xf32> to vector<32x96xf32>
      %160 = arith.addf %158, %159 : vector<32x96xf32>
      %161 = vector.shape_cast %160 : vector<32x96xf32> to vector<2x16x96xf32>
      %162 = vector.extract_strided_slice %161 {offsets = [0, 0, 0], sizes = [2, 16, 8], strides = [1, 1, 1]} : vector<2x16x96xf32> to vector<2x16x8xf32>
      %cst_59 = arith.constant 0.353553385 : f32
      %163 = vector.broadcast %cst_59 : f32 to vector<2x16x8xf32>
      %164 = arith.mulf %162, %163 : vector<2x16x8xf32>
      %165 = vector.extract_strided_slice %161 {offsets = [0, 0, 32], sizes = [2, 16, 8], strides = [1, 1, 1]} : vector<2x16x96xf32> to vector<2x16x8xf32>
      %166 = vector.extract_strided_slice %161 {offsets = [0, 0, 64], sizes = [2, 16, 8], strides = [1, 1, 1]} : vector<2x16x96xf32> to vector<2x16x8xf32>
      "tpu.trace_start"() <{level = 10 : i32, message = "bqd,bkd->bqk"}> : () -> ()
      %cst_60 = arith.constant dense<0.000000e+00> : vector<2x16x16xf32>
      %167 = tpu.matmul %164, %165, %cst_60 {dimension_numbers = #tpu.dot_dimension_numbers<[2], [2], [1], [1], [0, 0, 0, 1, 1, 1], [0], [0]>} : vector<2x16x8xf32>, vector<2x16x8xf32>, vector<2x16x16xf32> -> vector<2x16x16xf32>
      "tpu.trace_stop"() : () -> ()
      %cst_61 = arith.constant dense<0xFF800000> : vector<2x16xf32>
      %168 = vector.multi_reduction <maximumf>, %167, %cst_61 [2] : vector<2x16x16xf32> to vector<2x16xf32>
      %169 = vector.shape_cast %168 : vector<2x16xf32> to vector<2x16x1xf32>
      %170 = vector.broadcast %169 : vector<2x16x1xf32> to vector<2x16x16xf32>
      %171 = arith.subf %167, %170 : vector<2x16x16xf32>
      %172 = math.exp %171 : vector<2x16x16xf32>
      %cst_62 = arith.constant dense<0.000000e+00> : vector<2x16xf32>
      %173 = vector.multi_reduction <add>, %172, %cst_62 [2] : vector<2x16x16xf32> to vector<2x16xf32>
      %174 = vector.shape_cast %173 : vector<2x16xf32> to vector<2x16x1xf32>
      %175 = tpu.reciprocal %174 {approx = true} : vector<2x16x1xf32> -> vector<2x16x1xf32>
      %176 = vector.broadcast %175 : vector<2x16x1xf32> to vector<2x16x16xf32>
      %177 = arith.mulf %172, %176 : vector<2x16x16xf32>
      "tpu.trace_start"() <{level = 10 : i32, message = "bqk,bkd->bqd"}> : () -> ()
      %cst_63 = arith.constant dense<0.000000e+00> : vector<2x16x8xf32>
      %178 = tpu.matmul %177, %166, %cst_63 {dimension_numbers = #tpu.dot_dimension_numbers<[2], [1], [1], [2], [0, 0, 0, 1, 1, 2], [0], [0]>} : vector<2x16x16xf32>, vector<2x16x8xf32>, vector<2x16x8xf32> -> vector<2x16x8xf32>
      "tpu.trace_stop"() : () -> ()
      %179 = vector.shape_cast %178 : vector<2x16x8xf32> to vector<32x8xf32>
      %180 = vector.extract_strided_slice %157 {offsets = [0, 0], sizes = [8, 32], strides = [1, 1]} : vector<32x32xf32> to vector<8x32xf32>
      %cst_64 = arith.constant dense<0.000000e+00> : vector<32x32xf32>
      %181 = tpu.matmul %179, %180, %cst_64 {dimension_numbers = #tpu.dot_dimension_numbers<[1], [0], [0], [1], [0, 0, 1, 1], [], []>} : vector<32x8xf32>, vector<8x32xf32>, vector<32x32xf32> -> vector<32x32xf32>
      %182 = vector.extract_strided_slice %161 {offsets = [0, 0, 8], sizes = [2, 16, 8], strides = [1, 1, 1]} : vector<2x16x96xf32> to vector<2x16x8xf32>
      %cst_65 = arith.constant 0.353553385 : f32
      %183 = vector.broadcast %cst_65 : f32 to vector<2x16x8xf32>
      %184 = arith.mulf %182, %183 : vector<2x16x8xf32>
      %185 = vector.extract_strided_slice %161 {offsets = [0, 0, 40], sizes = [2, 16, 8], strides = [1, 1, 1]} : vector<2x16x96xf32> to vector<2x16x8xf32>
      %186 = vector.extract_strided_slice %161 {offsets = [0, 0, 72], sizes = [2, 16, 8], strides = [1, 1, 1]} : vector<2x16x96xf32> to vector<2x16x8xf32>
      "tpu.trace_start"() <{level = 10 : i32, message = "bqd,bkd->bqk"}> : () -> ()
      %cst_66 = arith.constant dense<0.000000e+00> : vector<2x16x16xf32>
      %187 = tpu.matmul %184, %185, %cst_66 {dimension_numbers = #tpu.dot_dimension_numbers<[2], [2], [1], [1], [0, 0, 0, 1, 1, 1], [0], [0]>} : vector<2x16x8xf32>, vector<2x16x8xf32>, vector<2x16x16xf32> -> vector<2x16x16xf32>
      "tpu.trace_stop"() : () -> ()
      %cst_67 = arith.constant dense<0xFF800000> : vector<2x16xf32>
      %188 = vector.multi_reduction <maximumf>, %187, %cst_67 [2] : vector<2x16x16xf32> to vector<2x16xf32>
      %189 = vector.shape_cast %188 : vector<2x16xf32> to vector<2x16x1xf32>
      %190 = vector.broadcast %189 : vector<2x16x1xf32> to vector<2x16x16xf32>
      %191 = arith.subf %187, %190 : vector<2x16x16xf32>
      %192 = math.exp %191 : vector<2x16x16xf32>
      %cst_68 = arith.constant dense<0.000000e+00> : vector<2x16xf32>
      %193 = vector.multi_reduction <add>, %192, %cst_68 [2] : vector<2x16x16xf32> to vector<2x16xf32>
      %194 = vector.shape_cast %193 : vector<2x16xf32> to vector<2x16x1xf32>
      %195 = tpu.reciprocal %194 {approx = true} : vector<2x16x1xf32> -> vector<2x16x1xf32>
      %196 = vector.broadcast %195 : vector<2x16x1xf32> to vector<2x16x16xf32>
      %197 = arith.mulf %192, %196 : vector<2x16x16xf32>
      "tpu.trace_start"() <{level = 10 : i32, message = "bqk,bkd->bqd"}> : () -> ()
      %cst_69 = arith.constant dense<0.000000e+00> : vector<2x16x8xf32>
      %198 = tpu.matmul %197, %186, %cst_69 {dimension_numbers = #tpu.dot_dimension_numbers<[2], [1], [1], [2], [0, 0, 0, 1, 1, 2], [0], [0]>} : vector<2x16x16xf32>, vector<2x16x8xf32>, vector<2x16x8xf32> -> vector<2x16x8xf32>
      "tpu.trace_stop"() : () -> ()
      %199 = vector.shape_cast %198 : vector<2x16x8xf32> to vector<32x8xf32>
      %200 = vector.extract_strided_slice %157 {offsets = [8, 0], sizes = [8, 32], strides = [1, 1]} : vector<32x32xf32> to vector<8x32xf32>
      %cst_70 = arith.constant dense<0.000000e+00> : vector<32x32xf32>
      %201 = tpu.matmul %199, %200, %cst_70 {dimension_numbers = #tpu.dot_dimension_numbers<[1], [0], [0], [1], [0, 0, 1, 1], [], []>} : vector<32x8xf32>, vector<8x32xf32>, vector<32x32xf32> -> vector<32x32xf32>
      %202 = arith.addf %181, %201 : vector<32x32xf32>
      %203 = vector.extract_strided_slice %161 {offsets = [0, 0, 16], sizes = [2, 16, 8], strides = [1, 1, 1]} : vector<2x16x96xf32> to vector<2x16x8xf32>
      %cst_71 = arith.constant 0.353553385 : f32
      %204 = vector.broadcast %cst_71 : f32 to vector<2x16x8xf32>
      %205 = arith.mulf %203, %204 : vector<2x16x8xf32>
      %206 = vector.extract_strided_slice %161 {offsets = [0, 0, 48], sizes = [2, 16, 8], strides = [1, 1, 1]} : vector<2x16x96xf32> to vector<2x16x8xf32>
      %207 = vector.extract_strided_slice %161 {offsets = [0, 0, 80], sizes = [2, 16, 8], strides = [1, 1, 1]} : vector<2x16x96xf32> to vector<2x16x8xf32>
      "tpu.trace_start"() <{level = 10 : i32, message = "bqd,bkd->bqk"}> : () -> ()
      %cst_72 = arith.constant dense<0.000000e+00> : vector<2x16x16xf32>
      %208 = tpu.matmul %205, %206, %cst_72 {dimension_numbers = #tpu.dot_dimension_numbers<[2], [2], [1], [1], [0, 0, 0, 1, 1, 1], [0], [0]>} : vector<2x16x8xf32>, vector<2x16x8xf32>, vector<2x16x16xf32> -> vector<2x16x16xf32>
      "tpu.trace_stop"() : () -> ()
      %cst_73 = arith.constant dense<0xFF800000> : vector<2x16xf32>
      %209 = vector.multi_reduction <maximumf>, %208, %cst_73 [2] : vector<2x16x16xf32> to vector<2x16xf32>
      %210 = vector.shape_cast %209 : vector<2x16xf32> to vector<2x16x1xf32>
      %211 = vector.broadcast %210 : vector<2x16x1xf32> to vector<2x16x16xf32>
      %212 = arith.subf %208, %211 : vector<2x16x16xf32>
      %213 = math.exp %212 : vector<2x16x16xf32>
      %cst_74 = arith.constant dense<0.000000e+00> : vector<2x16xf32>
      %214 = vector.multi_reduction <add>, %213, %cst_74 [2] : vector<2x16x16xf32> to vector<2x16xf32>
      %215 = vector.shape_cast %214 : vector<2x16xf32> to vector<2x16x1xf32>
      %216 = tpu.reciprocal %215 {approx = true} : vector<2x16x1xf32> -> vector<2x16x1xf32>
      %217 = vector.broadcast %216 : vector<2x16x1xf32> to vector<2x16x16xf32>
      %218 = arith.mulf %213, %217 : vector<2x16x16xf32>
      "tpu.trace_start"() <{level = 10 : i32, message = "bqk,bkd->bqd"}> : () -> ()
      %cst_75 = arith.constant dense<0.000000e+00> : vector<2x16x8xf32>
      %219 = tpu.matmul %218, %207, %cst_75 {dimension_numbers = #tpu.dot_dimension_numbers<[2], [1], [1], [2], [0, 0, 0, 1, 1, 2], [0], [0]>} : vector<2x16x16xf32>, vector<2x16x8xf32>, vector<2x16x8xf32> -> vector<2x16x8xf32>
      "tpu.trace_stop"() : () -> ()
      %220 = vector.shape_cast %219 : vector<2x16x8xf32> to vector<32x8xf32>
      %221 = vector.extract_strided_slice %157 {offsets = [16, 0], sizes = [8, 32], strides = [1, 1]} : vector<32x32xf32> to vector<8x32xf32>
      %cst_76 = arith.constant dense<0.000000e+00> : vector<32x32xf32>
      %222 = tpu.matmul %220, %221, %cst_76 {dimension_numbers = #tpu.dot_dimension_numbers<[1], [0], [0], [1], [0, 0, 1, 1], [], []>} : vector<32x8xf32>, vector<8x32xf32>, vector<32x32xf32> -> vector<32x32xf32>
      %223 = arith.addf %202, %222 : vector<32x32xf32>
      %224 = vector.extract_strided_slice %161 {offsets = [0, 0, 24], sizes = [2, 16, 8], strides = [1, 1, 1]} : vector<2x16x96xf32> to vector<2x16x8xf32>
      %cst_77 = arith.constant 0.353553385 : f32
      %225 = vector.broadcast %cst_77 : f32 to vector<2x16x8xf32>
      %226 = arith.mulf %224, %225 : vector<2x16x8xf32>
      %227 = vector.extract_strided_slice %161 {offsets = [0, 0, 56], sizes = [2, 16, 8], strides = [1, 1, 1]} : vector<2x16x96xf32> to vector<2x16x8xf32>
      %228 = vector.extract_strided_slice %161 {offsets = [0, 0, 88], sizes = [2, 16, 8], strides = [1, 1, 1]} : vector<2x16x96xf32> to vector<2x16x8xf32>
      "tpu.trace_start"() <{level = 10 : i32, message = "bqd,bkd->bqk"}> : () -> ()
      %cst_78 = arith.constant dense<0.000000e+00> : vector<2x16x16xf32>
      %229 = tpu.matmul %226, %227, %cst_78 {dimension_numbers = #tpu.dot_dimension_numbers<[2], [2], [1], [1], [0, 0, 0, 1, 1, 1], [0], [0]>} : vector<2x16x8xf32>, vector<2x16x8xf32>, vector<2x16x16xf32> -> vector<2x16x16xf32>
      "tpu.trace_stop"() : () -> ()
      %cst_79 = arith.constant dense<0xFF800000> : vector<2x16xf32>
      %230 = vector.multi_reduction <maximumf>, %229, %cst_79 [2] : vector<2x16x16xf32> to vector<2x16xf32>
      %231 = vector.shape_cast %230 : vector<2x16xf32> to vector<2x16x1xf32>
      %232 = vector.broadcast %231 : vector<2x16x1xf32> to vector<2x16x16xf32>
      %233 = arith.subf %229, %232 : vector<2x16x16xf32>
      %234 = math.exp %233 : vector<2x16x16xf32>
      %cst_80 = arith.constant dense<0.000000e+00> : vector<2x16xf32>
      %235 = vector.multi_reduction <add>, %234, %cst_80 [2] : vector<2x16x16xf32> to vector<2x16xf32>
      %236 = vector.shape_cast %235 : vector<2x16xf32> to vector<2x16x1xf32>
      %237 = tpu.reciprocal %236 {approx = true} : vector<2x16x1xf32> -> vector<2x16x1xf32>
      %238 = vector.broadcast %237 : vector<2x16x1xf32> to vector<2x16x16xf32>
      %239 = arith.mulf %234, %238 : vector<2x16x16xf32>
      "tpu.trace_start"() <{level = 10 : i32, message = "bqk,bkd->bqd"}> : () -> ()
      %cst_81 = arith.constant dense<0.000000e+00> : vector<2x16x8xf32>
      %240 = tpu.matmul %239, %228, %cst_81 {dimension_numbers = #tpu.dot_dimension_numbers<[2], [1], [1], [2], [0, 0, 0, 1, 1, 2], [0], [0]>} : vector<2x16x16xf32>, vector<2x16x8xf32>, vector<2x16x8xf32> -> vector<2x16x8xf32>
      "tpu.trace_stop"() : () -> ()
      %241 = vector.shape_cast %240 : vector<2x16x8xf32> to vector<32x8xf32>
      %242 = vector.extract_strided_slice %157 {offsets = [24, 0], sizes = [8, 32], strides = [1, 1]} : vector<32x32xf32> to vector<8x32xf32>
      %cst_82 = arith.constant dense<0.000000e+00> : vector<32x32xf32>
      %243 = tpu.matmul %241, %242, %cst_82 {dimension_numbers = #tpu.dot_dimension_numbers<[1], [0], [0], [1], [0, 0, 1, 1], [], []>} : vector<32x8xf32>, vector<8x32xf32>, vector<32x32xf32> -> vector<32x32xf32>
      %244 = arith.addf %223, %243 : vector<32x32xf32>
      %245 = vector.broadcast %150 : vector<1x32xf32> to vector<32x32xf32>
      %246 = arith.addf %244, %245 : vector<32x32xf32>
      %247 = arith.addf %arg9, %246 : vector<32x32xf32>
      %248 = vector.extract_strided_slice %147 {offsets = [4, 0], sizes = [1, 32], strides = [1, 1]} : vector<8x96xf32> to vector<1x32xf32>
      %249 = vector.extract_strided_slice %147 {offsets = [5, 0], sizes = [1, 32], strides = [1, 1]} : vector<8x96xf32> to vector<1x32xf32>
      %cst_83 = arith.constant dense<0.000000e+00> : vector<32xf32>
      %250 = vector.multi_reduction <add>, %247, %cst_83 [1] : vector<32x32xf32> to vector<32xf32>
      %251 = vector.shape_cast %250 : vector<32xf32> to vector<32x1xf32>
      %cst_84 = arith.constant 3.200000e+01 : f32
      %252 = vector.broadcast %cst_84 : f32 to vector<32x1xf32>
      %253 = arith.divf %251, %252 : vector<32x1xf32>
      %254 = vector.broadcast %253 : vector<32x1xf32> to vector<32x32xf32>
      %255 = arith.subf %247, %254 : vector<32x32xf32>
      %256 = arith.mulf %255, %255 : vector<32x32xf32>
      %cst_85 = arith.constant dense<0.000000e+00> : vector<32xf32>
      %257 = vector.multi_reduction <add>, %256, %cst_85 [1] : vector<32x32xf32> to vector<32xf32>
      %258 = vector.shape_cast %257 : vector<32xf32> to vector<32x1xf32>
      %cst_86 = arith.constant 3.200000e+01 : f32
      %259 = vector.broadcast %cst_86 : f32 to vector<32x1xf32>
      %260 = arith.divf %258, %259 : vector<32x1xf32>
      %261 = vector.broadcast %253 : vector<32x1xf32> to vector<32x32xf32>
      %262 = arith.subf %247, %261 : vector<32x32xf32>
      %cst_87 = arith.constant 9.99999974E-6 : f32
      %263 = vector.broadcast %cst_87 : f32 to vector<32x1xf32>
      %264 = arith.addf %260, %263 : vector<32x1xf32>
      %265 = math.rsqrt %264 : vector<32x1xf32>
      %266 = vector.broadcast %265 : vector<32x1xf32> to vector<32x32xf32>
      %267 = arith.mulf %262, %266 : vector<32x32xf32>
      %268 = vector.broadcast %248 : vector<1x32xf32> to vector<32x32xf32>
      %269 = arith.mulf %267, %268 : vector<32x32xf32>
      %270 = vector.broadcast %249 : vector<1x32xf32> to vector<32x32xf32>
      %271 = arith.addf %269, %270 : vector<32x32xf32>
      %272 = arith.index_cast %arg8 : i32 to index
      %c0_88 = arith.constant 0 : index
      %c0_89 = arith.constant 0 : index
      %273 = vector.load %arg4[%272, %c0_88, %c0_89] : memref<5x32x64xf32, #tpu.memory_space<vmem>>, vector<1x32x64xf32>
      %274 = vector.shape_cast %273 : vector<1x32x64xf32> to vector<32x64xf32>
      %cst_90 = arith.constant dense<0.000000e+00> : vector<32x64xf32>
      %275 = tpu.matmul %271, %274, %cst_90 {dimension_numbers = #tpu.dot_dimension_numbers<[1], [0], [0], [1], [0, 0, 1, 1], [], []>} : vector<32x32xf32>, vector<32x64xf32>, vector<32x64xf32> -> vector<32x64xf32>
      %276 = vector.broadcast %149 : vector<1x64xf32> to vector<32x64xf32>
      %277 = arith.addf %275, %276 : vector<32x64xf32>
      %cst_91 = arith.constant 0.000000e+00 : f32
      %278 = vector.broadcast %cst_91 : f32 to vector<32x64xf32>
      %279 = arith.maximumf %277, %278 : vector<32x64xf32>
      %280 = arith.index_cast %arg8 : i32 to index
      %c0_92 = arith.constant 0 : index
      %c0_93 = arith.constant 0 : index
      %281 = vector.load %arg5[%280, %c0_92, %c0_93] : memref<5x64x32xf32, #tpu.memory_space<vmem>>, vector<1x64x32xf32>
      %282 = vector.shape_cast %281 : vector<1x64x32xf32> to vector<64x32xf32>
      %cst_94 = arith.constant dense<0.000000e+00> : vector<32x32xf32>
      %283 = tpu.matmul %279, %282, %cst_94 {dimension_numbers = #tpu.dot_dimension_numbers<[1], [0], [0], [1], [0, 0, 1, 1], [], []>} : vector<32x64xf32>, vector<64x32xf32>, vector<32x32xf32> -> vector<32x32xf32>
      %284 = vector.broadcast %151 : vector<1x32xf32> to vector<32x32xf32>
      %285 = arith.addf %283, %284 : vector<32x32xf32>
      %286 = arith.addf %271, %285 : vector<32x32xf32>
      %287 = vector.extract_strided_slice %147 {offsets = [6, 0], sizes = [1, 32], strides = [1, 1]} : vector<8x96xf32> to vector<1x32xf32>
      %288 = vector.extract_strided_slice %147 {offsets = [7, 0], sizes = [1, 32], strides = [1, 1]} : vector<8x96xf32> to vector<1x32xf32>
      %cst_95 = arith.constant dense<0.000000e+00> : vector<32xf32>
      %289 = vector.multi_reduction <add>, %286, %cst_95 [1] : vector<32x32xf32> to vector<32xf32>
      %290 = vector.shape_cast %289 : vector<32xf32> to vector<32x1xf32>
      %cst_96 = arith.constant 3.200000e+01 : f32
      %291 = vector.broadcast %cst_96 : f32 to vector<32x1xf32>
      %292 = arith.divf %290, %291 : vector<32x1xf32>
      %293 = vector.broadcast %292 : vector<32x1xf32> to vector<32x32xf32>
      %294 = arith.subf %286, %293 : vector<32x32xf32>
      %295 = arith.mulf %294, %294 : vector<32x32xf32>
      %cst_97 = arith.constant dense<0.000000e+00> : vector<32xf32>
      %296 = vector.multi_reduction <add>, %295, %cst_97 [1] : vector<32x32xf32> to vector<32xf32>
      %297 = vector.shape_cast %296 : vector<32xf32> to vector<32x1xf32>
      %cst_98 = arith.constant 3.200000e+01 : f32
      %298 = vector.broadcast %cst_98 : f32 to vector<32x1xf32>
      %299 = arith.divf %297, %298 : vector<32x1xf32>
      %300 = vector.broadcast %292 : vector<32x1xf32> to vector<32x32xf32>
      %301 = arith.subf %286, %300 : vector<32x32xf32>
      %cst_99 = arith.constant 9.99999974E-6 : f32
      %302 = vector.broadcast %cst_99 : f32 to vector<32x1xf32>
      %303 = arith.addf %299, %302 : vector<32x1xf32>
      %304 = math.rsqrt %303 : vector<32x1xf32>
      %305 = vector.broadcast %304 : vector<32x1xf32> to vector<32x32xf32>
      %306 = arith.mulf %301, %305 : vector<32x32xf32>
      %307 = vector.broadcast %287 : vector<1x32xf32> to vector<32x32xf32>
      %308 = arith.mulf %306, %307 : vector<32x32xf32>
      %309 = vector.broadcast %288 : vector<1x32xf32> to vector<32x32xf32>
      %310 = arith.addf %308, %309 : vector<32x32xf32>
      scf.yield %310 : vector<32x32xf32>
    }
    %c4_i32_3 = arith.constant 4 : i32
    %c4 = arith.constant 4 : index
    %c0_4 = arith.constant 0 : index
    %c0_5 = arith.constant 0 : index
    %6 = vector.load %arg6[%c4, %c0_4, %c0_5] : memref<5x8x96xf32, #tpu.memory_space<vmem>>, vector<1x8x96xf32>
    %7 = vector.shape_cast %6 : vector<1x8x96xf32> to vector<8x96xf32>
    %8 = arith.addf %3, %5 : vector<32x32xf32>
    %9 = vector.extract_strided_slice %7 {offsets = [4, 0], sizes = [1, 32], strides = [1, 1]} : vector<8x96xf32> to vector<1x32xf32>
    %10 = vector.extract_strided_slice %7 {offsets = [5, 0], sizes = [1, 32], strides = [1, 1]} : vector<8x96xf32> to vector<1x32xf32>
    %cst = arith.constant dense<0.000000e+00> : vector<32xf32>
    %11 = vector.multi_reduction <add>, %8, %cst [1] : vector<32x32xf32> to vector<32xf32>
    %12 = vector.shape_cast %11 : vector<32xf32> to vector<32x1xf32>
    %cst_6 = arith.constant 3.200000e+01 : f32
    %13 = vector.broadcast %cst_6 : f32 to vector<32x1xf32>
    %14 = arith.divf %12, %13 : vector<32x1xf32>
    %15 = vector.broadcast %14 : vector<32x1xf32> to vector<32x32xf32>
    %16 = arith.subf %8, %15 : vector<32x32xf32>
    %17 = arith.mulf %16, %16 : vector<32x32xf32>
    %cst_7 = arith.constant dense<0.000000e+00> : vector<32xf32>
    %18 = vector.multi_reduction <add>, %17, %cst_7 [1] : vector<32x32xf32> to vector<32xf32>
    %19 = vector.shape_cast %18 : vector<32xf32> to vector<32x1xf32>
    %cst_8 = arith.constant 3.200000e+01 : f32
    %20 = vector.broadcast %cst_8 : f32 to vector<32x1xf32>
    %21 = arith.divf %19, %20 : vector<32x1xf32>
    %22 = vector.broadcast %14 : vector<32x1xf32> to vector<32x32xf32>
    %23 = arith.subf %8, %22 : vector<32x32xf32>
    %cst_9 = arith.constant 9.99999974E-6 : f32
    %24 = vector.broadcast %cst_9 : f32 to vector<32x1xf32>
    %25 = arith.addf %21, %24 : vector<32x1xf32>
    %26 = math.rsqrt %25 : vector<32x1xf32>
    %27 = vector.broadcast %26 : vector<32x1xf32> to vector<32x32xf32>
    %28 = arith.mulf %23, %27 : vector<32x32xf32>
    %29 = vector.broadcast %9 : vector<1x32xf32> to vector<32x32xf32>
    %30 = arith.mulf %28, %29 : vector<32x32xf32>
    %31 = vector.broadcast %10 : vector<1x32xf32> to vector<32x32xf32>
    %32 = arith.addf %30, %31 : vector<32x32xf32>
    %c4_10 = arith.constant 4 : index
    %c0_11 = arith.constant 0 : index
    %c0_12 = arith.constant 0 : index
    %33 = vector.load %arg2[%c4_10, %c0_11, %c0_12] : memref<5x32x96xf32, #tpu.memory_space<vmem>>, vector<1x32x96xf32>
    %34 = vector.shape_cast %33 : vector<1x32x96xf32> to vector<32x96xf32>
    %35 = vector.extract_strided_slice %7 {offsets = [0, 0], sizes = [1, 96], strides = [1, 1]} : vector<8x96xf32> to vector<1x96xf32>
    %c4_13 = arith.constant 4 : index
    %c0_14 = arith.constant 0 : index
    %c0_15 = arith.constant 0 : index
    %36 = vector.load %arg3[%c4_13, %c0_14, %c0_15] : memref<5x32x32xf32, #tpu.memory_space<vmem>>, vector<1x32x32xf32>
    %37 = vector.shape_cast %36 : vector<1x32x32xf32> to vector<32x32xf32>
    %38 = vector.extract_strided_slice %7 {offsets = [2, 0], sizes = [1, 32], strides = [1, 1]} : vector<8x96xf32> to vector<1x32xf32>
    %cst_16 = arith.constant dense<0.000000e+00> : vector<32x96xf32>
    %39 = tpu.matmul %32, %34, %cst_16 {dimension_numbers = #tpu.dot_dimension_numbers<[1], [0], [0], [1], [0, 0, 1, 1], [], []>} : vector<32x32xf32>, vector<32x96xf32>, vector<32x96xf32> -> vector<32x96xf32>
    %40 = vector.broadcast %35 : vector<1x96xf32> to vector<32x96xf32>
    %41 = arith.addf %39, %40 : vector<32x96xf32>
    %42 = vector.shape_cast %41 : vector<32x96xf32> to vector<2x16x96xf32>
    %43 = vector.extract_strided_slice %42 {offsets = [0, 0, 0], sizes = [2, 16, 8], strides = [1, 1, 1]} : vector<2x16x96xf32> to vector<2x16x8xf32>
    %cst_17 = arith.constant 0.353553385 : f32
    %44 = vector.broadcast %cst_17 : f32 to vector<2x16x8xf32>
    %45 = arith.mulf %43, %44 : vector<2x16x8xf32>
    %46 = vector.extract_strided_slice %42 {offsets = [0, 0, 32], sizes = [2, 16, 8], strides = [1, 1, 1]} : vector<2x16x96xf32> to vector<2x16x8xf32>
    %47 = vector.extract_strided_slice %42 {offsets = [0, 0, 64], sizes = [2, 16, 8], strides = [1, 1, 1]} : vector<2x16x96xf32> to vector<2x16x8xf32>
    "tpu.trace_start"() <{level = 10 : i32, message = "bqd,bkd->bqk"}> : () -> ()
    %cst_18 = arith.constant dense<0.000000e+00> : vector<2x16x16xf32>
    %48 = tpu.matmul %45, %46, %cst_18 {dimension_numbers = #tpu.dot_dimension_numbers<[2], [2], [1], [1], [0, 0, 0, 1, 1, 1], [0], [0]>} : vector<2x16x8xf32>, vector<2x16x8xf32>, vector<2x16x16xf32> -> vector<2x16x16xf32>
    "tpu.trace_stop"() : () -> ()
    %cst_19 = arith.constant dense<0xFF800000> : vector<2x16xf32>
    %49 = vector.multi_reduction <maximumf>, %48, %cst_19 [2] : vector<2x16x16xf32> to vector<2x16xf32>
    %50 = vector.shape_cast %49 : vector<2x16xf32> to vector<2x16x1xf32>
    %51 = vector.broadcast %50 : vector<2x16x1xf32> to vector<2x16x16xf32>
    %52 = arith.subf %48, %51 : vector<2x16x16xf32>
    %53 = math.exp %52 : vector<2x16x16xf32>
    %cst_20 = arith.constant dense<0.000000e+00> : vector<2x16xf32>
    %54 = vector.multi_reduction <add>, %53, %cst_20 [2] : vector<2x16x16xf32> to vector<2x16xf32>
    %55 = vector.shape_cast %54 : vector<2x16xf32> to vector<2x16x1xf32>
    %56 = tpu.reciprocal %55 {approx = true} : vector<2x16x1xf32> -> vector<2x16x1xf32>
    %57 = vector.broadcast %56 : vector<2x16x1xf32> to vector<2x16x16xf32>
    %58 = arith.mulf %53, %57 : vector<2x16x16xf32>
    "tpu.trace_start"() <{level = 10 : i32, message = "bqk,bkd->bqd"}> : () -> ()
    %cst_21 = arith.constant dense<0.000000e+00> : vector<2x16x8xf32>
    %59 = tpu.matmul %58, %47, %cst_21 {dimension_numbers = #tpu.dot_dimension_numbers<[2], [1], [1], [2], [0, 0, 0, 1, 1, 2], [0], [0]>} : vector<2x16x16xf32>, vector<2x16x8xf32>, vector<2x16x8xf32> -> vector<2x16x8xf32>
    "tpu.trace_stop"() : () -> ()
    %60 = vector.shape_cast %59 : vector<2x16x8xf32> to vector<32x8xf32>
    %61 = vector.extract_strided_slice %37 {offsets = [0, 0], sizes = [8, 32], strides = [1, 1]} : vector<32x32xf32> to vector<8x32xf32>
    %cst_22 = arith.constant dense<0.000000e+00> : vector<32x32xf32>
    %62 = tpu.matmul %60, %61, %cst_22 {dimension_numbers = #tpu.dot_dimension_numbers<[1], [0], [0], [1], [0, 0, 1, 1], [], []>} : vector<32x8xf32>, vector<8x32xf32>, vector<32x32xf32> -> vector<32x32xf32>
    %63 = vector.extract_strided_slice %42 {offsets = [0, 0, 8], sizes = [2, 16, 8], strides = [1, 1, 1]} : vector<2x16x96xf32> to vector<2x16x8xf32>
    %cst_23 = arith.constant 0.353553385 : f32
    %64 = vector.broadcast %cst_23 : f32 to vector<2x16x8xf32>
    %65 = arith.mulf %63, %64 : vector<2x16x8xf32>
    %66 = vector.extract_strided_slice %42 {offsets = [0, 0, 40], sizes = [2, 16, 8], strides = [1, 1, 1]} : vector<2x16x96xf32> to vector<2x16x8xf32>
    %67 = vector.extract_strided_slice %42 {offsets = [0, 0, 72], sizes = [2, 16, 8], strides = [1, 1, 1]} : vector<2x16x96xf32> to vector<2x16x8xf32>
    "tpu.trace_start"() <{level = 10 : i32, message = "bqd,bkd->bqk"}> : () -> ()
    %cst_24 = arith.constant dense<0.000000e+00> : vector<2x16x16xf32>
    %68 = tpu.matmul %65, %66, %cst_24 {dimension_numbers = #tpu.dot_dimension_numbers<[2], [2], [1], [1], [0, 0, 0, 1, 1, 1], [0], [0]>} : vector<2x16x8xf32>, vector<2x16x8xf32>, vector<2x16x16xf32> -> vector<2x16x16xf32>
    "tpu.trace_stop"() : () -> ()
    %cst_25 = arith.constant dense<0xFF800000> : vector<2x16xf32>
    %69 = vector.multi_reduction <maximumf>, %68, %cst_25 [2] : vector<2x16x16xf32> to vector<2x16xf32>
    %70 = vector.shape_cast %69 : vector<2x16xf32> to vector<2x16x1xf32>
    %71 = vector.broadcast %70 : vector<2x16x1xf32> to vector<2x16x16xf32>
    %72 = arith.subf %68, %71 : vector<2x16x16xf32>
    %73 = math.exp %72 : vector<2x16x16xf32>
    %cst_26 = arith.constant dense<0.000000e+00> : vector<2x16xf32>
    %74 = vector.multi_reduction <add>, %73, %cst_26 [2] : vector<2x16x16xf32> to vector<2x16xf32>
    %75 = vector.shape_cast %74 : vector<2x16xf32> to vector<2x16x1xf32>
    %76 = tpu.reciprocal %75 {approx = true} : vector<2x16x1xf32> -> vector<2x16x1xf32>
    %77 = vector.broadcast %76 : vector<2x16x1xf32> to vector<2x16x16xf32>
    %78 = arith.mulf %73, %77 : vector<2x16x16xf32>
    "tpu.trace_start"() <{level = 10 : i32, message = "bqk,bkd->bqd"}> : () -> ()
    %cst_27 = arith.constant dense<0.000000e+00> : vector<2x16x8xf32>
    %79 = tpu.matmul %78, %67, %cst_27 {dimension_numbers = #tpu.dot_dimension_numbers<[2], [1], [1], [2], [0, 0, 0, 1, 1, 2], [0], [0]>} : vector<2x16x16xf32>, vector<2x16x8xf32>, vector<2x16x8xf32> -> vector<2x16x8xf32>
    "tpu.trace_stop"() : () -> ()
    %80 = vector.shape_cast %79 : vector<2x16x8xf32> to vector<32x8xf32>
    %81 = vector.extract_strided_slice %37 {offsets = [8, 0], sizes = [8, 32], strides = [1, 1]} : vector<32x32xf32> to vector<8x32xf32>
    %cst_28 = arith.constant dense<0.000000e+00> : vector<32x32xf32>
    %82 = tpu.matmul %80, %81, %cst_28 {dimension_numbers = #tpu.dot_dimension_numbers<[1], [0], [0], [1], [0, 0, 1, 1], [], []>} : vector<32x8xf32>, vector<8x32xf32>, vector<32x32xf32> -> vector<32x32xf32>
    %83 = arith.addf %62, %82 : vector<32x32xf32>
    %84 = vector.extract_strided_slice %42 {offsets = [0, 0, 16], sizes = [2, 16, 8], strides = [1, 1, 1]} : vector<2x16x96xf32> to vector<2x16x8xf32>
    %cst_29 = arith.constant 0.353553385 : f32
    %85 = vector.broadcast %cst_29 : f32 to vector<2x16x8xf32>
    %86 = arith.mulf %84, %85 : vector<2x16x8xf32>
    %87 = vector.extract_strided_slice %42 {offsets = [0, 0, 48], sizes = [2, 16, 8], strides = [1, 1, 1]} : vector<2x16x96xf32> to vector<2x16x8xf32>
    %88 = vector.extract_strided_slice %42 {offsets = [0, 0, 80], sizes = [2, 16, 8], strides = [1, 1, 1]} : vector<2x16x96xf32> to vector<2x16x8xf32>
    "tpu.trace_start"() <{level = 10 : i32, message = "bqd,bkd->bqk"}> : () -> ()
    %cst_30 = arith.constant dense<0.000000e+00> : vector<2x16x16xf32>
    %89 = tpu.matmul %86, %87, %cst_30 {dimension_numbers = #tpu.dot_dimension_numbers<[2], [2], [1], [1], [0, 0, 0, 1, 1, 1], [0], [0]>} : vector<2x16x8xf32>, vector<2x16x8xf32>, vector<2x16x16xf32> -> vector<2x16x16xf32>
    "tpu.trace_stop"() : () -> ()
    %cst_31 = arith.constant dense<0xFF800000> : vector<2x16xf32>
    %90 = vector.multi_reduction <maximumf>, %89, %cst_31 [2] : vector<2x16x16xf32> to vector<2x16xf32>
    %91 = vector.shape_cast %90 : vector<2x16xf32> to vector<2x16x1xf32>
    %92 = vector.broadcast %91 : vector<2x16x1xf32> to vector<2x16x16xf32>
    %93 = arith.subf %89, %92 : vector<2x16x16xf32>
    %94 = math.exp %93 : vector<2x16x16xf32>
    %cst_32 = arith.constant dense<0.000000e+00> : vector<2x16xf32>
    %95 = vector.multi_reduction <add>, %94, %cst_32 [2] : vector<2x16x16xf32> to vector<2x16xf32>
    %96 = vector.shape_cast %95 : vector<2x16xf32> to vector<2x16x1xf32>
    %97 = tpu.reciprocal %96 {approx = true} : vector<2x16x1xf32> -> vector<2x16x1xf32>
    %98 = vector.broadcast %97 : vector<2x16x1xf32> to vector<2x16x16xf32>
    %99 = arith.mulf %94, %98 : vector<2x16x16xf32>
    "tpu.trace_start"() <{level = 10 : i32, message = "bqk,bkd->bqd"}> : () -> ()
    %cst_33 = arith.constant dense<0.000000e+00> : vector<2x16x8xf32>
    %100 = tpu.matmul %99, %88, %cst_33 {dimension_numbers = #tpu.dot_dimension_numbers<[2], [1], [1], [2], [0, 0, 0, 1, 1, 2], [0], [0]>} : vector<2x16x16xf32>, vector<2x16x8xf32>, vector<2x16x8xf32> -> vector<2x16x8xf32>
    "tpu.trace_stop"() : () -> ()
    %101 = vector.shape_cast %100 : vector<2x16x8xf32> to vector<32x8xf32>
    %102 = vector.extract_strided_slice %37 {offsets = [16, 0], sizes = [8, 32], strides = [1, 1]} : vector<32x32xf32> to vector<8x32xf32>
    %cst_34 = arith.constant dense<0.000000e+00> : vector<32x32xf32>
    %103 = tpu.matmul %101, %102, %cst_34 {dimension_numbers = #tpu.dot_dimension_numbers<[1], [0], [0], [1], [0, 0, 1, 1], [], []>} : vector<32x8xf32>, vector<8x32xf32>, vector<32x32xf32> -> vector<32x32xf32>
    %104 = arith.addf %83, %103 : vector<32x32xf32>
    %105 = vector.extract_strided_slice %42 {offsets = [0, 0, 24], sizes = [2, 16, 8], strides = [1, 1, 1]} : vector<2x16x96xf32> to vector<2x16x8xf32>
    %cst_35 = arith.constant 0.353553385 : f32
    %106 = vector.broadcast %cst_35 : f32 to vector<2x16x8xf32>
    %107 = arith.mulf %105, %106 : vector<2x16x8xf32>
    %108 = vector.extract_strided_slice %42 {offsets = [0, 0, 56], sizes = [2, 16, 8], strides = [1, 1, 1]} : vector<2x16x96xf32> to vector<2x16x8xf32>
    %109 = vector.extract_strided_slice %42 {offsets = [0, 0, 88], sizes = [2, 16, 8], strides = [1, 1, 1]} : vector<2x16x96xf32> to vector<2x16x8xf32>
    "tpu.trace_start"() <{level = 10 : i32, message = "bqd,bkd->bqk"}> : () -> ()
    %cst_36 = arith.constant dense<0.000000e+00> : vector<2x16x16xf32>
    %110 = tpu.matmul %107, %108, %cst_36 {dimension_numbers = #tpu.dot_dimension_numbers<[2], [2], [1], [1], [0, 0, 0, 1, 1, 1], [0], [0]>} : vector<2x16x8xf32>, vector<2x16x8xf32>, vector<2x16x16xf32> -> vector<2x16x16xf32>
    "tpu.trace_stop"() : () -> ()
    %cst_37 = arith.constant dense<0xFF800000> : vector<2x16xf32>
    %111 = vector.multi_reduction <maximumf>, %110, %cst_37 [2] : vector<2x16x16xf32> to vector<2x16xf32>
    %112 = vector.shape_cast %111 : vector<2x16xf32> to vector<2x16x1xf32>
    %113 = vector.broadcast %112 : vector<2x16x1xf32> to vector<2x16x16xf32>
    %114 = arith.subf %110, %113 : vector<2x16x16xf32>
    %115 = math.exp %114 : vector<2x16x16xf32>
    %cst_38 = arith.constant dense<0.000000e+00> : vector<2x16xf32>
    %116 = vector.multi_reduction <add>, %115, %cst_38 [2] : vector<2x16x16xf32> to vector<2x16xf32>
    %117 = vector.shape_cast %116 : vector<2x16xf32> to vector<2x16x1xf32>
    %118 = tpu.reciprocal %117 {approx = true} : vector<2x16x1xf32> -> vector<2x16x1xf32>
    %119 = vector.broadcast %118 : vector<2x16x1xf32> to vector<2x16x16xf32>
    %120 = arith.mulf %115, %119 : vector<2x16x16xf32>
    "tpu.trace_start"() <{level = 10 : i32, message = "bqk,bkd->bqd"}> : () -> ()
    %cst_39 = arith.constant dense<0.000000e+00> : vector<2x16x8xf32>
    %121 = tpu.matmul %120, %109, %cst_39 {dimension_numbers = #tpu.dot_dimension_numbers<[2], [1], [1], [2], [0, 0, 0, 1, 1, 2], [0], [0]>} : vector<2x16x16xf32>, vector<2x16x8xf32>, vector<2x16x8xf32> -> vector<2x16x8xf32>
    "tpu.trace_stop"() : () -> ()
    %122 = vector.shape_cast %121 : vector<2x16x8xf32> to vector<32x8xf32>
    %123 = vector.extract_strided_slice %37 {offsets = [24, 0], sizes = [8, 32], strides = [1, 1]} : vector<32x32xf32> to vector<8x32xf32>
    %cst_40 = arith.constant dense<0.000000e+00> : vector<32x32xf32>
    %124 = tpu.matmul %122, %123, %cst_40 {dimension_numbers = #tpu.dot_dimension_numbers<[1], [0], [0], [1], [0, 0, 1, 1], [], []>} : vector<32x8xf32>, vector<8x32xf32>, vector<32x32xf32> -> vector<32x32xf32>
    %125 = arith.addf %104, %124 : vector<32x32xf32>
    %126 = vector.broadcast %38 : vector<1x32xf32> to vector<32x32xf32>
    %127 = arith.addf %125, %126 : vector<32x32xf32>
    %128 = arith.addf %32, %127 : vector<32x32xf32>
    %c4_41 = arith.constant 4 : index
    %c0_42 = arith.constant 0 : index
    %c0_43 = arith.constant 0 : index
    %129 = vector.load %arg4[%c4_41, %c0_42, %c0_43] : memref<5x32x64xf32, #tpu.memory_space<vmem>>, vector<1x32x64xf32>
    %130 = vector.shape_cast %129 : vector<1x32x64xf32> to vector<32x64xf32>
    %cst_44 = arith.constant dense<0.000000e+00> : vector<32x64xf32>
    %131 = tpu.matmul %128, %130, %cst_44 {dimension_numbers = #tpu.dot_dimension_numbers<[1], [0], [0], [1], [0, 0, 1, 1], [], []>} : vector<32x32xf32>, vector<32x64xf32>, vector<32x64xf32> -> vector<32x64xf32>
    %132 = vector.extract_strided_slice %7 {offsets = [1, 0], sizes = [1, 64], strides = [1, 1]} : vector<8x96xf32> to vector<1x64xf32>
    %133 = vector.broadcast %132 : vector<1x64xf32> to vector<32x64xf32>
    %134 = arith.addf %131, %133 : vector<32x64xf32>
    %cst_45 = arith.constant 0.000000e+00 : f32
    %135 = vector.broadcast %cst_45 : f32 to vector<32x64xf32>
    %136 = arith.maximumf %134, %135 : vector<32x64xf32>
    %c4_46 = arith.constant 4 : index
    %c0_47 = arith.constant 0 : index
    %c0_48 = arith.constant 0 : index
    %137 = vector.load %arg5[%c4_46, %c0_47, %c0_48] : memref<5x64x32xf32, #tpu.memory_space<vmem>>, vector<1x64x32xf32>
    %138 = vector.shape_cast %137 : vector<1x64x32xf32> to vector<64x32xf32>
    %139 = vector.extract_strided_slice %138 {offsets = [0, 0], sizes = [64, 16], strides = [1, 1]} : vector<64x32xf32> to vector<64x16xf32>
    %cst_49 = arith.constant dense<0.000000e+00> : vector<32x16xf32>
    %140 = tpu.matmul %136, %139, %cst_49 {dimension_numbers = #tpu.dot_dimension_numbers<[1], [0], [0], [1], [0, 0, 1, 1], [], []>} : vector<32x64xf32>, vector<64x16xf32>, vector<32x16xf32> -> vector<32x16xf32>
    %141 = vector.extract_strided_slice %7 {offsets = [3, 0], sizes = [1, 16], strides = [1, 1]} : vector<8x96xf32> to vector<1x16xf32>
    %142 = vector.broadcast %141 : vector<1x16xf32> to vector<32x16xf32>
    %143 = arith.addf %140, %142 : vector<32x16xf32>
    %c0_50 = arith.constant 0 : index
    %c0_51 = arith.constant 0 : index
    %144 = vector.load %arg7[%c0_50, %c0_51] : memref<32x16xf32, #tpu.memory_space<vmem>>, vector<32x16xf32>
    tpu.vector_store %arg7[%c0_50, %c0_51], %143 {strides = array<i32>} : memref<32x16xf32, #tpu.memory_space<vmem>>, vector<32x16xf32>,
    return
  }
}

</mosaic_0001>

<llo_original>
// kernel: transformer_mlp_forward.1
$region0: #{transformer_mlp_forward.1}
  #allocation0 [shape = 'u32[]', space=smem, size = 0x4, offset = 0x4, fixed_abs, tag = 'smem constant byte address 0x4 - core index']
  #allocation1 [shape = 'u32[144,128]{1,0:T(1,128)}', space=vmem, size = 0x12000, scoped, tag = 'internal scratch']
  %s0 = inlined_call_operand.vmem [shape: f32[32,32], index: 0, kind: input, shape index: {}]
  %s1 = inlined_call_operand.vmem [shape: f32[16,32], index: 1, kind: input, shape index: {}]
  %s2 = inlined_call_operand.vmem [shape: f32[5,32,96], index: 2, kind: input, shape index: {}]
  %s3 = inlined_call_operand.vmem [shape: f32[5,32,32], index: 3, kind: input, shape index: {}]
  %s4 = inlined_call_operand.vmem [shape: f32[5,32,64], index: 4, kind: input, shape index: {}]
  %s5 = inlined_call_operand.vmem [shape: f32[5,64,32], index: 5, kind: input, shape index: {}]
  %s6 = inlined_call_operand.vmem [shape: f32[5,8,96], index: 6, kind: input, shape index: {}]
  %s7 = inlined_call_operand.vmem [shape: f32[32,16], index: 7, kind: output, shape index: {}]
  %s8 = sld [smem:[#allocation0]]
  $region45: #{transformer_mlp_forward.1} parent=0
    _
  %s10 = ssub.s32 1, %s8
  %s11 = scalar_select 0, %s10, %s8
  // Predicated region
  $region2: #{transformer_mlp_forward.1} parent=0 // pred_check
    _
  $region3: #{transformer_mlp_forward.1} parent=0 // pred_check_branch
    %13 = sbr.rel (0) target = $region5
  $region4: #{transformer_mlp_forward.1} parent=0 // pred_region
    _
  $region5: #{transformer_mlp_forward.1} parent=0 // pred_fallthru
    _
  // Predicated region
  $region6: #{transformer_mlp_forward.1} parent=0 // pred_check
    _
  $region7: #{transformer_mlp_forward.1} parent=0 // pred_check_branch
    %15 = sbr.rel (0) target = $region9
  $region8: #{transformer_mlp_forward.1} parent=0 // pred_region
    _
  $region9: #{transformer_mlp_forward.1} parent=0 // pred_fallthru
    _
  // Predicated region
  $region10: #{transformer_mlp_forward.1} parent=0 // pred_check
    _
  $region11: #{transformer_mlp_forward.1} parent=0 // pred_check_branch
    %17 = sbr.rel (0) target = $region13
  $region12: #{transformer_mlp_forward.1} parent=0 // pred_region
    _
  $region13: #{transformer_mlp_forward.1} parent=0 // pred_fallthru
    _
  // Predicated region
  $region14: #{transformer_mlp_forward.1} parent=0 // pred_check
    _
  $region15: #{transformer_mlp_forward.1} parent=0 // pred_check_branch
    %19 = sbr.rel (0) target = $region17
  $region16: #{transformer_mlp_forward.1} parent=0 // pred_region
    _
  $region17: #{transformer_mlp_forward.1} parent=0 // pred_fallthru
    _
  // Predicated region
  $region18: #{transformer_mlp_forward.1} parent=0 // pred_check
    _
  $region19: #{transformer_mlp_forward.1} parent=0 // pred_check_branch
    %21 = sbr.rel (0) target = $region21
  $region20: #{transformer_mlp_forward.1} parent=0 // pred_region
    _
  $region21: #{transformer_mlp_forward.1} parent=0 // pred_fallthru
    _
  // Predicated region
  $region22: #{transformer_mlp_forward.1} parent=0 // pred_check
    _
  $region23: #{transformer_mlp_forward.1} parent=0 // pred_check_branch
    %23 = sbr.rel (0) target = $region25
  $region24: #{transformer_mlp_forward.1} parent=0 // pred_region
    _
  $region25: #{transformer_mlp_forward.1} parent=0 // pred_fallthru
    _
  // Predicated region
  $region26: #{transformer_mlp_forward.1} parent=0 // pred_check
    _
  $region27: #{transformer_mlp_forward.1} parent=0 // pred_check_branch
    %25 = sbr.rel (0) target = $region29
  $region28: #{transformer_mlp_forward.1} parent=0 // pred_region
    _
  $region29: #{transformer_mlp_forward.1} parent=0 // pred_fallthru
    _
  %v26 = vld [vmem:[%s1] sm:$0xff]
  %v27 = vld [vmem:[%s1 + $0x8] sm:$0xff]
  %v28 = vld [vmem:[%s0] sm:$0xff]
  %v29 = vld [vmem:[%s0 + $0x8] sm:$0xff]
  %v30 = vld [vmem:[%s0 + $0x10] sm:$0xff]
  %v31 = vld [vmem:[%s0 + $0x18] sm:$0xff]
  %v32 = vadd.f32 %v28, %v26
  %v33 = vadd.f32 %v29, %v27
  %v34 = vadd.f32 %v30, %v26
  %v35 = vadd.f32 %v31, %v27
  loop: start=0, step=1, limit=4
  $region30: #{transformer_mlp_forward.1} parent=0 // loop_pre_header
    _
  $region31: #{transformer_mlp_forward.1} parent=0 // loop_header
    %s37 = sphi 0, %s41
    %p38 = scmp.ge.s32.totalorder %s37, 4
    %v42 = vphi %v32, %v2535
    %v43 = vphi %v33, %v2536
    %v44 = vphi %v34, %v2537
    %v45 = vphi %v35, %v2538
  $region32: #{transformer_mlp_forward.1} parent=0 // loop_header_branch
    %40 = sbr.rel (%p38) target = $region36
  $region33: #{transformer_mlp_forward.1} parent=0 // loop_body
    %s46 = smul.u32 %s37, 8
    %s47 = scalar_lea.vmem %s6, %s46
    %v48 = vld [vmem:[%s47] sm:$0xff]
    %s49 = smul.u32 %s37, 32
    %s50 = scalar_lea.vmem %s2, %s49
    %v51 = vld [vmem:[%s50] sm:$0xff]
    %v52 = vld [vmem:[%s50 + $0x8] sm:$0xff]
    %v53 = vld [vmem:[%s50 + $0x10] sm:$0xff]
    %v54 = vld [vmem:[%s50 + $0x18] sm:$0xff]
    %s55 = scalar_lea.vmem %s3, %s49
    %v56 = vld [vmem:[%s55] sm:$0xff]
    %v57 = vld [vmem:[%s55 + $0x8] sm:$0xff]
    %v58 = vld [vmem:[%s55 + $0x10] sm:$0xff]
    %v59 = vld [vmem:[%s55 + $0x18] sm:$0xff]
    %v60 = vlaneseq
    %v61 = vshrl.u32 %v60, 7
    %v62 = vsub.s32 0, %v61
    %v63 = vrot.slane %v48, %v62
    %vm64 = vcmask 261120
    %v66 = vsel %vm64, %v42, 0
    %v69 = vsel %vm64, %v43, 0
    %v72 = vsel %vm64, %v44, 0
    %v75 = vsel %vm64, %v45, 0
    %77 = vmatprep.subr.mxu0 0.0
    %78 = vmatpush1.msra.mxu0 0.0
    %79 = vmatprep.subr.mxu0 0.0
    %80 = vmatpush1.msra.mxu0 0.0
    %81 = vmatprep.subr.mxu0 0.0
    %82 = vmatpush1.msra.mxu0 0.0
    %83 = vmatprep.subr.mxu0 0.0
    %84 = vmatpush1.msra.mxu0 0.0
    %85 = vmatprep.subr.mxu0 0.0
    %86 = vmatpush1.msra.mxu0 0.0
    %87 = vmatprep.subr.mxu0 0.0
    %88 = vmatpush1.msra.mxu0 0.0
    %89 = vmatprep.subr.mxu0 0.0
    %90 = vmatpush1.msra.mxu0 0.0
    %91 = vmatprep.subr.mxu0 0.0
    %92 = vmatpush1.msra.mxu0 0.0
    %93 = vmatprep.subr.mxu0 0.0
    %94 = vmatpush1.msra.mxu0 0.0
    %95 = vmatprep.subr.mxu0 0.0
    %96 = vmatpush1.msra.mxu0 0.0
    %97 = vmatprep.subr.mxu0 0.0
    %98 = vmatpush1.msra.mxu0 0.0
    %99 = vmatprep.subr.mxu0 0.0
    %100 = vmatpush1.msra.mxu0 0.0
    %101 = vmatprep.subr.mxu0 0.0
    %102 = vmatpush1.msra.mxu0 %v54
    %103 = vmatprep.subr.mxu0 0.0
    %104 = vmatpush1.msra.mxu0 %v53
    %105 = vmatprep.subr.mxu0 0.0
    %106 = vmatpush1.msra.mxu0 %v52
    %107 = vmatprep.subr.mxu0 0.0
    %108 = vmatpush1.msra.mxu0 %v51
    %109 = vmatprep.subr.mxu0 0.0
    %110 = vmatpush2.msra.mxu0 0.0
    %111 = vmatprep.subr.mxu0 0.0
    %112 = vmatpush2.msra.mxu0 0.0
    %113 = vmatprep.subr.mxu0 0.0
    %114 = vmatpush2.msra.mxu0 0.0
    %115 = vmatprep.subr.mxu0 0.0
    %116 = vmatpush2.msra.mxu0 0.0
    %117 = vmatprep.subr.mxu0 0.0
    %118 = vmatpush2.msra.mxu0 0.0
    %119 = vmatprep.subr.mxu0 0.0
    %120 = vmatpush2.msra.mxu0 0.0
    %121 = vmatprep.subr.mxu0 0.0
    %122 = vmatpush2.msra.mxu0 0.0
    %123 = vmatprep.subr.mxu0 0.0
    %124 = vmatpush2.msra.mxu0 0.0
    %125 = vmatprep.subr.mxu0 0.0
    %126 = vmatpush2.msra.mxu0 0.0
    %127 = vmatprep.subr.mxu0 0.0
    %128 = vmatpush2.msra.mxu0 0.0
    %129 = vmatprep.subr.mxu0 0.0
    %130 = vmatpush2.msra.mxu0 0.0
    %131 = vmatprep.subr.mxu0 0.0
    %132 = vmatpush2.msra.mxu0 0.0
    %133 = vmatprep.subr.mxu0 0.0
    %134 = vmatpush2.msra.mxu0 0.0
    %135 = vmatprep.subr.mxu0 0.0
    %136 = vmatpush2.msra.mxu0 0.0
    %137 = vmatprep.subr.mxu0 0.0
    %138 = vmatpush2.msra.mxu0 0.0
    %139 = vmatprep.subr.mxu0 0.0
    %140 = vmatpush2.msra.mxu0 0.0
    %141 = vmatprep.mubr.f32.mxu0 0.0
    %142 = vmatmul.mubr.f32.gmra.mxu0 %v66
    %v143 = vpop.f32.mrf.mxu0
    %v144 = vadd.f32 %v63, %v143
    %v145 = vpop.f32.mrf.mxu0
    %146 = vmatprep.mubr.f32.mxu0 0.0
    %147 = vmatmul.mubr.f32.gmra.mxu0 %v69
    %v148 = vpop.f32.mrf.mxu0
    %v149 = vadd.f32 %v63, %v148
    %v150 = vpop.f32.mrf.mxu0
    %151 = vmatprep.mubr.f32.mxu0 0.0
    %152 = vmatmul.mubr.f32.gmra.mxu0 %v72
    %v153 = vpop.f32.mrf.mxu0
    %v154 = vadd.f32 %v63, %v153
    %v155 = vpop.f32.mrf.mxu0
    %156 = vmatprep.mubr.f32.mxu0 0.0
    %157 = vmatmul.mubr.f32.gmra.mxu0 %v75
    %v158 = vpop.f32.mrf.mxu0
    %v159 = vadd.f32 %v63, %v158
    %v160 = vpop.f32.mrf.mxu0
    %161 = vdwg.mxu0
    %v162 = vmul.f32 %v144, 0.35355338
    %v163 = vmul.f32 %v149, 0.35355338
    %v164 = vmul.f32 %v154, 0.35355338
    %v165 = vmul.f32 %v159, 0.35355338
    %168 = vrot.lane.b32.xlu0 %v144, 96
    %v169 = vpop.permute.xlu0 %168
    %170 = vrot.lane.b32.xlu0 %v149, 96
    %v171 = vpop.permute.xlu0 %170
    %vm172 = vcmask 64512
    %v174 = vsel %vm172, %v162, 0
    %v177 = vsel %vm172, %v163, 0
    %v179 = vsel %vm172, %v169, 0
    %v181 = vsel %vm172, %v171, 0
    %183 = vmatprep.subr.mxu0 0.0
    %184 = vmatpush1.xpose.msra.mxu0 0.0
    %185 = vmatprep.subr.mxu0 0.0
    %186 = vmatpush1.xpose.msra.mxu0 0.0
    %187 = vmatprep.subr.mxu0 0.0
    %188 = vmatpush1.xpose.msra.mxu0 0.0
    %189 = vmatprep.subr.mxu0 0.0
    %190 = vmatpush1.xpose.msra.mxu0 0.0
    %191 = vmatprep.subr.mxu0 0.0
    %192 = vmatpush1.xpose.msra.mxu0 0.0
    %193 = vmatprep.subr.mxu0 0.0
    %194 = vmatpush1.xpose.msra.mxu0 0.0
    %195 = vmatprep.subr.mxu0 0.0
    %196 = vmatpush1.xpose.msra.mxu0 0.0
    %197 = vmatprep.subr.mxu0 0.0
    %198 = vmatpush1.xpose.msra.mxu0 0.0
    %199 = vmatprep.subr.mxu0 0.0
    %200 = vmatpush1.xpose.msra.mxu0 0.0
    %201 = vmatprep.subr.mxu0 0.0
    %202 = vmatpush1.xpose.msra.mxu0 0.0
    %203 = vmatprep.subr.mxu0 0.0
    %204 = vmatpush1.xpose.msra.mxu0 0.0
    %205 = vmatprep.subr.mxu0 0.0
    %206 = vmatpush1.xpose.msra.mxu0 0.0
    %207 = vmatprep.subr.mxu0 0.0
    %208 = vmatpush1.xpose.msra.mxu0 0.0
    %209 = vmatprep.subr.mxu0 0.0
    %210 = vmatpush1.xpose.msra.mxu0 0.0
    %211 = vmatprep.subr.mxu0 0.0
    %212 = vmatpush1.xpose.msra.mxu0 %v181
    %213 = vmatprep.subr.mxu0 0.0
    %214 = vmatpush1.xpose.msra.mxu0 %v179
    %215 = vmatprep.subr.mxu0 0.0
    %216 = vmatpush2.xpose.msra.mxu0 0.0
    %217 = vmatprep.subr.mxu0 0.0
    %218 = vmatpush2.xpose.msra.mxu0 0.0
    %219 = vmatprep.subr.mxu0 0.0
    %220 = vmatpush2.xpose.msra.mxu0 0.0
    %221 = vmatprep.subr.mxu0 0.0
    %222 = vmatpush2.xpose.msra.mxu0 0.0
    %223 = vmatprep.subr.mxu0 0.0
    %224 = vmatpush2.xpose.msra.mxu0 0.0
    %225 = vmatprep.subr.mxu0 0.0
    %226 = vmatpush2.xpose.msra.mxu0 0.0
    %227 = vmatprep.subr.mxu0 0.0
    %228 = vmatpush2.xpose.msra.mxu0 0.0
    %229 = vmatprep.subr.mxu0 0.0
    %230 = vmatpush2.xpose.msra.mxu0 0.0
    %231 = vmatprep.subr.mxu0 0.0
    %232 = vmatpush2.xpose.msra.mxu0 0.0
    %233 = vmatprep.subr.mxu0 0.0
    %234 = vmatpush2.xpose.msra.mxu0 0.0
    %235 = vmatprep.subr.mxu0 0.0
    %236 = vmatpush2.xpose.msra.mxu0 0.0
    %237 = vmatprep.subr.mxu0 0.0
    %238 = vmatpush2.xpose.msra.mxu0 0.0
    %239 = vmatprep.subr.mxu0 0.0
    %240 = vmatpush2.xpose.msra.mxu0 0.0
    %241 = vmatprep.subr.mxu0 0.0
    %242 = vmatpush2.xpose.msra.mxu0 0.0
    %243 = vmatprep.subr.mxu0 0.0
    %244 = vmatpush2.xpose.msra.mxu0 0.0
    %245 = vmatprep.subr.mxu0 0.0
    %246 = vmatpush2.xpose.msra.mxu0 0.0
    %247 = vmatprep.mubr.f32.mxu0 0.0
    %248 = vmatmul.mubr.f32.gmra.mxu0 %v174
    %v249 = vpop.f32.mrf.mxu0
    %v250 = vadd.f32 0.0, %v249
    %v251 = vpop.f32.mrf.mxu0
    %252 = vmatprep.mubr.f32.mxu0 0.0
    %253 = vmatmul.mubr.f32.gmra.mxu0 %v177
    %v254 = vpop.f32.mrf.mxu0
    %v255 = vadd.f32 0.0, %v254
    %v256 = vpop.f32.mrf.mxu0
    %257 = vdwg.mxu0
    %260 = vrot.lane.b32.xlu0 %v154, 96
    %v261 = vpop.permute.xlu0 %260
    %262 = vrot.lane.b32.xlu0 %v159, 96
    %v263 = vpop.permute.xlu0 %262
    %v265 = vsel %vm172, %v164, 0
    %v268 = vsel %vm172, %v165, 0
    %v270 = vsel %vm172, %v261, 0
    %v272 = vsel %vm172, %v263, 0
    %274 = vmatprep.subr.mxu0 0.0
    %275 = vmatpush1.xpose.msra.mxu0 0.0
    %276 = vmatprep.subr.mxu0 0.0
    %277 = vmatpush1.xpose.msra.mxu0 0.0
    %278 = vmatprep.subr.mxu0 0.0
    %279 = vmatpush1.xpose.msra.mxu0 0.0
    %280 = vmatprep.subr.mxu0 0.0
    %281 = vmatpush1.xpose.msra.mxu0 0.0
    %282 = vmatprep.subr.mxu0 0.0
    %283 = vmatpush1.xpose.msra.mxu0 0.0
    %284 = vmatprep.subr.mxu0 0.0
    %285 = vmatpush1.xpose.msra.mxu0 0.0
    %286 = vmatprep.subr.mxu0 0.0
    %287 = vmatpush1.xpose.msra.mxu0 0.0
    %288 = vmatprep.subr.mxu0 0.0
    %289 = vmatpush1.xpose.msra.mxu0 0.0
    %290 = vmatprep.subr.mxu0 0.0
    %291 = vmatpush1.xpose.msra.mxu0 0.0
    %292 = vmatprep.subr.mxu0 0.0
    %293 = vmatpush1.xpose.msra.mxu0 0.0
    %294 = vmatprep.subr.mxu0 0.0
    %295 = vmatpush1.xpose.msra.mxu0 0.0
    %296 = vmatprep.subr.mxu0 0.0
    %297 = vmatpush1.xpose.msra.mxu0 0.0
    %298 = vmatprep.subr.mxu0 0.0
    %299 = vmatpush1.xpose.msra.mxu0 0.0
    %300 = vmatprep.subr.mxu0 0.0
    %301 = vmatpush1.xpose.msra.mxu0 0.0
    %302 = vmatprep.subr.mxu0 0.0
    %303 = vmatpush1.xpose.msra.mxu0 %v272
    %304 = vmatprep.subr.mxu0 0.0
    %305 = vmatpush1.xpose.msra.mxu0 %v270
    %306 = vmatprep.subr.mxu0 0.0
    %307 = vmatpush2.xpose.msra.mxu0 0.0
    %308 = vmatprep.subr.mxu0 0.0
    %309 = vmatpush2.xpose.msra.mxu0 0.0
    %310 = vmatprep.subr.mxu0 0.0
    %311 = vmatpush2.xpose.msra.mxu0 0.0
    %312 = vmatprep.subr.mxu0 0.0
    %313 = vmatpush2.xpose.msra.mxu0 0.0
    %314 = vmatprep.subr.mxu0 0.0
    %315 = vmatpush2.xpose.msra.mxu0 0.0
    %316 = vmatprep.subr.mxu0 0.0
    %317 = vmatpush2.xpose.msra.mxu0 0.0
    %318 = vmatprep.subr.mxu0 0.0
    %319 = vmatpush2.xpose.msra.mxu0 0.0
    %320 = vmatprep.subr.mxu0 0.0
    %321 = vmatpush2.xpose.msra.mxu0 0.0
    %322 = vmatprep.subr.mxu0 0.0
    %323 = vmatpush2.xpose.msra.mxu0 0.0
    %324 = vmatprep.subr.mxu0 0.0
    %325 = vmatpush2.xpose.msra.mxu0 0.0
    %326 = vmatprep.subr.mxu0 0.0
    %327 = vmatpush2.xpose.msra.mxu0 0.0
    %328 = vmatprep.subr.mxu0 0.0
    %329 = vmatpush2.xpose.msra.mxu0 0.0
    %330 = vmatprep.subr.mxu0 0.0
    %331 = vmatpush2.xpose.msra.mxu0 0.0
    %332 = vmatprep.subr.mxu0 0.0
    %333 = vmatpush2.xpose.msra.mxu0 0.0
    %334 = vmatprep.subr.mxu0 0.0
    %335 = vmatpush2.xpose.msra.mxu0 0.0
    %336 = vmatprep.subr.mxu0 0.0
    %337 = vmatpush2.xpose.msra.mxu0 0.0
    %338 = vmatprep.mubr.f32.mxu0 0.0
    %339 = vmatmul.mubr.f32.gmra.mxu0 %v265
    %v340 = vpop.f32.mrf.mxu0
    %v341 = vadd.f32 0.0, %v340
    %v342 = vpop.f32.mrf.mxu0
    %343 = vmatprep.mubr.f32.mxu0 0.0
    %344 = vmatmul.mubr.f32.gmra.mxu0 %v268
    %v345 = vpop.f32.mrf.mxu0
    %v346 = vadd.f32 0.0, %v345
    %v347 = vpop.f32.mrf.mxu0
    %348 = vdwg.mxu0
    %vm349 = vcmask 130048
    %v350 = vsel %vm349, %v250, -inf
    %351 = vmax.xlane.f32.xlu0 %v350
    %v352 = vpop.xlane.xlu0 %351
    %v353 = vsel %vm349, %v255, -inf
    %354 = vmax.xlane.f32.xlu0 %v353
    %v355 = vpop.xlane.xlu0 %354
    %v356 = vsel %vm349, %v341, -inf
    %357 = vmax.xlane.f32.xlu0 %v356
    %v358 = vpop.xlane.xlu0 %357
    %v359 = vsel %vm349, %v346, -inf
    %360 = vmax.xlane.f32.xlu0 %v359
    %v361 = vpop.xlane.xlu0 %360
    %v362 = vsub.f32 %v250, %v352
    %v363 = vsub.f32 %v255, %v355
    %v364 = vsub.f32 %v341, %v358
    %v365 = vsub.f32 %v346, %v361
    %v366 = vmul.f32 %v362, 1.442695
    %v367 = vpow.pop %v366
    %v368 = vmul.f32 %v363, 1.442695
    %v369 = vpow.pop %v368
    %v370 = vmul.f32 %v364, 1.442695
    %v371 = vpow.pop %v370
    %v372 = vmul.f32 %v365, 1.442695
    %v373 = vpow.pop %v372
    %v374 = vsel %vm349, %v367, 0.0
    %375 = vadd.xlane.f32.xlu0 %v374
    %v376 = vpop.xlane.xlu0 %375
    %v377 = vsel %vm349, %v369, 0.0
    %378 = vadd.xlane.f32.xlu0 %v377
    %v379 = vpop.xlane.xlu0 %378
    %v380 = vsel %vm349, %v371, 0.0
    %381 = vadd.xlane.f32.xlu0 %v380
    %v382 = vpop.xlane.xlu0 %381
    %v383 = vsel %vm349, %v373, 0.0
    %384 = vadd.xlane.f32.xlu0 %v383
    %v385 = vpop.xlane.xlu0 %384
    %v386 = vrcp.pop %v376
    %v387 = vrcp.pop %v379
    %v388 = vrcp.pop %v382
    %v389 = vrcp.pop %v385
    %v390 = vmul.f32 %v367, %v386
    %v391 = vmul.f32 %v369, %v387
    %v392 = vmul.f32 %v371, %v388
    %v393 = vmul.f32 %v373, %v389
    %394 = vrot.lane.b32.xlu0 %v144, 64
    %v395 = vpop.permute.xlu0 %394
    %396 = vrot.lane.b32.xlu0 %v149, 64
    %v397 = vpop.permute.xlu0 %396
    %v401 = vsel %vm349, %v390, 0
    %v404 = vsel %vm349, %v391, 0
    %406 = vmatprep.subr.mxu0 0.0
    %407 = vmatpush1.msra.mxu0 0.0
    %408 = vmatprep.subr.mxu0 0.0
    %409 = vmatpush1.msra.mxu0 0.0
    %410 = vmatprep.subr.mxu0 0.0
    %411 = vmatpush1.msra.mxu0 0.0
    %412 = vmatprep.subr.mxu0 0.0
    %413 = vmatpush1.msra.mxu0 0.0
    %414 = vmatprep.subr.mxu0 0.0
    %415 = vmatpush1.msra.mxu0 0.0
    %416 = vmatprep.subr.mxu0 0.0
    %417 = vmatpush1.msra.mxu0 0.0
    %418 = vmatprep.subr.mxu0 0.0
    %419 = vmatpush1.msra.mxu0 0.0
    %420 = vmatprep.subr.mxu0 0.0
    %421 = vmatpush1.msra.mxu0 0.0
    %422 = vmatprep.subr.mxu0 0.0
    %423 = vmatpush1.msra.mxu0 0.0
    %424 = vmatprep.subr.mxu0 0.0
    %425 = vmatpush1.msra.mxu0 0.0
    %426 = vmatprep.subr.mxu0 0.0
    %427 = vmatpush1.msra.mxu0 0.0
    %428 = vmatprep.subr.mxu0 0.0
    %429 = vmatpush1.msra.mxu0 0.0
    %430 = vmatprep.subr.mxu0 0.0
    %431 = vmatpush1.msra.mxu0 0.0
    %432 = vmatprep.subr.mxu0 0.0
    %433 = vmatpush1.msra.mxu0 0.0
    %434 = vmatprep.subr.mxu0 0.0
    %435 = vmatpush1.msra.mxu0 %v397
    %436 = vmatprep.subr.mxu0 0.0
    %437 = vmatpush1.msra.mxu0 %v395
    %438 = vmatprep.subr.mxu0 0.0
    %439 = vmatpush2.msra.mxu0 0.0
    %440 = vmatprep.subr.mxu0 0.0
    %441 = vmatpush2.msra.mxu0 0.0
    %442 = vmatprep.subr.mxu0 0.0
    %443 = vmatpush2.msra.mxu0 0.0
    %444 = vmatprep.subr.mxu0 0.0
    %445 = vmatpush2.msra.mxu0 0.0
    %446 = vmatprep.subr.mxu0 0.0
    %447 = vmatpush2.msra.mxu0 0.0
    %448 = vmatprep.subr.mxu0 0.0
    %449 = vmatpush2.msra.mxu0 0.0
    %450 = vmatprep.subr.mxu0 0.0
    %451 = vmatpush2.msra.mxu0 0.0
    %452 = vmatprep.subr.mxu0 0.0
    %453 = vmatpush2.msra.mxu0 0.0
    %454 = vmatprep.subr.mxu0 0.0
    %455 = vmatpush2.msra.mxu0 0.0
    %456 = vmatprep.subr.mxu0 0.0
    %457 = vmatpush2.msra.mxu0 0.0
    %458 = vmatprep.subr.mxu0 0.0
    %459 = vmatpush2.msra.mxu0 0.0
    %460 = vmatprep.subr.mxu0 0.0
    %461 = vmatpush2.msra.mxu0 0.0
    %462 = vmatprep.subr.mxu0 0.0
    %463 = vmatpush2.msra.mxu0 0.0
    %464 = vmatprep.subr.mxu0 0.0
    %465 = vmatpush2.msra.mxu0 0.0
    %466 = vmatprep.subr.mxu0 0.0
    %467 = vmatpush2.msra.mxu0 0.0
    %468 = vmatprep.subr.mxu0 0.0
    %469 = vmatpush2.msra.mxu0 0.0
    %470 = vmatprep.mubr.f32.mxu0 0.0
    %471 = vmatmul.mubr.f32.gmra.mxu0 %v401
    %v472 = vpop.f32.mrf.mxu0
    %v473 = vadd.f32 0.0, %v472
    %v474 = vpop.f32.mrf.mxu0
    %475 = vmatprep.mubr.f32.mxu0 0.0
    %476 = vmatmul.mubr.f32.gmra.mxu0 %v404
    %v477 = vpop.f32.mrf.mxu0
    %v478 = vadd.f32 0.0, %v477
    %v479 = vpop.f32.mrf.mxu0
    %480 = vdwg.mxu0
    %481 = vrot.lane.b32.xlu0 %v154, 64
    %v482 = vpop.permute.xlu0 %481
    %483 = vrot.lane.b32.xlu0 %v159, 64
    %v484 = vpop.permute.xlu0 %483
    %v488 = vsel %vm349, %v392, 0
    %v491 = vsel %vm349, %v393, 0
    %493 = vmatprep.subr.mxu0 0.0
    %494 = vmatpush1.msra.mxu0 0.0
    %495 = vmatprep.subr.mxu0 0.0
    %496 = vmatpush1.msra.mxu0 0.0
    %497 = vmatprep.subr.mxu0 0.0
    %498 = vmatpush1.msra.mxu0 0.0
    %499 = vmatprep.subr.mxu0 0.0
    %500 = vmatpush1.msra.mxu0 0.0
    %501 = vmatprep.subr.mxu0 0.0
    %502 = vmatpush1.msra.mxu0 0.0
    %503 = vmatprep.subr.mxu0 0.0
    %504 = vmatpush1.msra.mxu0 0.0
    %505 = vmatprep.subr.mxu0 0.0
    %506 = vmatpush1.msra.mxu0 0.0
    %507 = vmatprep.subr.mxu0 0.0
    %508 = vmatpush1.msra.mxu0 0.0
    %509 = vmatprep.subr.mxu0 0.0
    %510 = vmatpush1.msra.mxu0 0.0
    %511 = vmatprep.subr.mxu0 0.0
    %512 = vmatpush1.msra.mxu0 0.0
    %513 = vmatprep.subr.mxu0 0.0
    %514 = vmatpush1.msra.mxu0 0.0
    %515 = vmatprep.subr.mxu0 0.0
    %516 = vmatpush1.msra.mxu0 0.0
    %517 = vmatprep.subr.mxu0 0.0
    %518 = vmatpush1.msra.mxu0 0.0
    %519 = vmatprep.subr.mxu0 0.0
    %520 = vmatpush1.msra.mxu0 0.0
    %521 = vmatprep.subr.mxu0 0.0
    %522 = vmatpush1.msra.mxu0 %v484
    %523 = vmatprep.subr.mxu0 0.0
    %524 = vmatpush1.msra.mxu0 %v482
    %525 = vmatprep.subr.mxu0 0.0
    %526 = vmatpush2.msra.mxu0 0.0
    %527 = vmatprep.subr.mxu0 0.0
    %528 = vmatpush2.msra.mxu0 0.0
    %529 = vmatprep.subr.mxu0 0.0
    %530 = vmatpush2.msra.mxu0 0.0
    %531 = vmatprep.subr.mxu0 0.0
    %532 = vmatpush2.msra.mxu0 0.0
    %533 = vmatprep.subr.mxu0 0.0
    %534 = vmatpush2.msra.mxu0 0.0
    %535 = vmatprep.subr.mxu0 0.0
    %536 = vmatpush2.msra.mxu0 0.0
    %537 = vmatprep.subr.mxu0 0.0
    %538 = vmatpush2.msra.mxu0 0.0
    %539 = vmatprep.subr.mxu0 0.0
    %540 = vmatpush2.msra.mxu0 0.0
    %541 = vmatprep.subr.mxu0 0.0
    %542 = vmatpush2.msra.mxu0 0.0
    %543 = vmatprep.subr.mxu0 0.0
    %544 = vmatpush2.msra.mxu0 0.0
    %545 = vmatprep.subr.mxu0 0.0
    %546 = vmatpush2.msra.mxu0 0.0
    %547 = vmatprep.subr.mxu0 0.0
    %548 = vmatpush2.msra.mxu0 0.0
    %549 = vmatprep.subr.mxu0 0.0
    %550 = vmatpush2.msra.mxu0 0.0
    %551 = vmatprep.subr.mxu0 0.0
    %552 = vmatpush2.msra.mxu0 0.0
    %553 = vmatprep.subr.mxu0 0.0
    %554 = vmatpush2.msra.mxu0 0.0
    %555 = vmatprep.subr.mxu0 0.0
    %556 = vmatpush2.msra.mxu0 0.0
    %557 = vmatprep.mubr.f32.mxu0 0.0
    %558 = vmatmul.mubr.f32.gmra.mxu0 %v488
    %v559 = vpop.f32.mrf.mxu0
    %v560 = vadd.f32 0.0, %v559
    %v561 = vpop.f32.mrf.mxu0
    %562 = vmatprep.mubr.f32.mxu0 0.0
    %563 = vmatmul.mubr.f32.gmra.mxu0 %v491
    %v564 = vpop.f32.mrf.mxu0
    %v565 = vadd.f32 0.0, %v564
    %v566 = vpop.f32.mrf.mxu0
    %567 = vdwg.mxu0
    %568 = vrot.lane.b32.xlu0 %v162, 120
    %v569 = vpop.permute.xlu0 %568
    %570 = vrot.lane.b32.xlu0 %v163, 120
    %v571 = vpop.permute.xlu0 %570
    %572 = vrot.lane.b32.xlu0 %v144, 88
    %v573 = vpop.permute.xlu0 %572
    %574 = vrot.lane.b32.xlu0 %v149, 88
    %v575 = vpop.permute.xlu0 %574
    %v576 = vsel %vm172, %v569, 0
    %v578 = vsel %vm172, %v571, 0
    %v580 = vsel %vm172, %v573, 0
    %v582 = vsel %vm172, %v575, 0
    %584 = vmatprep.subr.mxu0 0.0
    %585 = vmatpush1.xpose.msra.mxu0 0.0
    %586 = vmatprep.subr.mxu0 0.0
    %587 = vmatpush1.xpose.msra.mxu0 0.0
    %588 = vmatprep.subr.mxu0 0.0
    %589 = vmatpush1.xpose.msra.mxu0 0.0
    %590 = vmatprep.subr.mxu0 0.0
    %591 = vmatpush1.xpose.msra.mxu0 0.0
    %592 = vmatprep.subr.mxu0 0.0
    %593 = vmatpush1.xpose.msra.mxu0 0.0
    %594 = vmatprep.subr.mxu0 0.0
    %595 = vmatpush1.xpose.msra.mxu0 0.0
    %596 = vmatprep.subr.mxu0 0.0
    %597 = vmatpush1.xpose.msra.mxu0 0.0
    %598 = vmatprep.subr.mxu0 0.0
    %599 = vmatpush1.xpose.msra.mxu0 0.0
    %600 = vmatprep.subr.mxu0 0.0
    %601 = vmatpush1.xpose.msra.mxu0 0.0
    %602 = vmatprep.subr.mxu0 0.0
    %603 = vmatpush1.xpose.msra.mxu0 0.0
    %604 = vmatprep.subr.mxu0 0.0
    %605 = vmatpush1.xpose.msra.mxu0 0.0
    %606 = vmatprep.subr.mxu0 0.0
    %607 = vmatpush1.xpose.msra.mxu0 0.0
    %608 = vmatprep.subr.mxu0 0.0
    %609 = vmatpush1.xpose.msra.mxu0 0.0
    %610 = vmatprep.subr.mxu0 0.0
    %611 = vmatpush1.xpose.msra.mxu0 0.0
    %612 = vmatprep.subr.mxu0 0.0
    %613 = vmatpush1.xpose.msra.mxu0 %v582
    %614 = vmatprep.subr.mxu0 0.0
    %615 = vmatpush1.xpose.msra.mxu0 %v580
    %616 = vmatprep.subr.mxu0 0.0
    %617 = vmatpush2.xpose.msra.mxu0 0.0
    %618 = vmatprep.subr.mxu0 0.0
    %619 = vmatpush2.xpose.msra.mxu0 0.0
    %620 = vmatprep.subr.mxu0 0.0
    %621 = vmatpush2.xpose.msra.mxu0 0.0
    %622 = vmatprep.subr.mxu0 0.0
    %623 = vmatpush2.xpose.msra.mxu0 0.0
    %624 = vmatprep.subr.mxu0 0.0
    %625 = vmatpush2.xpose.msra.mxu0 0.0
    %626 = vmatprep.subr.mxu0 0.0
    %627 = vmatpush2.xpose.msra.mxu0 0.0
    %628 = vmatprep.subr.mxu0 0.0
    %629 = vmatpush2.xpose.msra.mxu0 0.0
    %630 = vmatprep.subr.mxu0 0.0
    %631 = vmatpush2.xpose.msra.mxu0 0.0
    %632 = vmatprep.subr.mxu0 0.0
    %633 = vmatpush2.xpose.msra.mxu0 0.0
    %634 = vmatprep.subr.mxu0 0.0
    %635 = vmatpush2.xpose.msra.mxu0 0.0
    %636 = vmatprep.subr.mxu0 0.0
    %637 = vmatpush2.xpose.msra.mxu0 0.0
    %638 = vmatprep.subr.mxu0 0.0
    %639 = vmatpush2.xpose.msra.mxu0 0.0
    %640 = vmatprep.subr.mxu0 0.0
    %641 = vmatpush2.xpose.msra.mxu0 0.0
    %642 = vmatprep.subr.mxu0 0.0
    %643 = vmatpush2.xpose.msra.mxu0 0.0
    %644 = vmatprep.subr.mxu0 0.0
    %645 = vmatpush2.xpose.msra.mxu0 0.0
    %646 = vmatprep.subr.mxu0 0.0
    %647 = vmatpush2.xpose.msra.mxu0 0.0
    %648 = vmatprep.mubr.f32.mxu0 0.0
    %649 = vmatmul.mubr.f32.gmra.mxu0 %v576
    %v650 = vpop.f32.mrf.mxu0
    %v651 = vadd.f32 0.0, %v650
    %v652 = vpop.f32.mrf.mxu0
    %653 = vmatprep.mubr.f32.mxu0 0.0
    %654 = vmatmul.mubr.f32.gmra.mxu0 %v578
    %v655 = vpop.f32.mrf.mxu0
    %v656 = vadd.f32 0.0, %v655
    %v657 = vpop.f32.mrf.mxu0
    %658 = vdwg.mxu0
    %659 = vrot.lane.b32.xlu0 %v164, 120
    %v660 = vpop.permute.xlu0 %659
    %661 = vrot.lane.b32.xlu0 %v165, 120
    %v662 = vpop.permute.xlu0 %661
    %663 = vrot.lane.b32.xlu0 %v154, 88
    %v664 = vpop.permute.xlu0 %663
    %665 = vrot.lane.b32.xlu0 %v159, 88
    %v666 = vpop.permute.xlu0 %665
    %v667 = vsel %vm172, %v660, 0
    %v669 = vsel %vm172, %v662, 0
    %v671 = vsel %vm172, %v664, 0
    %v673 = vsel %vm172, %v666, 0
    %675 = vmatprep.subr.mxu0 0.0
    %676 = vmatpush1.xpose.msra.mxu0 0.0
    %677 = vmatprep.subr.mxu0 0.0
    %678 = vmatpush1.xpose.msra.mxu0 0.0
    %679 = vmatprep.subr.mxu0 0.0
    %680 = vmatpush1.xpose.msra.mxu0 0.0
    %681 = vmatprep.subr.mxu0 0.0
    %682 = vmatpush1.xpose.msra.mxu0 0.0
    %683 = vmatprep.subr.mxu0 0.0
    %684 = vmatpush1.xpose.msra.mxu0 0.0
    %685 = vmatprep.subr.mxu0 0.0
    %686 = vmatpush1.xpose.msra.mxu0 0.0
    %687 = vmatprep.subr.mxu0 0.0
    %688 = vmatpush1.xpose.msra.mxu0 0.0
    %689 = vmatprep.subr.mxu0 0.0
    %690 = vmatpush1.xpose.msra.mxu0 0.0
    %691 = vmatprep.subr.mxu0 0.0
    %692 = vmatpush1.xpose.msra.mxu0 0.0
    %693 = vmatprep.subr.mxu0 0.0
    %694 = vmatpush1.xpose.msra.mxu0 0.0
    %695 = vmatprep.subr.mxu0 0.0
    %696 = vmatpush1.xpose.msra.mxu0 0.0
    %697 = vmatprep.subr.mxu0 0.0
    %698 = vmatpush1.xpose.msra.mxu0 0.0
    %699 = vmatprep.subr.mxu0 0.0
    %700 = vmatpush1.xpose.msra.mxu0 0.0
    %701 = vmatprep.subr.mxu0 0.0
    %702 = vmatpush1.xpose.msra.mxu0 0.0
    %703 = vmatprep.subr.mxu0 0.0
    %704 = vmatpush1.xpose.msra.mxu0 %v673
    %705 = vmatprep.subr.mxu0 0.0
    %706 = vmatpush1.xpose.msra.mxu0 %v671
    %707 = vmatprep.subr.mxu0 0.0
    %708 = vmatpush2.xpose.msra.mxu0 0.0
    %709 = vmatprep.subr.mxu0 0.0
    %710 = vmatpush2.xpose.msra.mxu0 0.0
    %711 = vmatprep.subr.mxu0 0.0
    %712 = vmatpush2.xpose.msra.mxu0 0.0
    %713 = vmatprep.subr.mxu0 0.0
    %714 = vmatpush2.xpose.msra.mxu0 0.0
    %715 = vmatprep.subr.mxu0 0.0
    %716 = vmatpush2.xpose.msra.mxu0 0.0
    %717 = vmatprep.subr.mxu0 0.0
    %718 = vmatpush2.xpose.msra.mxu0 0.0
    %719 = vmatprep.subr.mxu0 0.0
    %720 = vmatpush2.xpose.msra.mxu0 0.0
    %721 = vmatprep.subr.mxu0 0.0
    %722 = vmatpush2.xpose.msra.mxu0 0.0
    %723 = vmatprep.subr.mxu0 0.0
    %724 = vmatpush2.xpose.msra.mxu0 0.0
    %725 = vmatprep.subr.mxu0 0.0
    %726 = vmatpush2.xpose.msra.mxu0 0.0
    %727 = vmatprep.subr.mxu0 0.0
    %728 = vmatpush2.xpose.msra.mxu0 0.0
    %729 = vmatprep.subr.mxu0 0.0
    %730 = vmatpush2.xpose.msra.mxu0 0.0
    %731 = vmatprep.subr.mxu0 0.0
    %732 = vmatpush2.xpose.msra.mxu0 0.0
    %733 = vmatprep.subr.mxu0 0.0
    %734 = vmatpush2.xpose.msra.mxu0 0.0
    %735 = vmatprep.subr.mxu0 0.0
    %736 = vmatpush2.xpose.msra.mxu0 0.0
    %737 = vmatprep.subr.mxu0 0.0
    %738 = vmatpush2.xpose.msra.mxu0 0.0
    %739 = vmatprep.mubr.f32.mxu0 0.0
    %740 = vmatmul.mubr.f32.gmra.mxu0 %v667
    %v741 = vpop.f32.mrf.mxu0
    %v742 = vadd.f32 0.0, %v741
    %v743 = vpop.f32.mrf.mxu0
    %744 = vmatprep.mubr.f32.mxu0 0.0
    %745 = vmatmul.mubr.f32.gmra.mxu0 %v669
    %v746 = vpop.f32.mrf.mxu0
    %v747 = vadd.f32 0.0, %v746
    %v748 = vpop.f32.mrf.mxu0
    %749 = vdwg.mxu0
    %v750 = vsel %vm349, %v651, -inf
    %751 = vmax.xlane.f32.xlu0 %v750
    %v752 = vpop.xlane.xlu0 %751
    %v753 = vsel %vm349, %v656, -inf
    %754 = vmax.xlane.f32.xlu0 %v753
    %v755 = vpop.xlane.xlu0 %754
    %v756 = vsel %vm349, %v742, -inf
    %757 = vmax.xlane.f32.xlu0 %v756
    %v758 = vpop.xlane.xlu0 %757
    %v759 = vsel %vm349, %v747, -inf
    %760 = vmax.xlane.f32.xlu0 %v759
    %v761 = vpop.xlane.xlu0 %760
    %v762 = vsub.f32 %v651, %v752
    %v763 = vsub.f32 %v656, %v755
    %v764 = vsub.f32 %v742, %v758
    %v765 = vsub.f32 %v747, %v761
    %v766 = vmul.f32 %v762, 1.442695
    %v767 = vpow.pop %v766
    %v768 = vmul.f32 %v763, 1.442695
    %v769 = vpow.pop %v768
    %v770 = vmul.f32 %v764, 1.442695
    %v771 = vpow.pop %v770
    %v772 = vmul.f32 %v765, 1.442695
    %v773 = vpow.pop %v772
    %v774 = vsel %vm349, %v767, 0.0
    %775 = vadd.xlane.f32.xlu0 %v774
    %v776 = vpop.xlane.xlu0 %775
    %v777 = vsel %vm349, %v769, 0.0
    %778 = vadd.xlane.f32.xlu0 %v777
    %v779 = vpop.xlane.xlu0 %778
    %v780 = vsel %vm349, %v771, 0.0
    %781 = vadd.xlane.f32.xlu0 %v780
    %v782 = vpop.xlane.xlu0 %781
    %v783 = vsel %vm349, %v773, 0.0
    %784 = vadd.xlane.f32.xlu0 %v783
    %v785 = vpop.xlane.xlu0 %784
    %v786 = vrcp.pop %v776
    %v787 = vrcp.pop %v779
    %v788 = vrcp.pop %v782
    %v789 = vrcp.pop %v785
    %v790 = vmul.f32 %v767, %v786
    %v791 = vmul.f32 %v769, %v787
    %v792 = vmul.f32 %v771, %v788
    %v793 = vmul.f32 %v773, %v789
    %794 = vrot.lane.b32.xlu0 %v144, 56
    %v795 = vpop.permute.xlu0 %794
    %796 = vrot.lane.b32.xlu0 %v149, 56
    %v797 = vpop.permute.xlu0 %796
    %v801 = vsel %vm349, %v790, 0
    %v804 = vsel %vm349, %v791, 0
    %806 = vmatprep.subr.mxu0 0.0
    %807 = vmatpush1.msra.mxu0 0.0
    %808 = vmatprep.subr.mxu0 0.0
    %809 = vmatpush1.msra.mxu0 0.0
    %810 = vmatprep.subr.mxu0 0.0
    %811 = vmatpush1.msra.mxu0 0.0
    %812 = vmatprep.subr.mxu0 0.0
    %813 = vmatpush1.msra.mxu0 0.0
    %814 = vmatprep.subr.mxu0 0.0
    %815 = vmatpush1.msra.mxu0 0.0
    %816 = vmatprep.subr.mxu0 0.0
    %817 = vmatpush1.msra.mxu0 0.0
    %818 = vmatprep.subr.mxu0 0.0
    %819 = vmatpush1.msra.mxu0 0.0
    %820 = vmatprep.subr.mxu0 0.0
    %821 = vmatpush1.msra.mxu0 0.0
    %822 = vmatprep.subr.mxu0 0.0
    %823 = vmatpush1.msra.mxu0 0.0
    %824 = vmatprep.subr.mxu0 0.0
    %825 = vmatpush1.msra.mxu0 0.0
    %826 = vmatprep.subr.mxu0 0.0
    %827 = vmatpush1.msra.mxu0 0.0
    %828 = vmatprep.subr.mxu0 0.0
    %829 = vmatpush1.msra.mxu0 0.0
    %830 = vmatprep.subr.mxu0 0.0
    %831 = vmatpush1.msra.mxu0 0.0
    %832 = vmatprep.subr.mxu0 0.0
    %833 = vmatpush1.msra.mxu0 0.0
    %834 = vmatprep.subr.mxu0 0.0
    %835 = vmatpush1.msra.mxu0 %v797
    %836 = vmatprep.subr.mxu0 0.0
    %837 = vmatpush1.msra.mxu0 %v795
    %838 = vmatprep.subr.mxu0 0.0
    %839 = vmatpush2.msra.mxu0 0.0
    %840 = vmatprep.subr.mxu0 0.0
    %841 = vmatpush2.msra.mxu0 0.0
    %842 = vmatprep.subr.mxu0 0.0
    %843 = vmatpush2.msra.mxu0 0.0
    %844 = vmatprep.subr.mxu0 0.0
    %845 = vmatpush2.msra.mxu0 0.0
    %846 = vmatprep.subr.mxu0 0.0
    %847 = vmatpush2.msra.mxu0 0.0
    %848 = vmatprep.subr.mxu0 0.0
    %849 = vmatpush2.msra.mxu0 0.0
    %850 = vmatprep.subr.mxu0 0.0
    %851 = vmatpush2.msra.mxu0 0.0
    %852 = vmatprep.subr.mxu0 0.0
    %853 = vmatpush2.msra.mxu0 0.0
    %854 = vmatprep.subr.mxu0 0.0
    %855 = vmatpush2.msra.mxu0 0.0
    %856 = vmatprep.subr.mxu0 0.0
    %857 = vmatpush2.msra.mxu0 0.0
    %858 = vmatprep.subr.mxu0 0.0
    %859 = vmatpush2.msra.mxu0 0.0
    %860 = vmatprep.subr.mxu0 0.0
    %861 = vmatpush2.msra.mxu0 0.0
    %862 = vmatprep.subr.mxu0 0.0
    %863 = vmatpush2.msra.mxu0 0.0
    %864 = vmatprep.subr.mxu0 0.0
    %865 = vmatpush2.msra.mxu0 0.0
    %866 = vmatprep.subr.mxu0 0.0
    %867 = vmatpush2.msra.mxu0 0.0
    %868 = vmatprep.subr.mxu0 0.0
    %869 = vmatpush2.msra.mxu0 0.0
    %870 = vmatprep.mubr.f32.mxu0 0.0
    %871 = vmatmul.mubr.f32.gmra.mxu0 %v801
    %v872 = vpop.f32.mrf.mxu0
    %v873 = vadd.f32 0.0, %v872
    %v874 = vpop.f32.mrf.mxu0
    %875 = vmatprep.mubr.f32.mxu0 0.0
    %876 = vmatmul.mubr.f32.gmra.mxu0 %v804
    %v877 = vpop.f32.mrf.mxu0
    %v878 = vadd.f32 0.0, %v877
    %v879 = vpop.f32.mrf.mxu0
    %880 = vdwg.mxu0
    %881 = vrot.lane.b32.xlu0 %v154, 56
    %v882 = vpop.permute.xlu0 %881
    %883 = vrot.lane.b32.xlu0 %v159, 56
    %v884 = vpop.permute.xlu0 %883
    %v888 = vsel %vm349, %v792, 0
    %v891 = vsel %vm349, %v793, 0
    %893 = vmatprep.subr.mxu0 0.0
    %894 = vmatpush1.msra.mxu0 0.0
    %895 = vmatprep.subr.mxu0 0.0
    %896 = vmatpush1.msra.mxu0 0.0
    %897 = vmatprep.subr.mxu0 0.0
    %898 = vmatpush1.msra.mxu0 0.0
    %899 = vmatprep.subr.mxu0 0.0
    %900 = vmatpush1.msra.mxu0 0.0
    %901 = vmatprep.subr.mxu0 0.0
    %902 = vmatpush1.msra.mxu0 0.0
    %903 = vmatprep.subr.mxu0 0.0
    %904 = vmatpush1.msra.mxu0 0.0
    %905 = vmatprep.subr.mxu0 0.0
    %906 = vmatpush1.msra.mxu0 0.0
    %907 = vmatprep.subr.mxu0 0.0
    %908 = vmatpush1.msra.mxu0 0.0
    %909 = vmatprep.subr.mxu0 0.0
    %910 = vmatpush1.msra.mxu0 0.0
    %911 = vmatprep.subr.mxu0 0.0
    %912 = vmatpush1.msra.mxu0 0.0
    %913 = vmatprep.subr.mxu0 0.0
    %914 = vmatpush1.msra.mxu0 0.0
    %915 = vmatprep.subr.mxu0 0.0
    %916 = vmatpush1.msra.mxu0 0.0
    %917 = vmatprep.subr.mxu0 0.0
    %918 = vmatpush1.msra.mxu0 0.0
    %919 = vmatprep.subr.mxu0 0.0
    %920 = vmatpush1.msra.mxu0 0.0
    %921 = vmatprep.subr.mxu0 0.0
    %922 = vmatpush1.msra.mxu0 %v884
    %923 = vmatprep.subr.mxu0 0.0
    %924 = vmatpush1.msra.mxu0 %v882
    %925 = vmatprep.subr.mxu0 0.0
    %926 = vmatpush2.msra.mxu0 0.0
    %927 = vmatprep.subr.mxu0 0.0
    %928 = vmatpush2.msra.mxu0 0.0
    %929 = vmatprep.subr.mxu0 0.0
    %930 = vmatpush2.msra.mxu0 0.0
    %931 = vmatprep.subr.mxu0 0.0
    %932 = vmatpush2.msra.mxu0 0.0
    %933 = vmatprep.subr.mxu0 0.0
    %934 = vmatpush2.msra.mxu0 0.0
    %935 = vmatprep.subr.mxu0 0.0
    %936 = vmatpush2.msra.mxu0 0.0
    %937 = vmatprep.subr.mxu0 0.0
    %938 = vmatpush2.msra.mxu0 0.0
    %939 = vmatprep.subr.mxu0 0.0
    %940 = vmatpush2.msra.mxu0 0.0
    %941 = vmatprep.subr.mxu0 0.0
    %942 = vmatpush2.msra.mxu0 0.0
    %943 = vmatprep.subr.mxu0 0.0
    %944 = vmatpush2.msra.mxu0 0.0
    %945 = vmatprep.subr.mxu0 0.0
    %946 = vmatpush2.msra.mxu0 0.0
    %947 = vmatprep.subr.mxu0 0.0
    %948 = vmatpush2.msra.mxu0 0.0
    %949 = vmatprep.subr.mxu0 0.0
    %950 = vmatpush2.msra.mxu0 0.0
    %951 = vmatprep.subr.mxu0 0.0
    %952 = vmatpush2.msra.mxu0 0.0
    %953 = vmatprep.subr.mxu0 0.0
    %954 = vmatpush2.msra.mxu0 0.0
    %955 = vmatprep.subr.mxu0 0.0
    %956 = vmatpush2.msra.mxu0 0.0
    %957 = vmatprep.mubr.f32.mxu0 0.0
    %958 = vmatmul.mubr.f32.gmra.mxu0 %v888
    %v959 = vpop.f32.mrf.mxu0
    %v960 = vadd.f32 0.0, %v959
    %v961 = vpop.f32.mrf.mxu0
    %962 = vmatprep.mubr.f32.mxu0 0.0
    %963 = vmatmul.mubr.f32.gmra.mxu0 %v891
    %v964 = vpop.f32.mrf.mxu0
    %v965 = vadd.f32 0.0, %v964
    %v966 = vpop.f32.mrf.mxu0
    %967 = vdwg.mxu0
    %v969 = vsel %vm172, %v873, 0
    %v972 = vsel %vm172, %v878, 0
    %v975 = vsel %vm172, %v960, 0
    %v978 = vsel %vm172, %v965, 0
    %980 = vmatprep.subr.mxu0 0.0
    %981 = vmatpush1.msra.mxu0 0.0
    %982 = vmatprep.subr.mxu0 0.0
    %983 = vmatpush1.msra.mxu0 0.0
    %984 = vmatprep.subr.mxu0 0.0
    %985 = vmatpush1.msra.mxu0 0.0
    %986 = vmatprep.subr.mxu0 0.0
    %987 = vmatpush1.msra.mxu0 0.0
    %988 = vmatprep.subr.mxu0 0.0
    %989 = vmatpush1.msra.mxu0 0.0
    %990 = vmatprep.subr.mxu0 0.0
    %991 = vmatpush1.msra.mxu0 0.0
    %992 = vmatprep.subr.mxu0 0.0
    %993 = vmatpush1.msra.mxu0 0.0
    %994 = vmatprep.subr.mxu0 0.0
    %995 = vmatpush1.msra.mxu0 0.0
    %996 = vmatprep.subr.mxu0 0.0
    %997 = vmatpush1.msra.mxu0 0.0
    %998 = vmatprep.subr.mxu0 0.0
    %999 = vmatpush1.msra.mxu0 0.0
    %1000 = vmatprep.subr.mxu0 0.0
    %1001 = vmatpush1.msra.mxu0 0.0
    %1002 = vmatprep.subr.mxu0 0.0
    %1003 = vmatpush1.msra.mxu0 0.0
    %1004 = vmatprep.subr.mxu0 0.0
    %1005 = vmatpush1.msra.mxu0 0.0
    %1006 = vmatprep.subr.mxu0 0.0
    %1007 = vmatpush1.msra.mxu0 0.0
    %1008 = vmatprep.subr.mxu0 0.0
    %1009 = vmatpush1.msra.mxu0 0.0
    %1010 = vmatprep.subr.mxu0 0.0
    %1011 = vmatpush1.msra.mxu0 %v57
    %1012 = vmatprep.subr.mxu0 0.0
    %1013 = vmatpush2.msra.mxu0 0.0
    %1014 = vmatprep.subr.mxu0 0.0
    %1015 = vmatpush2.msra.mxu0 0.0
    %1016 = vmatprep.subr.mxu0 0.0
    %1017 = vmatpush2.msra.mxu0 0.0
    %1018 = vmatprep.subr.mxu0 0.0
    %1019 = vmatpush2.msra.mxu0 0.0
    %1020 = vmatprep.subr.mxu0 0.0
    %1021 = vmatpush2.msra.mxu0 0.0
    %1022 = vmatprep.subr.mxu0 0.0
    %1023 = vmatpush2.msra.mxu0 0.0
    %1024 = vmatprep.subr.mxu0 0.0
    %1025 = vmatpush2.msra.mxu0 0.0
    %1026 = vmatprep.subr.mxu0 0.0
    %1027 = vmatpush2.msra.mxu0 0.0
    %1028 = vmatprep.subr.mxu0 0.0
    %1029 = vmatpush2.msra.mxu0 0.0
    %1030 = vmatprep.subr.mxu0 0.0
    %1031 = vmatpush2.msra.mxu0 0.0
    %1032 = vmatprep.subr.mxu0 0.0
    %1033 = vmatpush2.msra.mxu0 0.0
    %1034 = vmatprep.subr.mxu0 0.0
    %1035 = vmatpush2.msra.mxu0 0.0
    %1036 = vmatprep.subr.mxu0 0.0
    %1037 = vmatpush2.msra.mxu0 0.0
    %1038 = vmatprep.subr.mxu0 0.0
    %1039 = vmatpush2.msra.mxu0 0.0
    %1040 = vmatprep.subr.mxu0 0.0
    %1041 = vmatpush2.msra.mxu0 0.0
    %1042 = vmatprep.subr.mxu0 0.0
    %1043 = vmatpush2.msra.mxu0 0.0
    %1044 = vmatprep.mubr.f32.mxu0 0.0
    %1045 = vmatmul.mubr.f32.gmra.mxu0 %v969
    %v1046 = vpop.f32.mrf.mxu0
    %v1047 = vadd.f32 0.0, %v1046
    %v1048 = vpop.f32.mrf.mxu0
    %1049 = vmatprep.mubr.f32.mxu0 0.0
    %1050 = vmatmul.mubr.f32.gmra.mxu0 %v972
    %v1051 = vpop.f32.mrf.mxu0
    %v1052 = vadd.f32 0.0, %v1051
    %v1053 = vpop.f32.mrf.mxu0
    %1054 = vmatprep.mubr.f32.mxu0 0.0
    %1055 = vmatmul.mubr.f32.gmra.mxu0 %v975
    %v1056 = vpop.f32.mrf.mxu0
    %v1057 = vadd.f32 0.0, %v1056
    %v1058 = vpop.f32.mrf.mxu0
    %1059 = vmatprep.mubr.f32.mxu0 0.0
    %1060 = vmatmul.mubr.f32.gmra.mxu0 %v978
    %v1061 = vpop.f32.mrf.mxu0
    %v1062 = vadd.f32 0.0, %v1061
    %v1063 = vpop.f32.mrf.mxu0
    %1064 = vdwg.mxu0
    %v1066 = vsel %vm172, %v473, 0
    %v1069 = vsel %vm172, %v478, 0
    %v1072 = vsel %vm172, %v560, 0
    %v1075 = vsel %vm172, %v565, 0
    %1077 = vmatprep.subr.mxu0 0.0
    %1078 = vmatpush1.msra.mxu0 0.0
    %1079 = vmatprep.subr.mxu0 0.0
    %1080 = vmatpush1.msra.mxu0 0.0
    %1081 = vmatprep.subr.mxu0 0.0
    %1082 = vmatpush1.msra.mxu0 0.0
    %1083 = vmatprep.subr.mxu0 0.0
    %1084 = vmatpush1.msra.mxu0 0.0
    %1085 = vmatprep.subr.mxu0 0.0
    %1086 = vmatpush1.msra.mxu0 0.0
    %1087 = vmatprep.subr.mxu0 0.0
    %1088 = vmatpush1.msra.mxu0 0.0
    %1089 = vmatprep.subr.mxu0 0.0
    %1090 = vmatpush1.msra.mxu0 0.0
    %1091 = vmatprep.subr.mxu0 0.0
    %1092 = vmatpush1.msra.mxu0 0.0
    %1093 = vmatprep.subr.mxu0 0.0
    %1094 = vmatpush1.msra.mxu0 0.0
    %1095 = vmatprep.subr.mxu0 0.0
    %1096 = vmatpush1.msra.mxu0 0.0
    %1097 = vmatprep.subr.mxu0 0.0
    %1098 = vmatpush1.msra.mxu0 0.0
    %1099 = vmatprep.subr.mxu0 0.0
    %1100 = vmatpush1.msra.mxu0 0.0
    %1101 = vmatprep.subr.mxu0 0.0
    %1102 = vmatpush1.msra.mxu0 0.0
    %1103 = vmatprep.subr.mxu0 0.0
    %1104 = vmatpush1.msra.mxu0 0.0
    %1105 = vmatprep.subr.mxu0 0.0
    %1106 = vmatpush1.msra.mxu0 0.0
    %1107 = vmatprep.subr.mxu0 0.0
    %1108 = vmatpush1.msra.mxu0 %v56
    %1109 = vmatprep.subr.mxu0 0.0
    %1110 = vmatpush2.msra.mxu0 0.0
    %1111 = vmatprep.subr.mxu0 0.0
    %1112 = vmatpush2.msra.mxu0 0.0
    %1113 = vmatprep.subr.mxu0 0.0
    %1114 = vmatpush2.msra.mxu0 0.0
    %1115 = vmatprep.subr.mxu0 0.0
    %1116 = vmatpush2.msra.mxu0 0.0
    %1117 = vmatprep.subr.mxu0 0.0
    %1118 = vmatpush2.msra.mxu0 0.0
    %1119 = vmatprep.subr.mxu0 0.0
    %1120 = vmatpush2.msra.mxu0 0.0
    %1121 = vmatprep.subr.mxu0 0.0
    %1122 = vmatpush2.msra.mxu0 0.0
    %1123 = vmatprep.subr.mxu0 0.0
    %1124 = vmatpush2.msra.mxu0 0.0
    %1125 = vmatprep.subr.mxu0 0.0
    %1126 = vmatpush2.msra.mxu0 0.0
    %1127 = vmatprep.subr.mxu0 0.0
    %1128 = vmatpush2.msra.mxu0 0.0
    %1129 = vmatprep.subr.mxu0 0.0
    %1130 = vmatpush2.msra.mxu0 0.0
    %1131 = vmatprep.subr.mxu0 0.0
    %1132 = vmatpush2.msra.mxu0 0.0
    %1133 = vmatprep.subr.mxu0 0.0
    %1134 = vmatpush2.msra.mxu0 0.0
    %1135 = vmatprep.subr.mxu0 0.0
    %1136 = vmatpush2.msra.mxu0 0.0
    %1137 = vmatprep.subr.mxu0 0.0
    %1138 = vmatpush2.msra.mxu0 0.0
    %1139 = vmatprep.subr.mxu0 0.0
    %1140 = vmatpush2.msra.mxu0 0.0
    %1141 = vmatprep.mubr.f32.mxu0 0.0
    %1142 = vmatmul.mubr.f32.gmra.mxu0 %v1066
    %v1143 = vpop.f32.mrf.mxu0
    %v1144 = vadd.f32 %v1047, %v1143
    %v1145 = vpop.f32.mrf.mxu0
    %1146 = vmatprep.mubr.f32.mxu0 0.0
    %1147 = vmatmul.mubr.f32.gmra.mxu0 %v1069
    %v1148 = vpop.f32.mrf.mxu0
    %v1149 = vadd.f32 %v1052, %v1148
    %v1150 = vpop.f32.mrf.mxu0
    %1151 = vmatprep.mubr.f32.mxu0 0.0
    %1152 = vmatmul.mubr.f32.gmra.mxu0 %v1072
    %v1153 = vpop.f32.mrf.mxu0
    %v1154 = vadd.f32 %v1057, %v1153
    %v1155 = vpop.f32.mrf.mxu0
    %1156 = vmatprep.mubr.f32.mxu0 0.0
    %1157 = vmatmul.mubr.f32.gmra.mxu0 %v1075
    %v1158 = vpop.f32.mrf.mxu0
    %v1159 = vadd.f32 %v1062, %v1158
    %v1160 = vpop.f32.mrf.mxu0
    %1161 = vdwg.mxu0
    %1162 = vrot.lane.b32.xlu0 %v162, 112
    %v1163 = vpop.permute.xlu0 %1162
    %1164 = vrot.lane.b32.xlu0 %v163, 112
    %v1165 = vpop.permute.xlu0 %1164
    %1166 = vrot.lane.b32.xlu0 %v144, 80
    %v1167 = vpop.permute.xlu0 %1166
    %1168 = vrot.lane.b32.xlu0 %v149, 80
    %v1169 = vpop.permute.xlu0 %1168
    %v1170 = vsel %vm172, %v1163, 0
    %v1172 = vsel %vm172, %v1165, 0
    %v1174 = vsel %vm172, %v1167, 0
    %v1176 = vsel %vm172, %v1169, 0
    %1178 = vmatprep.subr.mxu0 0.0
    %1179 = vmatpush1.xpose.msra.mxu0 0.0
    %1180 = vmatprep.subr.mxu0 0.0
    %1181 = vmatpush1.xpose.msra.mxu0 0.0
    %1182 = vmatprep.subr.mxu0 0.0
    %1183 = vmatpush1.xpose.msra.mxu0 0.0
    %1184 = vmatprep.subr.mxu0 0.0
    %1185 = vmatpush1.xpose.msra.mxu0 0.0
    %1186 = vmatprep.subr.mxu0 0.0
    %1187 = vmatpush1.xpose.msra.mxu0 0.0
    %1188 = vmatprep.subr.mxu0 0.0
    %1189 = vmatpush1.xpose.msra.mxu0 0.0
    %1190 = vmatprep.subr.mxu0 0.0
    %1191 = vmatpush1.xpose.msra.mxu0 0.0
    %1192 = vmatprep.subr.mxu0 0.0
    %1193 = vmatpush1.xpose.msra.mxu0 0.0
    %1194 = vmatprep.subr.mxu0 0.0
    %1195 = vmatpush1.xpose.msra.mxu0 0.0
    %1196 = vmatprep.subr.mxu0 0.0
    %1197 = vmatpush1.xpose.msra.mxu0 0.0
    %1198 = vmatprep.subr.mxu0 0.0
    %1199 = vmatpush1.xpose.msra.mxu0 0.0
    %1200 = vmatprep.subr.mxu0 0.0
    %1201 = vmatpush1.xpose.msra.mxu0 0.0
    %1202 = vmatprep.subr.mxu0 0.0
    %1203 = vmatpush1.xpose.msra.mxu0 0.0
    %1204 = vmatprep.subr.mxu0 0.0
    %1205 = vmatpush1.xpose.msra.mxu0 0.0
    %1206 = vmatprep.subr.mxu0 0.0
    %1207 = vmatpush1.xpose.msra.mxu0 %v1176
    %1208 = vmatprep.subr.mxu0 0.0
    %1209 = vmatpush1.xpose.msra.mxu0 %v1174
    %1210 = vmatprep.subr.mxu0 0.0
    %1211 = vmatpush2.xpose.msra.mxu0 0.0
    %1212 = vmatprep.subr.mxu0 0.0
    %1213 = vmatpush2.xpose.msra.mxu0 0.0
    %1214 = vmatprep.subr.mxu0 0.0
    %1215 = vmatpush2.xpose.msra.mxu0 0.0
    %1216 = vmatprep.subr.mxu0 0.0
    %1217 = vmatpush2.xpose.msra.mxu0 0.0
    %1218 = vmatprep.subr.mxu0 0.0
    %1219 = vmatpush2.xpose.msra.mxu0 0.0
    %1220 = vmatprep.subr.mxu0 0.0
    %1221 = vmatpush2.xpose.msra.mxu0 0.0
    %1222 = vmatprep.subr.mxu0 0.0
    %1223 = vmatpush2.xpose.msra.mxu0 0.0
    %1224 = vmatprep.subr.mxu0 0.0
    %1225 = vmatpush2.xpose.msra.mxu0 0.0
    %1226 = vmatprep.subr.mxu0 0.0
    %1227 = vmatpush2.xpose.msra.mxu0 0.0
    %1228 = vmatprep.subr.mxu0 0.0
    %1229 = vmatpush2.xpose.msra.mxu0 0.0
    %1230 = vmatprep.subr.mxu0 0.0
    %1231 = vmatpush2.xpose.msra.mxu0 0.0
    %1232 = vmatprep.subr.mxu0 0.0
    %1233 = vmatpush2.xpose.msra.mxu0 0.0
    %1234 = vmatprep.subr.mxu0 0.0
    %1235 = vmatpush2.xpose.msra.mxu0 0.0
    %1236 = vmatprep.subr.mxu0 0.0
    %1237 = vmatpush2.xpose.msra.mxu0 0.0
    %1238 = vmatprep.subr.mxu0 0.0
    %1239 = vmatpush2.xpose.msra.mxu0 0.0
    %1240 = vmatprep.subr.mxu0 0.0
    %1241 = vmatpush2.xpose.msra.mxu0 0.0
    %1242 = vmatprep.mubr.f32.mxu0 0.0
    %1243 = vmatmul.mubr.f32.gmra.mxu0 %v1170
    %v1244 = vpop.f32.mrf.mxu0
    %v1245 = vadd.f32 0.0, %v1244
    %v1246 = vpop.f32.mrf.mxu0
    %1247 = vmatprep.mubr.f32.mxu0 0.0
    %1248 = vmatmul.mubr.f32.gmra.mxu0 %v1172
    %v1249 = vpop.f32.mrf.mxu0
    %v1250 = vadd.f32 0.0, %v1249
    %v1251 = vpop.f32.mrf.mxu0
    %1252 = vdwg.mxu0
    %1253 = vrot.lane.b32.xlu0 %v164, 112
    %v1254 = vpop.permute.xlu0 %1253
    %1255 = vrot.lane.b32.xlu0 %v165, 112
    %v1256 = vpop.permute.xlu0 %1255
    %1257 = vrot.lane.b32.xlu0 %v154, 80
    %v1258 = vpop.permute.xlu0 %1257
    %1259 = vrot.lane.b32.xlu0 %v159, 80
    %v1260 = vpop.permute.xlu0 %1259
    %v1261 = vsel %vm172, %v1254, 0
    %v1263 = vsel %vm172, %v1256, 0
    %v1265 = vsel %vm172, %v1258, 0
    %v1267 = vsel %vm172, %v1260, 0
    %1269 = vmatprep.subr.mxu0 0.0
    %1270 = vmatpush1.xpose.msra.mxu0 0.0
    %1271 = vmatprep.subr.mxu0 0.0
    %1272 = vmatpush1.xpose.msra.mxu0 0.0
    %1273 = vmatprep.subr.mxu0 0.0
    %1274 = vmatpush1.xpose.msra.mxu0 0.0
    %1275 = vmatprep.subr.mxu0 0.0
    %1276 = vmatpush1.xpose.msra.mxu0 0.0
    %1277 = vmatprep.subr.mxu0 0.0
    %1278 = vmatpush1.xpose.msra.mxu0 0.0
    %1279 = vmatprep.subr.mxu0 0.0
    %1280 = vmatpush1.xpose.msra.mxu0 0.0
    %1281 = vmatprep.subr.mxu0 0.0
    %1282 = vmatpush1.xpose.msra.mxu0 0.0
    %1283 = vmatprep.subr.mxu0 0.0
    %1284 = vmatpush1.xpose.msra.mxu0 0.0
    %1285 = vmatprep.subr.mxu0 0.0
    %1286 = vmatpush1.xpose.msra.mxu0 0.0
    %1287 = vmatprep.subr.mxu0 0.0
    %1288 = vmatpush1.xpose.msra.mxu0 0.0
    %1289 = vmatprep.subr.mxu0 0.0
    %1290 = vmatpush1.xpose.msra.mxu0 0.0
    %1291 = vmatprep.subr.mxu0 0.0
    %1292 = vmatpush1.xpose.msra.mxu0 0.0
    %1293 = vmatprep.subr.mxu0 0.0
    %1294 = vmatpush1.xpose.msra.mxu0 0.0
    %1295 = vmatprep.subr.mxu0 0.0
    %1296 = vmatpush1.xpose.msra.mxu0 0.0
    %1297 = vmatprep.subr.mxu0 0.0
    %1298 = vmatpush1.xpose.msra.mxu0 %v1267
    %1299 = vmatprep.subr.mxu0 0.0
    %1300 = vmatpush1.xpose.msra.mxu0 %v1265
    %1301 = vmatprep.subr.mxu0 0.0
    %1302 = vmatpush2.xpose.msra.mxu0 0.0
    %1303 = vmatprep.subr.mxu0 0.0
    %1304 = vmatpush2.xpose.msra.mxu0 0.0
    %1305 = vmatprep.subr.mxu0 0.0
    %1306 = vmatpush2.xpose.msra.mxu0 0.0
    %1307 = vmatprep.subr.mxu0 0.0
    %1308 = vmatpush2.xpose.msra.mxu0 0.0
    %1309 = vmatprep.subr.mxu0 0.0
    %1310 = vmatpush2.xpose.msra.mxu0 0.0
    %1311 = vmatprep.subr.mxu0 0.0
    %1312 = vmatpush2.xpose.msra.mxu0 0.0
    %1313 = vmatprep.subr.mxu0 0.0
    %1314 = vmatpush2.xpose.msra.mxu0 0.0
    %1315 = vmatprep.subr.mxu0 0.0
    %1316 = vmatpush2.xpose.msra.mxu0 0.0
    %1317 = vmatprep.subr.mxu0 0.0
    %1318 = vmatpush2.xpose.msra.mxu0 0.0
    %1319 = vmatprep.subr.mxu0 0.0
    %1320 = vmatpush2.xpose.msra.mxu0 0.0
    %1321 = vmatprep.subr.mxu0 0.0
    %1322 = vmatpush2.xpose.msra.mxu0 0.0
    %1323 = vmatprep.subr.mxu0 0.0
    %1324 = vmatpush2.xpose.msra.mxu0 0.0
    %1325 = vmatprep.subr.mxu0 0.0
    %1326 = vmatpush2.xpose.msra.mxu0 0.0
    %1327 = vmatprep.subr.mxu0 0.0
    %1328 = vmatpush2.xpose.msra.mxu0 0.0
    %1329 = vmatprep.subr.mxu0 0.0
    %1330 = vmatpush2.xpose.msra.mxu0 0.0
    %1331 = vmatprep.subr.mxu0 0.0
    %1332 = vmatpush2.xpose.msra.mxu0 0.0
    %1333 = vmatprep.mubr.f32.mxu0 0.0
    %1334 = vmatmul.mubr.f32.gmra.mxu0 %v1261
    %v1335 = vpop.f32.mrf.mxu0
    %v1336 = vadd.f32 0.0, %v1335
    %v1337 = vpop.f32.mrf.mxu0
    %1338 = vmatprep.mubr.f32.mxu0 0.0
    %1339 = vmatmul.mubr.f32.gmra.mxu0 %v1263
    %v1340 = vpop.f32.mrf.mxu0
    %v1341 = vadd.f32 0.0, %v1340
    %v1342 = vpop.f32.mrf.mxu0
    %1343 = vdwg.mxu0
    %v1344 = vsel %vm349, %v1245, -inf
    %1345 = vmax.xlane.f32.xlu0 %v1344
    %v1346 = vpop.xlane.xlu0 %1345
    %v1347 = vsel %vm349, %v1250, -inf
    %1348 = vmax.xlane.f32.xlu0 %v1347
    %v1349 = vpop.xlane.xlu0 %1348
    %v1350 = vsel %vm349, %v1336, -inf
    %1351 = vmax.xlane.f32.xlu0 %v1350
    %v1352 = vpop.xlane.xlu0 %1351
    %v1353 = vsel %vm349, %v1341, -inf
    %1354 = vmax.xlane.f32.xlu0 %v1353
    %v1355 = vpop.xlane.xlu0 %1354
    %v1356 = vsub.f32 %v1245, %v1346
    %v1357 = vsub.f32 %v1250, %v1349
    %v1358 = vsub.f32 %v1336, %v1352
    %v1359 = vsub.f32 %v1341, %v1355
    %v1360 = vmul.f32 %v1356, 1.442695
    %v1361 = vpow.pop %v1360
    %v1362 = vmul.f32 %v1357, 1.442695
    %v1363 = vpow.pop %v1362
    %v1364 = vmul.f32 %v1358, 1.442695
    %v1365 = vpow.pop %v1364
    %v1366 = vmul.f32 %v1359, 1.442695
    %v1367 = vpow.pop %v1366
    %v1368 = vsel %vm349, %v1361, 0.0
    %1369 = vadd.xlane.f32.xlu0 %v1368
    %v1370 = vpop.xlane.xlu0 %1369
    %v1371 = vsel %vm349, %v1363, 0.0
    %1372 = vadd.xlane.f32.xlu0 %v1371
    %v1373 = vpop.xlane.xlu0 %1372
    %v1374 = vsel %vm349, %v1365, 0.0
    %1375 = vadd.xlane.f32.xlu0 %v1374
    %v1376 = vpop.xlane.xlu0 %1375
    %v1377 = vsel %vm349, %v1367, 0.0
    %1378 = vadd.xlane.f32.xlu0 %v1377
    %v1379 = vpop.xlane.xlu0 %1378
    %v1380 = vrcp.pop %v1370
    %v1381 = vrcp.pop %v1373
    %v1382 = vrcp.pop %v1376
    %v1383 = vrcp.pop %v1379
    %v1384 = vmul.f32 %v1361, %v1380
    %v1385 = vmul.f32 %v1363, %v1381
    %v1386 = vmul.f32 %v1365, %v1382
    %v1387 = vmul.f32 %v1367, %v1383
    %1388 = vrot.lane.b32.xlu0 %v144, 48
    %v1389 = vpop.permute.xlu0 %1388
    %1390 = vrot.lane.b32.xlu0 %v149, 48
    %v1391 = vpop.permute.xlu0 %1390
    %v1395 = vsel %vm349, %v1384, 0
    %v1398 = vsel %vm349, %v1385, 0
    %1400 = vmatprep.subr.mxu0 0.0
    %1401 = vmatpush1.msra.mxu0 0.0
    %1402 = vmatprep.subr.mxu0 0.0
    %1403 = vmatpush1.msra.mxu0 0.0
    %1404 = vmatprep.subr.mxu0 0.0
    %1405 = vmatpush1.msra.mxu0 0.0
    %1406 = vmatprep.subr.mxu0 0.0
    %1407 = vmatpush1.msra.mxu0 0.0
    %1408 = vmatprep.subr.mxu0 0.0
    %1409 = vmatpush1.msra.mxu0 0.0
    %1410 = vmatprep.subr.mxu0 0.0
    %1411 = vmatpush1.msra.mxu0 0.0
    %1412 = vmatprep.subr.mxu0 0.0
    %1413 = vmatpush1.msra.mxu0 0.0
    %1414 = vmatprep.subr.mxu0 0.0
    %1415 = vmatpush1.msra.mxu0 0.0
    %1416 = vmatprep.subr.mxu0 0.0
    %1417 = vmatpush1.msra.mxu0 0.0
    %1418 = vmatprep.subr.mxu0 0.0
    %1419 = vmatpush1.msra.mxu0 0.0
    %1420 = vmatprep.subr.mxu0 0.0
    %1421 = vmatpush1.msra.mxu0 0.0
    %1422 = vmatprep.subr.mxu0 0.0
    %1423 = vmatpush1.msra.mxu0 0.0
    %1424 = vmatprep.subr.mxu0 0.0
    %1425 = vmatpush1.msra.mxu0 0.0
    %1426 = vmatprep.subr.mxu0 0.0
    %1427 = vmatpush1.msra.mxu0 0.0
    %1428 = vmatprep.subr.mxu0 0.0
    %1429 = vmatpush1.msra.mxu0 %v1391
    %1430 = vmatprep.subr.mxu0 0.0
    %1431 = vmatpush1.msra.mxu0 %v1389
    %1432 = vmatprep.subr.mxu0 0.0
    %1433 = vmatpush2.msra.mxu0 0.0
    %1434 = vmatprep.subr.mxu0 0.0
    %1435 = vmatpush2.msra.mxu0 0.0
    %1436 = vmatprep.subr.mxu0 0.0
    %1437 = vmatpush2.msra.mxu0 0.0
    %1438 = vmatprep.subr.mxu0 0.0
    %1439 = vmatpush2.msra.mxu0 0.0
    %1440 = vmatprep.subr.mxu0 0.0
    %1441 = vmatpush2.msra.mxu0 0.0
    %1442 = vmatprep.subr.mxu0 0.0
    %1443 = vmatpush2.msra.mxu0 0.0
    %1444 = vmatprep.subr.mxu0 0.0
    %1445 = vmatpush2.msra.mxu0 0.0
    %1446 = vmatprep.subr.mxu0 0.0
    %1447 = vmatpush2.msra.mxu0 0.0
    %1448 = vmatprep.subr.mxu0 0.0
    %1449 = vmatpush2.msra.mxu0 0.0
    %1450 = vmatprep.subr.mxu0 0.0
    %1451 = vmatpush2.msra.mxu0 0.0
    %1452 = vmatprep.subr.mxu0 0.0
    %1453 = vmatpush2.msra.mxu0 0.0
    %1454 = vmatprep.subr.mxu0 0.0
    %1455 = vmatpush2.msra.mxu0 0.0
    %1456 = vmatprep.subr.mxu0 0.0
    %1457 = vmatpush2.msra.mxu0 0.0
    %1458 = vmatprep.subr.mxu0 0.0
    %1459 = vmatpush2.msra.mxu0 0.0
    %1460 = vmatprep.subr.mxu0 0.0
    %1461 = vmatpush2.msra.mxu0 0.0
    %1462 = vmatprep.subr.mxu0 0.0
    %1463 = vmatpush2.msra.mxu0 0.0
    %1464 = vmatprep.mubr.f32.mxu0 0.0
    %1465 = vmatmul.mubr.f32.gmra.mxu0 %v1395
    %v1466 = vpop.f32.mrf.mxu0
    %v1467 = vadd.f32 0.0, %v1466
    %v1468 = vpop.f32.mrf.mxu0
    %1469 = vmatprep.mubr.f32.mxu0 0.0
    %1470 = vmatmul.mubr.f32.gmra.mxu0 %v1398
    %v1471 = vpop.f32.mrf.mxu0
    %v1472 = vadd.f32 0.0, %v1471
    %v1473 = vpop.f32.mrf.mxu0
    %1474 = vdwg.mxu0
    %1475 = vrot.lane.b32.xlu0 %v154, 48
    %v1476 = vpop.permute.xlu0 %1475
    %1477 = vrot.lane.b32.xlu0 %v159, 48
    %v1478 = vpop.permute.xlu0 %1477
    %v1482 = vsel %vm349, %v1386, 0
    %v1485 = vsel %vm349, %v1387, 0
    %1487 = vmatprep.subr.mxu0 0.0
    %1488 = vmatpush1.msra.mxu0 0.0
    %1489 = vmatprep.subr.mxu0 0.0
    %1490 = vmatpush1.msra.mxu0 0.0
    %1491 = vmatprep.subr.mxu0 0.0
    %1492 = vmatpush1.msra.mxu0 0.0
    %1493 = vmatprep.subr.mxu0 0.0
    %1494 = vmatpush1.msra.mxu0 0.0
    %1495 = vmatprep.subr.mxu0 0.0
    %1496 = vmatpush1.msra.mxu0 0.0
    %1497 = vmatprep.subr.mxu0 0.0
    %1498 = vmatpush1.msra.mxu0 0.0
    %1499 = vmatprep.subr.mxu0 0.0
    %1500 = vmatpush1.msra.mxu0 0.0
    %1501 = vmatprep.subr.mxu0 0.0
    %1502 = vmatpush1.msra.mxu0 0.0
    %1503 = vmatprep.subr.mxu0 0.0
    %1504 = vmatpush1.msra.mxu0 0.0
    %1505 = vmatprep.subr.mxu0 0.0
    %1506 = vmatpush1.msra.mxu0 0.0
    %1507 = vmatprep.subr.mxu0 0.0
    %1508 = vmatpush1.msra.mxu0 0.0
    %1509 = vmatprep.subr.mxu0 0.0
    %1510 = vmatpush1.msra.mxu0 0.0
    %1511 = vmatprep.subr.mxu0 0.0
    %1512 = vmatpush1.msra.mxu0 0.0
    %1513 = vmatprep.subr.mxu0 0.0
    %1514 = vmatpush1.msra.mxu0 0.0
    %1515 = vmatprep.subr.mxu0 0.0
    %1516 = vmatpush1.msra.mxu0 %v1478
    %1517 = vmatprep.subr.mxu0 0.0
    %1518 = vmatpush1.msra.mxu0 %v1476
    %1519 = vmatprep.subr.mxu0 0.0
    %1520 = vmatpush2.msra.mxu0 0.0
    %1521 = vmatprep.subr.mxu0 0.0
    %1522 = vmatpush2.msra.mxu0 0.0
    %1523 = vmatprep.subr.mxu0 0.0
    %1524 = vmatpush2.msra.mxu0 0.0
    %1525 = vmatprep.subr.mxu0 0.0
    %1526 = vmatpush2.msra.mxu0 0.0
    %1527 = vmatprep.subr.mxu0 0.0
    %1528 = vmatpush2.msra.mxu0 0.0
    %1529 = vmatprep.subr.mxu0 0.0
    %1530 = vmatpush2.msra.mxu0 0.0
    %1531 = vmatprep.subr.mxu0 0.0
    %1532 = vmatpush2.msra.mxu0 0.0
    %1533 = vmatprep.subr.mxu0 0.0
    %1534 = vmatpush2.msra.mxu0 0.0
    %1535 = vmatprep.subr.mxu0 0.0
    %1536 = vmatpush2.msra.mxu0 0.0
    %1537 = vmatprep.subr.mxu0 0.0
    %1538 = vmatpush2.msra.mxu0 0.0
    %1539 = vmatprep.subr.mxu0 0.0
    %1540 = vmatpush2.msra.mxu0 0.0
    %1541 = vmatprep.subr.mxu0 0.0
    %1542 = vmatpush2.msra.mxu0 0.0
    %1543 = vmatprep.subr.mxu0 0.0
    %1544 = vmatpush2.msra.mxu0 0.0
    %1545 = vmatprep.subr.mxu0 0.0
    %1546 = vmatpush2.msra.mxu0 0.0
    %1547 = vmatprep.subr.mxu0 0.0
    %1548 = vmatpush2.msra.mxu0 0.0
    %1549 = vmatprep.subr.mxu0 0.0
    %1550 = vmatpush2.msra.mxu0 0.0
    %1551 = vmatprep.mubr.f32.mxu0 0.0
    %1552 = vmatmul.mubr.f32.gmra.mxu0 %v1482
    %v1553 = vpop.f32.mrf.mxu0
    %v1554 = vadd.f32 0.0, %v1553
    %v1555 = vpop.f32.mrf.mxu0
    %1556 = vmatprep.mubr.f32.mxu0 0.0
    %1557 = vmatmul.mubr.f32.gmra.mxu0 %v1485
    %v1558 = vpop.f32.mrf.mxu0
    %v1559 = vadd.f32 0.0, %v1558
    %v1560 = vpop.f32.mrf.mxu0
    %1561 = vdwg.mxu0
    %v1563 = vsel %vm172, %v1467, 0
    %v1566 = vsel %vm172, %v1472, 0
    %v1569 = vsel %vm172, %v1554, 0
    %v1572 = vsel %vm172, %v1559, 0
    %1574 = vmatprep.subr.mxu0 0.0
    %1575 = vmatpush1.msra.mxu0 0.0
    %1576 = vmatprep.subr.mxu0 0.0
    %1577 = vmatpush1.msra.mxu0 0.0
    %1578 = vmatprep.subr.mxu0 0.0
    %1579 = vmatpush1.msra.mxu0 0.0
    %1580 = vmatprep.subr.mxu0 0.0
    %1581 = vmatpush1.msra.mxu0 0.0
    %1582 = vmatprep.subr.mxu0 0.0
    %1583 = vmatpush1.msra.mxu0 0.0
    %1584 = vmatprep.subr.mxu0 0.0
    %1585 = vmatpush1.msra.mxu0 0.0
    %1586 = vmatprep.subr.mxu0 0.0
    %1587 = vmatpush1.msra.mxu0 0.0
    %1588 = vmatprep.subr.mxu0 0.0
    %1589 = vmatpush1.msra.mxu0 0.0
    %1590 = vmatprep.subr.mxu0 0.0
    %1591 = vmatpush1.msra.mxu0 0.0
    %1592 = vmatprep.subr.mxu0 0.0
    %1593 = vmatpush1.msra.mxu0 0.0
    %1594 = vmatprep.subr.mxu0 0.0
    %1595 = vmatpush1.msra.mxu0 0.0
    %1596 = vmatprep.subr.mxu0 0.0
    %1597 = vmatpush1.msra.mxu0 0.0
    %1598 = vmatprep.subr.mxu0 0.0
    %1599 = vmatpush1.msra.mxu0 0.0
    %1600 = vmatprep.subr.mxu0 0.0
    %1601 = vmatpush1.msra.mxu0 0.0
    %1602 = vmatprep.subr.mxu0 0.0
    %1603 = vmatpush1.msra.mxu0 0.0
    %1604 = vmatprep.subr.mxu0 0.0
    %1605 = vmatpush1.msra.mxu0 %v58
    %1606 = vmatprep.subr.mxu0 0.0
    %1607 = vmatpush2.msra.mxu0 0.0
    %1608 = vmatprep.subr.mxu0 0.0
    %1609 = vmatpush2.msra.mxu0 0.0
    %1610 = vmatprep.subr.mxu0 0.0
    %1611 = vmatpush2.msra.mxu0 0.0
    %1612 = vmatprep.subr.mxu0 0.0
    %1613 = vmatpush2.msra.mxu0 0.0
    %1614 = vmatprep.subr.mxu0 0.0
    %1615 = vmatpush2.msra.mxu0 0.0
    %1616 = vmatprep.subr.mxu0 0.0
    %1617 = vmatpush2.msra.mxu0 0.0
    %1618 = vmatprep.subr.mxu0 0.0
    %1619 = vmatpush2.msra.mxu0 0.0
    %1620 = vmatprep.subr.mxu0 0.0
    %1621 = vmatpush2.msra.mxu0 0.0
    %1622 = vmatprep.subr.mxu0 0.0
    %1623 = vmatpush2.msra.mxu0 0.0
    %1624 = vmatprep.subr.mxu0 0.0
    %1625 = vmatpush2.msra.mxu0 0.0
    %1626 = vmatprep.subr.mxu0 0.0
    %1627 = vmatpush2.msra.mxu0 0.0
    %1628 = vmatprep.subr.mxu0 0.0
    %1629 = vmatpush2.msra.mxu0 0.0
    %1630 = vmatprep.subr.mxu0 0.0
    %1631 = vmatpush2.msra.mxu0 0.0
    %1632 = vmatprep.subr.mxu0 0.0
    %1633 = vmatpush2.msra.mxu0 0.0
    %1634 = vmatprep.subr.mxu0 0.0
    %1635 = vmatpush2.msra.mxu0 0.0
    %1636 = vmatprep.subr.mxu0 0.0
    %1637 = vmatpush2.msra.mxu0 0.0
    %1638 = vmatprep.mubr.f32.mxu0 0.0
    %1639 = vmatmul.mubr.f32.gmra.mxu0 %v1563
    %v1640 = vpop.f32.mrf.mxu0
    %v1641 = vadd.f32 0.0, %v1640
    %v1642 = vpop.f32.mrf.mxu0
    %1643 = vmatprep.mubr.f32.mxu0 0.0
    %1644 = vmatmul.mubr.f32.gmra.mxu0 %v1566
    %v1645 = vpop.f32.mrf.mxu0
    %v1646 = vadd.f32 0.0, %v1645
    %v1647 = vpop.f32.mrf.mxu0
    %1648 = vmatprep.mubr.f32.mxu0 0.0
    %1649 = vmatmul.mubr.f32.gmra.mxu0 %v1569
    %v1650 = vpop.f32.mrf.mxu0
    %v1651 = vadd.f32 0.0, %v1650
    %v1652 = vpop.f32.mrf.mxu0
    %1653 = vmatprep.mubr.f32.mxu0 0.0
    %1654 = vmatmul.mubr.f32.gmra.mxu0 %v1572
    %v1655 = vpop.f32.mrf.mxu0
    %v1656 = vadd.f32 0.0, %v1655
    %v1657 = vpop.f32.mrf.mxu0
    %1658 = vdwg.mxu0
    %v1659 = vadd.f32 %v1144, %v1641
    %v1660 = vadd.f32 %v1149, %v1646
    %v1661 = vadd.f32 %v1154, %v1651
    %v1662 = vadd.f32 %v1159, %v1656
    %1663 = vrot.lane.b32.xlu0 %v162, 104
    %v1664 = vpop.permute.xlu0 %1663
    %1665 = vrot.lane.b32.xlu0 %v163, 104
    %v1666 = vpop.permute.xlu0 %1665
    %1667 = vrot.lane.b32.xlu0 %v144, 72
    %v1668 = vpop.permute.xlu0 %1667
    %1669 = vrot.lane.b32.xlu0 %v149, 72
    %v1670 = vpop.permute.xlu0 %1669
    %v1671 = vsel %vm172, %v1664, 0
    %v1673 = vsel %vm172, %v1666, 0
    %v1675 = vsel %vm172, %v1668, 0
    %v1677 = vsel %vm172, %v1670, 0
    %1679 = vmatprep.subr.mxu0 0.0
    %1680 = vmatpush1.xpose.msra.mxu0 0.0
    %1681 = vmatprep.subr.mxu0 0.0
    %1682 = vmatpush1.xpose.msra.mxu0 0.0
    %1683 = vmatprep.subr.mxu0 0.0
    %1684 = vmatpush1.xpose.msra.mxu0 0.0
    %1685 = vmatprep.subr.mxu0 0.0
    %1686 = vmatpush1.xpose.msra.mxu0 0.0
    %1687 = vmatprep.subr.mxu0 0.0
    %1688 = vmatpush1.xpose.msra.mxu0 0.0
    %1689 = vmatprep.subr.mxu0 0.0
    %1690 = vmatpush1.xpose.msra.mxu0 0.0
    %1691 = vmatprep.subr.mxu0 0.0
    %1692 = vmatpush1.xpose.msra.mxu0 0.0
    %1693 = vmatprep.subr.mxu0 0.0
    %1694 = vmatpush1.xpose.msra.mxu0 0.0
    %1695 = vmatprep.subr.mxu0 0.0
    %1696 = vmatpush1.xpose.msra.mxu0 0.0
    %1697 = vmatprep.subr.mxu0 0.0
    %1698 = vmatpush1.xpose.msra.mxu0 0.0
    %1699 = vmatprep.subr.mxu0 0.0
    %1700 = vmatpush1.xpose.msra.mxu0 0.0
    %1701 = vmatprep.subr.mxu0 0.0
    %1702 = vmatpush1.xpose.msra.mxu0 0.0
    %1703 = vmatprep.subr.mxu0 0.0
    %1704 = vmatpush1.xpose.msra.mxu0 0.0
    %1705 = vmatprep.subr.mxu0 0.0
    %1706 = vmatpush1.xpose.msra.mxu0 0.0
    %1707 = vmatprep.subr.mxu0 0.0
    %1708 = vmatpush1.xpose.msra.mxu0 %v1677
    %1709 = vmatprep.subr.mxu0 0.0
    %1710 = vmatpush1.xpose.msra.mxu0 %v1675
    %1711 = vmatprep.subr.mxu0 0.0
    %1712 = vmatpush2.xpose.msra.mxu0 0.0
    %1713 = vmatprep.subr.mxu0 0.0
    %1714 = vmatpush2.xpose.msra.mxu0 0.0
    %1715 = vmatprep.subr.mxu0 0.0
    %1716 = vmatpush2.xpose.msra.mxu0 0.0
    %1717 = vmatprep.subr.mxu0 0.0
    %1718 = vmatpush2.xpose.msra.mxu0 0.0
    %1719 = vmatprep.subr.mxu0 0.0
    %1720 = vmatpush2.xpose.msra.mxu0 0.0
    %1721 = vmatprep.subr.mxu0 0.0
    %1722 = vmatpush2.xpose.msra.mxu0 0.0
    %1723 = vmatprep.subr.mxu0 0.0
    %1724 = vmatpush2.xpose.msra.mxu0 0.0
    %1725 = vmatprep.subr.mxu0 0.0
    %1726 = vmatpush2.xpose.msra.mxu0 0.0
    %1727 = vmatprep.subr.mxu0 0.0
    %1728 = vmatpush2.xpose.msra.mxu0 0.0
    %1729 = vmatprep.subr.mxu0 0.0
    %1730 = vmatpush2.xpose.msra.mxu0 0.0
    %1731 = vmatprep.subr.mxu0 0.0
    %1732 = vmatpush2.xpose.msra.mxu0 0.0
    %1733 = vmatprep.subr.mxu0 0.0
    %1734 = vmatpush2.xpose.msra.mxu0 0.0
    %1735 = vmatprep.subr.mxu0 0.0
    %1736 = vmatpush2.xpose.msra.mxu0 0.0
    %1737 = vmatprep.subr.mxu0 0.0
    %1738 = vmatpush2.xpose.msra.mxu0 0.0
    %1739 = vmatprep.subr.mxu0 0.0
    %1740 = vmatpush2.xpose.msra.mxu0 0.0
    %1741 = vmatprep.subr.mxu0 0.0
    %1742 = vmatpush2.xpose.msra.mxu0 0.0
    %1743 = vmatprep.mubr.f32.mxu0 0.0
    %1744 = vmatmul.mubr.f32.gmra.mxu0 %v1671
    %v1745 = vpop.f32.mrf.mxu0
    %v1746 = vadd.f32 0.0, %v1745
    %v1747 = vpop.f32.mrf.mxu0
    %1748 = vmatprep.mubr.f32.mxu0 0.0
    %1749 = vmatmul.mubr.f32.gmra.mxu0 %v1673
    %v1750 = vpop.f32.mrf.mxu0
    %v1751 = vadd.f32 0.0, %v1750
    %v1752 = vpop.f32.mrf.mxu0
    %1753 = vdwg.mxu0
    %1754 = vrot.lane.b32.xlu0 %v164, 104
    %v1755 = vpop.permute.xlu0 %1754
    %1756 = vrot.lane.b32.xlu0 %v165, 104
    %v1757 = vpop.permute.xlu0 %1756
    %1758 = vrot.lane.b32.xlu0 %v154, 72
    %v1759 = vpop.permute.xlu0 %1758
    %1760 = vrot.lane.b32.xlu0 %v159, 72
    %v1761 = vpop.permute.xlu0 %1760
    %v1762 = vsel %vm172, %v1755, 0
    %v1764 = vsel %vm172, %v1757, 0
    %v1766 = vsel %vm172, %v1759, 0
    %v1768 = vsel %vm172, %v1761, 0
    %1770 = vmatprep.subr.mxu0 0.0
    %1771 = vmatpush1.xpose.msra.mxu0 0.0
    %1772 = vmatprep.subr.mxu0 0.0
    %1773 = vmatpush1.xpose.msra.mxu0 0.0
    %1774 = vmatprep.subr.mxu0 0.0
    %1775 = vmatpush1.xpose.msra.mxu0 0.0
    %1776 = vmatprep.subr.mxu0 0.0
    %1777 = vmatpush1.xpose.msra.mxu0 0.0
    %1778 = vmatprep.subr.mxu0 0.0
    %1779 = vmatpush1.xpose.msra.mxu0 0.0
    %1780 = vmatprep.subr.mxu0 0.0
    %1781 = vmatpush1.xpose.msra.mxu0 0.0
    %1782 = vmatprep.subr.mxu0 0.0
    %1783 = vmatpush1.xpose.msra.mxu0 0.0
    %1784 = vmatprep.subr.mxu0 0.0
    %1785 = vmatpush1.xpose.msra.mxu0 0.0
    %1786 = vmatprep.subr.mxu0 0.0
    %1787 = vmatpush1.xpose.msra.mxu0 0.0
    %1788 = vmatprep.subr.mxu0 0.0
    %1789 = vmatpush1.xpose.msra.mxu0 0.0
    %1790 = vmatprep.subr.mxu0 0.0
    %1791 = vmatpush1.xpose.msra.mxu0 0.0
    %1792 = vmatprep.subr.mxu0 0.0
    %1793 = vmatpush1.xpose.msra.mxu0 0.0
    %1794 = vmatprep.subr.mxu0 0.0
    %1795 = vmatpush1.xpose.msra.mxu0 0.0
    %1796 = vmatprep.subr.mxu0 0.0
    %1797 = vmatpush1.xpose.msra.mxu0 0.0
    %1798 = vmatprep.subr.mxu0 0.0
    %1799 = vmatpush1.xpose.msra.mxu0 %v1768
    %1800 = vmatprep.subr.mxu0 0.0
    %1801 = vmatpush1.xpose.msra.mxu0 %v1766
    %1802 = vmatprep.subr.mxu0 0.0
    %1803 = vmatpush2.xpose.msra.mxu0 0.0
    %1804 = vmatprep.subr.mxu0 0.0
    %1805 = vmatpush2.xpose.msra.mxu0 0.0
    %1806 = vmatprep.subr.mxu0 0.0
    %1807 = vmatpush2.xpose.msra.mxu0 0.0
    %1808 = vmatprep.subr.mxu0 0.0
    %1809 = vmatpush2.xpose.msra.mxu0 0.0
    %1810 = vmatprep.subr.mxu0 0.0
    %1811 = vmatpush2.xpose.msra.mxu0 0.0
    %1812 = vmatprep.subr.mxu0 0.0
    %1813 = vmatpush2.xpose.msra.mxu0 0.0
    %1814 = vmatprep.subr.mxu0 0.0
    %1815 = vmatpush2.xpose.msra.mxu0 0.0
    %1816 = vmatprep.subr.mxu0 0.0
    %1817 = vmatpush2.xpose.msra.mxu0 0.0
    %1818 = vmatprep.subr.mxu0 0.0
    %1819 = vmatpush2.xpose.msra.mxu0 0.0
    %1820 = vmatprep.subr.mxu0 0.0
    %1821 = vmatpush2.xpose.msra.mxu0 0.0
    %1822 = vmatprep.subr.mxu0 0.0
    %1823 = vmatpush2.xpose.msra.mxu0 0.0
    %1824 = vmatprep.subr.mxu0 0.0
    %1825 = vmatpush2.xpose.msra.mxu0 0.0
    %1826 = vmatprep.subr.mxu0 0.0
    %1827 = vmatpush2.xpose.msra.mxu0 0.0
    %1828 = vmatprep.subr.mxu0 0.0
    %1829 = vmatpush2.xpose.msra.mxu0 0.0
    %1830 = vmatprep.subr.mxu0 0.0
    %1831 = vmatpush2.xpose.msra.mxu0 0.0
    %1832 = vmatprep.subr.mxu0 0.0
    %1833 = vmatpush2.xpose.msra.mxu0 0.0
    %1834 = vmatprep.mubr.f32.mxu0 0.0
    %1835 = vmatmul.mubr.f32.gmra.mxu0 %v1762
    %v1836 = vpop.f32.mrf.mxu0
    %v1837 = vadd.f32 0.0, %v1836
    %v1838 = vpop.f32.mrf.mxu0
    %1839 = vmatprep.mubr.f32.mxu0 0.0
    %1840 = vmatmul.mubr.f32.gmra.mxu0 %v1764
    %v1841 = vpop.f32.mrf.mxu0
    %v1842 = vadd.f32 0.0, %v1841
    %v1843 = vpop.f32.mrf.mxu0
    %1844 = vdwg.mxu0
    %v1845 = vsel %vm349, %v1746, -inf
    %1846 = vmax.xlane.f32.xlu0 %v1845
    %v1847 = vpop.xlane.xlu0 %1846
    %v1848 = vsel %vm349, %v1751, -inf
    %1849 = vmax.xlane.f32.xlu0 %v1848
    %v1850 = vpop.xlane.xlu0 %1849
    %v1851 = vsel %vm349, %v1837, -inf
    %1852 = vmax.xlane.f32.xlu0 %v1851
    %v1853 = vpop.xlane.xlu0 %1852
    %v1854 = vsel %vm349, %v1842, -inf
    %1855 = vmax.xlane.f32.xlu0 %v1854
    %v1856 = vpop.xlane.xlu0 %1855
    %v1857 = vsub.f32 %v1746, %v1847
    %v1858 = vsub.f32 %v1751, %v1850
    %v1859 = vsub.f32 %v1837, %v1853
    %v1860 = vsub.f32 %v1842, %v1856
    %v1861 = vmul.f32 %v1857, 1.442695
    %v1862 = vpow.pop %v1861
    %v1863 = vmul.f32 %v1858, 1.442695
    %v1864 = vpow.pop %v1863
    %v1865 = vmul.f32 %v1859, 1.442695
    %v1866 = vpow.pop %v1865
    %v1867 = vmul.f32 %v1860, 1.442695
    %v1868 = vpow.pop %v1867
    %v1869 = vsel %vm349, %v1862, 0.0
    %1870 = vadd.xlane.f32.xlu0 %v1869
    %v1871 = vpop.xlane.xlu0 %1870
    %v1872 = vsel %vm349, %v1864, 0.0
    %1873 = vadd.xlane.f32.xlu0 %v1872
    %v1874 = vpop.xlane.xlu0 %1873
    %v1875 = vsel %vm349, %v1866, 0.0
    %1876 = vadd.xlane.f32.xlu0 %v1875
    %v1877 = vpop.xlane.xlu0 %1876
    %v1878 = vsel %vm349, %v1868, 0.0
    %1879 = vadd.xlane.f32.xlu0 %v1878
    %v1880 = vpop.xlane.xlu0 %1879
    %v1881 = vrcp.pop %v1871
    %v1882 = vrcp.pop %v1874
    %v1883 = vrcp.pop %v1877
    %v1884 = vrcp.pop %v1880
    %v1885 = vmul.f32 %v1862, %v1881
    %v1886 = vmul.f32 %v1864, %v1882
    %v1887 = vmul.f32 %v1866, %v1883
    %v1888 = vmul.f32 %v1868, %v1884
    %1889 = vrot.lane.b32.xlu0 %v144, 40
    %v1890 = vpop.permute.xlu0 %1889
    %1891 = vrot.lane.b32.xlu0 %v149, 40
    %v1892 = vpop.permute.xlu0 %1891
    %v1896 = vsel %vm349, %v1885, 0
    %v1899 = vsel %vm349, %v1886, 0
    %1901 = vmatprep.subr.mxu0 0.0
    %1902 = vmatpush1.msra.mxu0 0.0
    %1903 = vmatprep.subr.mxu0 0.0
    %1904 = vmatpush1.msra.mxu0 0.0
    %1905 = vmatprep.subr.mxu0 0.0
    %1906 = vmatpush1.msra.mxu0 0.0
    %1907 = vmatprep.subr.mxu0 0.0
    %1908 = vmatpush1.msra.mxu0 0.0
    %1909 = vmatprep.subr.mxu0 0.0
    %1910 = vmatpush1.msra.mxu0 0.0
    %1911 = vmatprep.subr.mxu0 0.0
    %1912 = vmatpush1.msra.mxu0 0.0
    %1913 = vmatprep.subr.mxu0 0.0
    %1914 = vmatpush1.msra.mxu0 0.0
    %1915 = vmatprep.subr.mxu0 0.0
    %1916 = vmatpush1.msra.mxu0 0.0
    %1917 = vmatprep.subr.mxu0 0.0
    %1918 = vmatpush1.msra.mxu0 0.0
    %1919 = vmatprep.subr.mxu0 0.0
    %1920 = vmatpush1.msra.mxu0 0.0
    %1921 = vmatprep.subr.mxu0 0.0
    %1922 = vmatpush1.msra.mxu0 0.0
    %1923 = vmatprep.subr.mxu0 0.0
    %1924 = vmatpush1.msra.mxu0 0.0
    %1925 = vmatprep.subr.mxu0 0.0
    %1926 = vmatpush1.msra.mxu0 0.0
    %1927 = vmatprep.subr.mxu0 0.0
    %1928 = vmatpush1.msra.mxu0 0.0
    %1929 = vmatprep.subr.mxu0 0.0
    %1930 = vmatpush1.msra.mxu0 %v1892
    %1931 = vmatprep.subr.mxu0 0.0
    %1932 = vmatpush1.msra.mxu0 %v1890
    %1933 = vmatprep.subr.mxu0 0.0
    %1934 = vmatpush2.msra.mxu0 0.0
    %1935 = vmatprep.subr.mxu0 0.0
    %1936 = vmatpush2.msra.mxu0 0.0
    %1937 = vmatprep.subr.mxu0 0.0
    %1938 = vmatpush2.msra.mxu0 0.0
    %1939 = vmatprep.subr.mxu0 0.0
    %1940 = vmatpush2.msra.mxu0 0.0
    %1941 = vmatprep.subr.mxu0 0.0
    %1942 = vmatpush2.msra.mxu0 0.0
    %1943 = vmatprep.subr.mxu0 0.0
    %1944 = vmatpush2.msra.mxu0 0.0
    %1945 = vmatprep.subr.mxu0 0.0
    %1946 = vmatpush2.msra.mxu0 0.0
    %1947 = vmatprep.subr.mxu0 0.0
    %1948 = vmatpush2.msra.mxu0 0.0
    %1949 = vmatprep.subr.mxu0 0.0
    %1950 = vmatpush2.msra.mxu0 0.0
    %1951 = vmatprep.subr.mxu0 0.0
    %1952 = vmatpush2.msra.mxu0 0.0
    %1953 = vmatprep.subr.mxu0 0.0
    %1954 = vmatpush2.msra.mxu0 0.0
    %1955 = vmatprep.subr.mxu0 0.0
    %1956 = vmatpush2.msra.mxu0 0.0
    %1957 = vmatprep.subr.mxu0 0.0
    %1958 = vmatpush2.msra.mxu0 0.0
    %1959 = vmatprep.subr.mxu0 0.0
    %1960 = vmatpush2.msra.mxu0 0.0
    %1961 = vmatprep.subr.mxu0 0.0
    %1962 = vmatpush2.msra.mxu0 0.0
    %1963 = vmatprep.subr.mxu0 0.0
    %1964 = vmatpush2.msra.mxu0 0.0
    %1965 = vmatprep.mubr.f32.mxu0 0.0
    %1966 = vmatmul.mubr.f32.gmra.mxu0 %v1896
    %v1967 = vpop.f32.mrf.mxu0
    %v1968 = vadd.f32 0.0, %v1967
    %v1969 = vpop.f32.mrf.mxu0
    %1970 = vmatprep.mubr.f32.mxu0 0.0
    %1971 = vmatmul.mubr.f32.gmra.mxu0 %v1899
    %v1972 = vpop.f32.mrf.mxu0
    %v1973 = vadd.f32 0.0, %v1972
    %v1974 = vpop.f32.mrf.mxu0
    %1975 = vdwg.mxu0
    %1976 = vrot.lane.b32.xlu0 %v154, 40
    %v1977 = vpop.permute.xlu0 %1976
    %1978 = vrot.lane.b32.xlu0 %v159, 40
    %v1979 = vpop.permute.xlu0 %1978
    %v1983 = vsel %vm349, %v1887, 0
    %v1986 = vsel %vm349, %v1888, 0
    %1988 = vmatprep.subr.mxu0 0.0
    %1989 = vmatpush1.msra.mxu0 0.0
    %1990 = vmatprep.subr.mxu0 0.0
    %1991 = vmatpush1.msra.mxu0 0.0
    %1992 = vmatprep.subr.mxu0 0.0
    %1993 = vmatpush1.msra.mxu0 0.0
    %1994 = vmatprep.subr.mxu0 0.0
    %1995 = vmatpush1.msra.mxu0 0.0
    %1996 = vmatprep.subr.mxu0 0.0
    %1997 = vmatpush1.msra.mxu0 0.0
    %1998 = vmatprep.subr.mxu0 0.0
    %1999 = vmatpush1.msra.mxu0 0.0
    %2000 = vmatprep.subr.mxu0 0.0
    %2001 = vmatpush1.msra.mxu0 0.0
    %2002 = vmatprep.subr.mxu0 0.0
    %2003 = vmatpush1.msra.mxu0 0.0
    %2004 = vmatprep.subr.mxu0 0.0
    %2005 = vmatpush1.msra.mxu0 0.0
    %2006 = vmatprep.subr.mxu0 0.0
    %2007 = vmatpush1.msra.mxu0 0.0
    %2008 = vmatprep.subr.mxu0 0.0
    %2009 = vmatpush1.msra.mxu0 0.0
    %2010 = vmatprep.subr.mxu0 0.0
    %2011 = vmatpush1.msra.mxu0 0.0
    %2012 = vmatprep.subr.mxu0 0.0
    %2013 = vmatpush1.msra.mxu0 0.0
    %2014 = vmatprep.subr.mxu0 0.0
    %2015 = vmatpush1.msra.mxu0 0.0
    %2016 = vmatprep.subr.mxu0 0.0
    %2017 = vmatpush1.msra.mxu0 %v1979
    %2018 = vmatprep.subr.mxu0 0.0
    %2019 = vmatpush1.msra.mxu0 %v1977
    %2020 = vmatprep.subr.mxu0 0.0
    %2021 = vmatpush2.msra.mxu0 0.0
    %2022 = vmatprep.subr.mxu0 0.0
    %2023 = vmatpush2.msra.mxu0 0.0
    %2024 = vmatprep.subr.mxu0 0.0
    %2025 = vmatpush2.msra.mxu0 0.0
    %2026 = vmatprep.subr.mxu0 0.0
    %2027 = vmatpush2.msra.mxu0 0.0
    %2028 = vmatprep.subr.mxu0 0.0
    %2029 = vmatpush2.msra.mxu0 0.0
    %2030 = vmatprep.subr.mxu0 0.0
    %2031 = vmatpush2.msra.mxu0 0.0
    %2032 = vmatprep.subr.mxu0 0.0
    %2033 = vmatpush2.msra.mxu0 0.0
    %2034 = vmatprep.subr.mxu0 0.0
    %2035 = vmatpush2.msra.mxu0 0.0
    %2036 = vmatprep.subr.mxu0 0.0
    %2037 = vmatpush2.msra.mxu0 0.0
    %2038 = vmatprep.subr.mxu0 0.0
    %2039 = vmatpush2.msra.mxu0 0.0
    %2040 = vmatprep.subr.mxu0 0.0
    %2041 = vmatpush2.msra.mxu0 0.0
    %2042 = vmatprep.subr.mxu0 0.0
    %2043 = vmatpush2.msra.mxu0 0.0
    %2044 = vmatprep.subr.mxu0 0.0
    %2045 = vmatpush2.msra.mxu0 0.0
    %2046 = vmatprep.subr.mxu0 0.0
    %2047 = vmatpush2.msra.mxu0 0.0
    %2048 = vmatprep.subr.mxu0 0.0
    %2049 = vmatpush2.msra.mxu0 0.0
    %2050 = vmatprep.subr.mxu0 0.0
    %2051 = vmatpush2.msra.mxu0 0.0
    %2052 = vmatprep.mubr.f32.mxu0 0.0
    %2053 = vmatmul.mubr.f32.gmra.mxu0 %v1983
    %v2054 = vpop.f32.mrf.mxu0
    %v2055 = vadd.f32 0.0, %v2054
    %v2056 = vpop.f32.mrf.mxu0
    %2057 = vmatprep.mubr.f32.mxu0 0.0
    %2058 = vmatmul.mubr.f32.gmra.mxu0 %v1986
    %v2059 = vpop.f32.mrf.mxu0
    %v2060 = vadd.f32 0.0, %v2059
    %v2061 = vpop.f32.mrf.mxu0
    %2062 = vdwg.mxu0
    %v2064 = vsel %vm172, %v1968, 0
    %v2067 = vsel %vm172, %v1973, 0
    %v2070 = vsel %vm172, %v2055, 0
    %v2073 = vsel %vm172, %v2060, 0
    %2075 = vmatprep.subr.mxu0 0.0
    %2076 = vmatpush1.msra.mxu0 0.0
    %2077 = vmatprep.subr.mxu0 0.0
    %2078 = vmatpush1.msra.mxu0 0.0
    %2079 = vmatprep.subr.mxu0 0.0
    %2080 = vmatpush1.msra.mxu0 0.0
    %2081 = vmatprep.subr.mxu0 0.0
    %2082 = vmatpush1.msra.mxu0 0.0
    %2083 = vmatprep.subr.mxu0 0.0
    %2084 = vmatpush1.msra.mxu0 0.0
    %2085 = vmatprep.subr.mxu0 0.0
    %2086 = vmatpush1.msra.mxu0 0.0
    %2087 = vmatprep.subr.mxu0 0.0
    %2088 = vmatpush1.msra.mxu0 0.0
    %2089 = vmatprep.subr.mxu0 0.0
    %2090 = vmatpush1.msra.mxu0 0.0
    %2091 = vmatprep.subr.mxu0 0.0
    %2092 = vmatpush1.msra.mxu0 0.0
    %2093 = vmatprep.subr.mxu0 0.0
    %2094 = vmatpush1.msra.mxu0 0.0
    %2095 = vmatprep.subr.mxu0 0.0
    %2096 = vmatpush1.msra.mxu0 0.0
    %2097 = vmatprep.subr.mxu0 0.0
    %2098 = vmatpush1.msra.mxu0 0.0
    %2099 = vmatprep.subr.mxu0 0.0
    %2100 = vmatpush1.msra.mxu0 0.0
    %2101 = vmatprep.subr.mxu0 0.0
    %2102 = vmatpush1.msra.mxu0 0.0
    %2103 = vmatprep.subr.mxu0 0.0
    %2104 = vmatpush1.msra.mxu0 0.0
    %2105 = vmatprep.subr.mxu0 0.0
    %2106 = vmatpush1.msra.mxu0 %v59
    %2107 = vmatprep.subr.mxu0 0.0
    %2108 = vmatpush2.msra.mxu0 0.0
    %2109 = vmatprep.subr.mxu0 0.0
    %2110 = vmatpush2.msra.mxu0 0.0
    %2111 = vmatprep.subr.mxu0 0.0
    %2112 = vmatpush2.msra.mxu0 0.0
    %2113 = vmatprep.subr.mxu0 0.0
    %2114 = vmatpush2.msra.mxu0 0.0
    %2115 = vmatprep.subr.mxu0 0.0
    %2116 = vmatpush2.msra.mxu0 0.0
    %2117 = vmatprep.subr.mxu0 0.0
    %2118 = vmatpush2.msra.mxu0 0.0
    %2119 = vmatprep.subr.mxu0 0.0
    %2120 = vmatpush2.msra.mxu0 0.0
    %2121 = vmatprep.subr.mxu0 0.0
    %2122 = vmatpush2.msra.mxu0 0.0
    %2123 = vmatprep.subr.mxu0 0.0
    %2124 = vmatpush2.msra.mxu0 0.0
    %2125 = vmatprep.subr.mxu0 0.0
    %2126 = vmatpush2.msra.mxu0 0.0
    %2127 = vmatprep.subr.mxu0 0.0
    %2128 = vmatpush2.msra.mxu0 0.0
    %2129 = vmatprep.subr.mxu0 0.0
    %2130 = vmatpush2.msra.mxu0 0.0
    %2131 = vmatprep.subr.mxu0 0.0
    %2132 = vmatpush2.msra.mxu0 0.0
    %2133 = vmatprep.subr.mxu0 0.0
    %2134 = vmatpush2.msra.mxu0 0.0
    %2135 = vmatprep.subr.mxu0 0.0
    %2136 = vmatpush2.msra.mxu0 0.0
    %2137 = vmatprep.subr.mxu0 0.0
    %2138 = vmatpush2.msra.mxu0 0.0
    %2139 = vmatprep.mubr.f32.mxu0 0.0
    %2140 = vmatmul.mubr.f32.gmra.mxu0 %v2064
    %v2141 = vpop.f32.mrf.mxu0
    %v2142 = vadd.f32 0.0, %v2141
    %v2143 = vpop.f32.mrf.mxu0
    %2144 = vmatprep.mubr.f32.mxu0 0.0
    %2145 = vmatmul.mubr.f32.gmra.mxu0 %v2067
    %v2146 = vpop.f32.mrf.mxu0
    %v2147 = vadd.f32 0.0, %v2146
    %v2148 = vpop.f32.mrf.mxu0
    %2149 = vmatprep.mubr.f32.mxu0 0.0
    %2150 = vmatmul.mubr.f32.gmra.mxu0 %v2070
    %v2151 = vpop.f32.mrf.mxu0
    %v2152 = vadd.f32 0.0, %v2151
    %v2153 = vpop.f32.mrf.mxu0
    %2154 = vmatprep.mubr.f32.mxu0 0.0
    %2155 = vmatmul.mubr.f32.gmra.mxu0 %v2073
    %v2156 = vpop.f32.mrf.mxu0
    %v2157 = vadd.f32 0.0, %v2156
    %v2158 = vpop.f32.mrf.mxu0
    %2159 = vdwg.mxu0
    %v2160 = vadd.f32 %v1659, %v2142
    %v2161 = vadd.f32 %v1660, %v2147
    %v2162 = vadd.f32 %v1661, %v2152
    %v2163 = vadd.f32 %v1662, %v2157
    %v2164 = vlaneseq
    %v2165 = vshrl.u32 %v2164, 7
    %v2166 = vsub.s32 2, %v2165
    %v2167 = vrot.slane %v48, %v2166
    %v2168 = vadd.f32 %v2160, %v2167
    %v2169 = vadd.f32 %v2161, %v2167
    %v2170 = vadd.f32 %v2162, %v2167
    %v2171 = vadd.f32 %v2163, %v2167
    %v2172 = vadd.f32 %v42, %v2168
    %v2173 = vadd.f32 %v43, %v2169
    %v2174 = vadd.f32 %v44, %v2170
    %v2175 = vadd.f32 %v45, %v2171
    %v2176 = vsel %vm64, %v2172, 0.0
    %2177 = vadd.xlane.f32.xlu0 %v2176
    %v2178 = vpop.xlane.xlu0 %2177
    %v2179 = vsel %vm64, %v2173, 0.0
    %2180 = vadd.xlane.f32.xlu0 %v2179
    %v2181 = vpop.xlane.xlu0 %2180
    %v2182 = vsel %vm64, %v2174, 0.0
    %2183 = vadd.xlane.f32.xlu0 %v2182
    %v2184 = vpop.xlane.xlu0 %2183
    %v2185 = vsel %vm64, %v2175, 0.0
    %2186 = vadd.xlane.f32.xlu0 %v2185
    %v2187 = vpop.xlane.xlu0 %2186
    %v2188 = vrcp.pop 32.0
    %v2189 = vmul.f32 %v2178, %v2188
    %v2190 = vmul.f32 %v2181, %v2188
    %v2191 = vmul.f32 %v2184, %v2188
    %v2192 = vmul.f32 %v2187, %v2188
    %v2193 = vsub.f32 %v2172, %v2189
    %v2194 = vsub.f32 %v2173, %v2190
    %v2195 = vsub.f32 %v2174, %v2191
    %v2196 = vsub.f32 %v2175, %v2192
    %v2197 = vmul.f32 %v2193, %v2193
    %v2198 = vmul.f32 %v2194, %v2194
    %v2199 = vmul.f32 %v2195, %v2195
    %v2200 = vmul.f32 %v2196, %v2196
    %v2201 = vsel %vm64, %v2197, 0.0
    %2202 = vadd.xlane.f32.xlu0 %v2201
    %v2203 = vpop.xlane.xlu0 %2202
    %v2204 = vsel %vm64, %v2198, 0.0
    %2205 = vadd.xlane.f32.xlu0 %v2204
    %v2206 = vpop.xlane.xlu0 %2205
    %v2207 = vsel %vm64, %v2199, 0.0
    %2208 = vadd.xlane.f32.xlu0 %v2207
    %v2209 = vpop.xlane.xlu0 %2208
    %v2210 = vsel %vm64, %v2200, 0.0
    %2211 = vadd.xlane.f32.xlu0 %v2210
    %v2212 = vpop.xlane.xlu0 %2211
    %v2213 = vmul.f32 %v2203, %v2188
    %v2214 = vmul.f32 %v2206, %v2188
    %v2215 = vmul.f32 %v2209, %v2188
    %v2216 = vmul.f32 %v2212, %v2188
    %v2217 = vadd.f32 %v2213, 1e-05
    %v2218 = vadd.f32 %v2214, 1e-05
    %v2219 = vadd.f32 %v2215, 1e-05
    %v2220 = vadd.f32 %v2216, 1e-05
    %v2221 = vrsqrt.pop %v2217
    %v2222 = vrsqrt.pop %v2218
    %v2223 = vrsqrt.pop %v2219
    %v2224 = vrsqrt.pop %v2220
    %v2225 = vmul.f32 %v2193, %v2221
    %v2226 = vmul.f32 %v2194, %v2222
    %v2227 = vmul.f32 %v2195, %v2223
    %v2228 = vmul.f32 %v2196, %v2224
    %v2229 = vlaneseq
    %v2230 = vshrl.u32 %v2229, 7
    %v2231 = vsub.s32 4, %v2230
    %v2232 = vrot.slane %v48, %v2231
    %v2233 = vmul.f32 %v2225, %v2232
    %v2234 = vmul.f32 %v2226, %v2232
    %v2235 = vmul.f32 %v2227, %v2232
    %v2236 = vmul.f32 %v2228, %v2232
    %v2237 = vlaneseq
    %v2238 = vshrl.u32 %v2237, 7
    %v2239 = vsub.s32 5, %v2238
    %v2240 = vrot.slane %v48, %v2239
    %v2241 = vadd.f32 %v2233, %v2240
    %v2242 = vadd.f32 %v2234, %v2240
    %v2243 = vadd.f32 %v2235, %v2240
    %v2244 = vadd.f32 %v2236, %v2240
    %s2245 = scalar_lea.vmem %s4, %s49
    %v2246 = vld [vmem:[%s2245] sm:$0xff]
    %v2247 = vld [vmem:[%s2245 + $0x8] sm:$0xff]
    %v2248 = vld [vmem:[%s2245 + $0x10] sm:$0xff]
    %v2249 = vld [vmem:[%s2245 + $0x18] sm:$0xff]
    %v2250 = vlaneseq
    %v2251 = vshrl.u32 %v2250, 7
    %v2252 = vsub.s32 1, %v2251
    %v2253 = vrot.slane %v48, %v2252
    %v2255 = vsel %vm64, %v2241, 0
    %v2258 = vsel %vm64, %v2242, 0
    %v2261 = vsel %vm64, %v2243, 0
    %v2264 = vsel %vm64, %v2244, 0
    %2266 = vmatprep.subr.mxu0 0.0
    %2267 = vmatpush1.msra.mxu0 0.0
    %2268 = vmatprep.subr.mxu0 0.0
    %2269 = vmatpush1.msra.mxu0 0.0
    %2270 = vmatprep.subr.mxu0 0.0
    %2271 = vmatpush1.msra.mxu0 0.0
    %2272 = vmatprep.subr.mxu0 0.0
    %2273 = vmatpush1.msra.mxu0 0.0
    %2274 = vmatprep.subr.mxu0 0.0
    %2275 = vmatpush1.msra.mxu0 0.0
    %2276 = vmatprep.subr.mxu0 0.0
    %2277 = vmatpush1.msra.mxu0 0.0
    %2278 = vmatprep.subr.mxu0 0.0
    %2279 = vmatpush1.msra.mxu0 0.0
    %2280 = vmatprep.subr.mxu0 0.0
    %2281 = vmatpush1.msra.mxu0 0.0
    %2282 = vmatprep.subr.mxu0 0.0
    %2283 = vmatpush1.msra.mxu0 0.0
    %2284 = vmatprep.subr.mxu0 0.0
    %2285 = vmatpush1.msra.mxu0 0.0
    %2286 = vmatprep.subr.mxu0 0.0
    %2287 = vmatpush1.msra.mxu0 0.0
    %2288 = vmatprep.subr.mxu0 0.0
    %2289 = vmatpush1.msra.mxu0 0.0
    %2290 = vmatprep.subr.mxu0 0.0
    %2291 = vmatpush1.msra.mxu0 %v2249
    %2292 = vmatprep.subr.mxu0 0.0
    %2293 = vmatpush1.msra.mxu0 %v2248
    %2294 = vmatprep.subr.mxu0 0.0
    %2295 = vmatpush1.msra.mxu0 %v2247
    %2296 = vmatprep.subr.mxu0 0.0
    %2297 = vmatpush1.msra.mxu0 %v2246
    %2298 = vmatprep.subr.mxu0 0.0
    %2299 = vmatpush2.msra.mxu0 0.0
    %2300 = vmatprep.subr.mxu0 0.0
    %2301 = vmatpush2.msra.mxu0 0.0
    %2302 = vmatprep.subr.mxu0 0.0
    %2303 = vmatpush2.msra.mxu0 0.0
    %2304 = vmatprep.subr.mxu0 0.0
    %2305 = vmatpush2.msra.mxu0 0.0
    %2306 = vmatprep.subr.mxu0 0.0
    %2307 = vmatpush2.msra.mxu0 0.0
    %2308 = vmatprep.subr.mxu0 0.0
    %2309 = vmatpush2.msra.mxu0 0.0
    %2310 = vmatprep.subr.mxu0 0.0
    %2311 = vmatpush2.msra.mxu0 0.0
    %2312 = vmatprep.subr.mxu0 0.0
    %2313 = vmatpush2.msra.mxu0 0.0
    %2314 = vmatprep.subr.mxu0 0.0
    %2315 = vmatpush2.msra.mxu0 0.0
    %2316 = vmatprep.subr.mxu0 0.0
    %2317 = vmatpush2.msra.mxu0 0.0
    %2318 = vmatprep.subr.mxu0 0.0
    %2319 = vmatpush2.msra.mxu0 0.0
    %2320 = vmatprep.subr.mxu0 0.0
    %2321 = vmatpush2.msra.mxu0 0.0
    %2322 = vmatprep.subr.mxu0 0.0
    %2323 = vmatpush2.msra.mxu0 0.0
    %2324 = vmatprep.subr.mxu0 0.0
    %2325 = vmatpush2.msra.mxu0 0.0
    %2326 = vmatprep.subr.mxu0 0.0
    %2327 = vmatpush2.msra.mxu0 0.0
    %2328 = vmatprep.subr.mxu0 0.0
    %2329 = vmatpush2.msra.mxu0 0.0
    %2330 = vmatprep.mubr.f32.mxu0 0.0
    %2331 = vmatmul.mubr.f32.gmra.mxu0 %v2255
    %v2332 = vpop.f32.mrf.mxu0
    %v2333 = vadd.f32 %v2253, %v2332
    %v2334 = vpop.f32.mrf.mxu0
    %2335 = vmatprep.mubr.f32.mxu0 0.0
    %2336 = vmatmul.mubr.f32.gmra.mxu0 %v2258
    %v2337 = vpop.f32.mrf.mxu0
    %v2338 = vadd.f32 %v2253, %v2337
    %v2339 = vpop.f32.mrf.mxu0
    %2340 = vmatprep.mubr.f32.mxu0 0.0
    %2341 = vmatmul.mubr.f32.gmra.mxu0 %v2261
    %v2342 = vpop.f32.mrf.mxu0
    %v2343 = vadd.f32 %v2253, %v2342
    %v2344 = vpop.f32.mrf.mxu0
    %2345 = vmatprep.mubr.f32.mxu0 0.0
    %2346 = vmatmul.mubr.f32.gmra.mxu0 %v2264
    %v2347 = vpop.f32.mrf.mxu0
    %v2348 = vadd.f32 %v2253, %v2347
    %v2349 = vpop.f32.mrf.mxu0
    %2350 = vdwg.mxu0
    %v2351 = vmax.f32 %v2333, 0.0
    %v2352 = vmax.f32 %v2338, 0.0
    %v2353 = vmax.f32 %v2343, 0.0
    %v2354 = vmax.f32 %v2348, 0.0
    %s2355 = smul.u32 %s37, 64
    %s2356 = scalar_lea.vmem %s5, %s2355
    %v2357 = vld [vmem:[%s2356] sm:$0xff]
    %v2358 = vld [vmem:[%s2356 + $0x8] sm:$0xff]
    %v2359 = vld [vmem:[%s2356 + $0x10] sm:$0xff]
    %v2360 = vld [vmem:[%s2356 + $0x18] sm:$0xff]
    %v2361 = vld [vmem:[%s2356 + $0x20] sm:$0xff]
    %v2362 = vld [vmem:[%s2356 + $0x28] sm:$0xff]
    %v2363 = vld [vmem:[%s2356 + $0x30] sm:$0xff]
    %v2364 = vld [vmem:[%s2356 + $0x38] sm:$0xff]
    %v2365 = vlaneseq
    %v2366 = vshrl.u32 %v2365, 7
    %v2367 = vsub.s32 3, %v2366
    %v2368 = vrot.slane %v48, %v2367
    %vm2369 = vcmask 523264
    %v2371 = vsel %vm2369, %v2351, 0
    %v2374 = vsel %vm2369, %v2352, 0
    %v2377 = vsel %vm2369, %v2353, 0
    %v2380 = vsel %vm2369, %v2354, 0
    %2382 = vmatprep.subr.mxu0 0.0
    %2383 = vmatpush1.msra.mxu0 0.0
    %2384 = vmatprep.subr.mxu0 0.0
    %2385 = vmatpush1.msra.mxu0 0.0
    %2386 = vmatprep.subr.mxu0 0.0
    %2387 = vmatpush1.msra.mxu0 0.0
    %2388 = vmatprep.subr.mxu0 0.0
    %2389 = vmatpush1.msra.mxu0 0.0
    %2390 = vmatprep.subr.mxu0 0.0
    %2391 = vmatpush1.msra.mxu0 0.0
    %2392 = vmatprep.subr.mxu0 0.0
    %2393 = vmatpush1.msra.mxu0 0.0
    %2394 = vmatprep.subr.mxu0 0.0
    %2395 = vmatpush1.msra.mxu0 0.0
    %2396 = vmatprep.subr.mxu0 0.0
    %2397 = vmatpush1.msra.mxu0 0.0
    %2398 = vmatprep.subr.mxu0 0.0
    %2399 = vmatpush1.msra.mxu0 %v2364
    %2400 = vmatprep.subr.mxu0 0.0
    %2401 = vmatpush1.msra.mxu0 %v2363
    %2402 = vmatprep.subr.mxu0 0.0
    %2403 = vmatpush1.msra.mxu0 %v2362
    %2404 = vmatprep.subr.mxu0 0.0
    %2405 = vmatpush1.msra.mxu0 %v2361
    %2406 = vmatprep.subr.mxu0 0.0
    %2407 = vmatpush1.msra.mxu0 %v2360
    %2408 = vmatprep.subr.mxu0 0.0
    %2409 = vmatpush1.msra.mxu0 %v2359
    %2410 = vmatprep.subr.mxu0 0.0
    %2411 = vmatpush1.msra.mxu0 %v2358
    %2412 = vmatprep.subr.mxu0 0.0
    %2413 = vmatpush1.msra.mxu0 %v2357
    %2414 = vmatprep.subr.mxu0 0.0
    %2415 = vmatpush2.msra.mxu0 0.0
    %2416 = vmatprep.subr.mxu0 0.0
    %2417 = vmatpush2.msra.mxu0 0.0
    %2418 = vmatprep.subr.mxu0 0.0
    %2419 = vmatpush2.msra.mxu0 0.0
    %2420 = vmatprep.subr.mxu0 0.0
    %2421 = vmatpush2.msra.mxu0 0.0
    %2422 = vmatprep.subr.mxu0 0.0
    %2423 = vmatpush2.msra.mxu0 0.0
    %2424 = vmatprep.subr.mxu0 0.0
    %2425 = vmatpush2.msra.mxu0 0.0
    %2426 = vmatprep.subr.mxu0 0.0
    %2427 = vmatpush2.msra.mxu0 0.0
    %2428 = vmatprep.subr.mxu0 0.0
    %2429 = vmatpush2.msra.mxu0 0.0
    %2430 = vmatprep.subr.mxu0 0.0
    %2431 = vmatpush2.msra.mxu0 0.0
    %2432 = vmatprep.subr.mxu0 0.0
    %2433 = vmatpush2.msra.mxu0 0.0
    %2434 = vmatprep.subr.mxu0 0.0
    %2435 = vmatpush2.msra.mxu0 0.0
    %2436 = vmatprep.subr.mxu0 0.0
    %2437 = vmatpush2.msra.mxu0 0.0
    %2438 = vmatprep.subr.mxu0 0.0
    %2439 = vmatpush2.msra.mxu0 0.0
    %2440 = vmatprep.subr.mxu0 0.0
    %2441 = vmatpush2.msra.mxu0 0.0
    %2442 = vmatprep.subr.mxu0 0.0
    %2443 = vmatpush2.msra.mxu0 0.0
    %2444 = vmatprep.subr.mxu0 0.0
    %2445 = vmatpush2.msra.mxu0 0.0
    %2446 = vmatprep.mubr.f32.mxu0 0.0
    %2447 = vmatmul.mubr.f32.gmra.mxu0 %v2371
    %v2448 = vpop.f32.mrf.mxu0
    %v2449 = vadd.f32 %v2368, %v2448
    %v2450 = vpop.f32.mrf.mxu0
    %2451 = vmatprep.mubr.f32.mxu0 0.0
    %2452 = vmatmul.mubr.f32.gmra.mxu0 %v2374
    %v2453 = vpop.f32.mrf.mxu0
    %v2454 = vadd.f32 %v2368, %v2453
    %v2455 = vpop.f32.mrf.mxu0
    %2456 = vmatprep.mubr.f32.mxu0 0.0
    %2457 = vmatmul.mubr.f32.gmra.mxu0 %v2377
    %v2458 = vpop.f32.mrf.mxu0
    %v2459 = vadd.f32 %v2368, %v2458
    %v2460 = vpop.f32.mrf.mxu0
    %2461 = vmatprep.mubr.f32.mxu0 0.0
    %2462 = vmatmul.mubr.f32.gmra.mxu0 %v2380
    %v2463 = vpop.f32.mrf.mxu0
    %v2464 = vadd.f32 %v2368, %v2463
    %v2465 = vpop.f32.mrf.mxu0
    %2466 = vdwg.mxu0
    %v2467 = vadd.f32 %v2241, %v2449
    %v2468 = vadd.f32 %v2242, %v2454
    %v2469 = vadd.f32 %v2243, %v2459
    %v2470 = vadd.f32 %v2244, %v2464
    %v2471 = vsel %vm64, %v2467, 0.0
    %2472 = vadd.xlane.f32.xlu0 %v2471
    %v2473 = vpop.xlane.xlu0 %2472
    %v2474 = vsel %vm64, %v2468, 0.0
    %2475 = vadd.xlane.f32.xlu0 %v2474
    %v2476 = vpop.xlane.xlu0 %2475
    %v2477 = vsel %vm64, %v2469, 0.0
    %2478 = vadd.xlane.f32.xlu0 %v2477
    %v2479 = vpop.xlane.xlu0 %2478
    %v2480 = vsel %vm64, %v2470, 0.0
    %2481 = vadd.xlane.f32.xlu0 %v2480
    %v2482 = vpop.xlane.xlu0 %2481
    %v2483 = vmul.f32 %v2473, %v2188
    %v2484 = vmul.f32 %v2476, %v2188
    %v2485 = vmul.f32 %v2479, %v2188
    %v2486 = vmul.f32 %v2482, %v2188
    %v2487 = vsub.f32 %v2467, %v2483
    %v2488 = vsub.f32 %v2468, %v2484
    %v2489 = vsub.f32 %v2469, %v2485
    %v2490 = vsub.f32 %v2470, %v2486
    %v2491 = vmul.f32 %v2487, %v2487
    %v2492 = vmul.f32 %v2488, %v2488
    %v2493 = vmul.f32 %v2489, %v2489
    %v2494 = vmul.f32 %v2490, %v2490
    %v2495 = vsel %vm64, %v2491, 0.0
    %2496 = vadd.xlane.f32.xlu0 %v2495
    %v2497 = vpop.xlane.xlu0 %2496
    %v2498 = vsel %vm64, %v2492, 0.0
    %2499 = vadd.xlane.f32.xlu0 %v2498
    %v2500 = vpop.xlane.xlu0 %2499
    %v2501 = vsel %vm64, %v2493, 0.0
    %2502 = vadd.xlane.f32.xlu0 %v2501
    %v2503 = vpop.xlane.xlu0 %2502
    %v2504 = vsel %vm64, %v2494, 0.0
    %2505 = vadd.xlane.f32.xlu0 %v2504
    %v2506 = vpop.xlane.xlu0 %2505
    %v2507 = vmul.f32 %v2497, %v2188
    %v2508 = vmul.f32 %v2500, %v2188
    %v2509 = vmul.f32 %v2503, %v2188
    %v2510 = vmul.f32 %v2506, %v2188
    %v2511 = vadd.f32 %v2507, 1e-05
    %v2512 = vadd.f32 %v2508, 1e-05
    %v2513 = vadd.f32 %v2509, 1e-05
    %v2514 = vadd.f32 %v2510, 1e-05
    %v2515 = vrsqrt.pop %v2511
    %v2516 = vrsqrt.pop %v2512
    %v2517 = vrsqrt.pop %v2513
    %v2518 = vrsqrt.pop %v2514
    %v2519 = vmul.f32 %v2487, %v2515
    %v2520 = vmul.f32 %v2488, %v2516
    %v2521 = vmul.f32 %v2489, %v2517
    %v2522 = vmul.f32 %v2490, %v2518
    %v2523 = vlaneseq
    %v2524 = vshrl.u32 %v2523, 7
    %v2525 = vsub.s32 6, %v2524
    %v2526 = vrot.slane %v48, %v2525
    %v2527 = vmul.f32 %v2519, %v2526
    %v2528 = vmul.f32 %v2520, %v2526
    %v2529 = vmul.f32 %v2521, %v2526
    %v2530 = vmul.f32 %v2522, %v2526
    %v2531 = vlaneseq
    %v2532 = vshrl.u32 %v2531, 7
    %v2533 = vsub.s32 7, %v2532
    %v2534 = vrot.slane %v48, %v2533
    %v2535 = vadd.f32 %v2527, %v2534
    %v2536 = vadd.f32 %v2528, %v2534
    %v2537 = vadd.f32 %v2529, %v2534
    %v2538 = vadd.f32 %v2530, %v2534
  $region34: #{transformer_mlp_forward.1} parent=0 // loop_footer
    %s41 = sadd.s32 1, %s37
  $region35: #{transformer_mlp_forward.1} parent=0 // loop_footer_branch
    %36 = sbr.rel target = $region31
  $region36: #{transformer_mlp_forward.1} parent=0 // loop_exit
    _
  %s2539 = scalar_lea.vmem %s6, 32
  %v2540 = vld [vmem:[%s2539] sm:$0xff]
  %v2541 = vadd.f32 %v32, %v42
  %v2542 = vadd.f32 %v33, %v43
  %v2543 = vadd.f32 %v34, %v44
  %v2544 = vadd.f32 %v35, %v45
  %vm2545 = vcmask 261120
  %v2546 = vsel %vm2545, %v2541, 0.0
  %2547 = vadd.xlane.f32.xlu0 %v2546
  %v2548 = vpop.xlane.xlu0 %2547
  %v2549 = vsel %vm2545, %v2542, 0.0
  %2550 = vadd.xlane.f32.xlu0 %v2549
  %v2551 = vpop.xlane.xlu0 %2550
  %v2552 = vsel %vm2545, %v2543, 0.0
  %2553 = vadd.xlane.f32.xlu0 %v2552
  %v2554 = vpop.xlane.xlu0 %2553
  %v2555 = vsel %vm2545, %v2544, 0.0
  %2556 = vadd.xlane.f32.xlu0 %v2555
  %v2557 = vpop.xlane.xlu0 %2556
  %v2558 = vrcp.pop 32.0
  %v2559 = vmul.f32 %v2548, %v2558
  %v2560 = vmul.f32 %v2551, %v2558
  %v2561 = vmul.f32 %v2554, %v2558
  %v2562 = vmul.f32 %v2557, %v2558
  %v2563 = vsub.f32 %v2541, %v2559
  %v2564 = vsub.f32 %v2542, %v2560
  %v2565 = vsub.f32 %v2543, %v2561
  %v2566 = vsub.f32 %v2544, %v2562
  %v2567 = vmul.f32 %v2563, %v2563
  %v2568 = vmul.f32 %v2564, %v2564
  %v2569 = vmul.f32 %v2565, %v2565
  %v2570 = vmul.f32 %v2566, %v2566
  %v2571 = vsel %vm2545, %v2567, 0.0
  %2572 = vadd.xlane.f32.xlu0 %v2571
  %v2573 = vpop.xlane.xlu0 %2572
  %v2574 = vsel %vm2545, %v2568, 0.0
  %2575 = vadd.xlane.f32.xlu0 %v2574
  %v2576 = vpop.xlane.xlu0 %2575
  %v2577 = vsel %vm2545, %v2569, 0.0
  %2578 = vadd.xlane.f32.xlu0 %v2577
  %v2579 = vpop.xlane.xlu0 %2578
  %v2580 = vsel %vm2545, %v2570, 0.0
  %2581 = vadd.xlane.f32.xlu0 %v2580
  %v2582 = vpop.xlane.xlu0 %2581
  %v2583 = vmul.f32 %v2573, %v2558
  %v2584 = vmul.f32 %v2576, %v2558
  %v2585 = vmul.f32 %v2579, %v2558
  %v2586 = vmul.f32 %v2582, %v2558
  %v2587 = vadd.f32 %v2583, 1e-05
  %v2588 = vadd.f32 %v2584, 1e-05
  %v2589 = vadd.f32 %v2585, 1e-05
  %v2590 = vadd.f32 %v2586, 1e-05
  %v2591 = vrsqrt.pop %v2587
  %v2592 = vrsqrt.pop %v2588
  %v2593 = vrsqrt.pop %v2589
  %v2594 = vrsqrt.pop %v2590
  %v2595 = vmul.f32 %v2563, %v2591
  %v2596 = vmul.f32 %v2564, %v2592
  %v2597 = vmul.f32 %v2565, %v2593
  %v2598 = vmul.f32 %v2566, %v2594
  %v2599 = vlaneseq
  %v2600 = vshrl.u32 %v2599, 7
  %v2601 = vsub.s32 4, %v2600
  %v2602 = vrot.slane %v2540, %v2601
  %v2603 = vmul.f32 %v2595, %v2602
  %v2604 = vmul.f32 %v2596, %v2602
  %v2605 = vmul.f32 %v2597, %v2602
  %v2606 = vmul.f32 %v2598, %v2602
  %v2607 = vlaneseq
  %v2608 = vshrl.u32 %v2607, 7
  %v2609 = vsub.s32 5, %v2608
  %v2610 = vrot.slane %v2540, %v2609
  %v2611 = vadd.f32 %v2603, %v2610
  %v2612 = vadd.f32 %v2604, %v2610
  %v2613 = vadd.f32 %v2605, %v2610
  %v2614 = vadd.f32 %v2606, %v2610
  %s2615 = scalar_lea.vmem %s2, 128
  %v2616 = vld [vmem:[%s2615] sm:$0xff]
  %v2617 = vld [vmem:[%s2615 + $0x8] sm:$0xff]
  %v2618 = vld [vmem:[%s2615 + $0x10] sm:$0xff]
  %v2619 = vld [vmem:[%s2615 + $0x18] sm:$0xff]
  %s2620 = scalar_lea.vmem %s3, 128
  %v2621 = vld [vmem:[%s2620] sm:$0xff]
  %v2622 = vld [vmem:[%s2620 + $0x8] sm:$0xff]
  %v2623 = vld [vmem:[%s2620 + $0x10] sm:$0xff]
  %v2624 = vld [vmem:[%s2620 + $0x18] sm:$0xff]
  %v2625 = vlaneseq
  %v2626 = vshrl.u32 %v2625, 7
  %v2627 = vsub.s32 0, %v2626
  %v2628 = vrot.slane %v2540, %v2627
  %v2630 = vsel %vm2545, %v2611, 0
  %v2633 = vsel %vm2545, %v2612, 0
  %v2636 = vsel %vm2545, %v2613, 0
  %v2639 = vsel %vm2545, %v2614, 0
  %2641 = vmatprep.subr.mxu0 0.0
  %2642 = vmatpush1.msra.mxu0 0.0
  %2643 = vmatprep.subr.mxu0 0.0
  %2644 = vmatpush1.msra.mxu0 0.0
  %2645 = vmatprep.subr.mxu0 0.0
  %2646 = vmatpush1.msra.mxu0 0.0
  %2647 = vmatprep.subr.mxu0 0.0
  %2648 = vmatpush1.msra.mxu0 0.0
  %2649 = vmatprep.subr.mxu0 0.0
  %2650 = vmatpush1.msra.mxu0 0.0
  %2651 = vmatprep.subr.mxu0 0.0
  %2652 = vmatpush1.msra.mxu0 0.0
  %2653 = vmatprep.subr.mxu0 0.0
  %2654 = vmatpush1.msra.mxu0 0.0
  %2655 = vmatprep.subr.mxu0 0.0
  %2656 = vmatpush1.msra.mxu0 0.0
  %2657 = vmatprep.subr.mxu0 0.0
  %2658 = vmatpush1.msra.mxu0 0.0
  %2659 = vmatprep.subr.mxu0 0.0
  %2660 = vmatpush1.msra.mxu0 0.0
  %2661 = vmatprep.subr.mxu0 0.0
  %2662 = vmatpush1.msra.mxu0 0.0
  %2663 = vmatprep.subr.mxu0 0.0
  %2664 = vmatpush1.msra.mxu0 0.0
  %2665 = vmatprep.subr.mxu0 0.0
  %2666 = vmatpush1.msra.mxu0 %v2619
  %2667 = vmatprep.subr.mxu0 0.0
  %2668 = vmatpush1.msra.mxu0 %v2618
  %2669 = vmatprep.subr.mxu0 0.0
  %2670 = vmatpush1.msra.mxu0 %v2617
  %2671 = vmatprep.subr.mxu0 0.0
  %2672 = vmatpush1.msra.mxu0 %v2616
  %2673 = vmatprep.subr.mxu0 0.0
  %2674 = vmatpush2.msra.mxu0 0.0
  %2675 = vmatprep.subr.mxu0 0.0
  %2676 = vmatpush2.msra.mxu0 0.0
  %2677 = vmatprep.subr.mxu0 0.0
  %2678 = vmatpush2.msra.mxu0 0.0
  %2679 = vmatprep.subr.mxu0 0.0
  %2680 = vmatpush2.msra.mxu0 0.0
  %2681 = vmatprep.subr.mxu0 0.0
  %2682 = vmatpush2.msra.mxu0 0.0
  %2683 = vmatprep.subr.mxu0 0.0
  %2684 = vmatpush2.msra.mxu0 0.0
  %2685 = vmatprep.subr.mxu0 0.0
  %2686 = vmatpush2.msra.mxu0 0.0
  %2687 = vmatprep.subr.mxu0 0.0
  %2688 = vmatpush2.msra.mxu0 0.0
  %2689 = vmatprep.subr.mxu0 0.0
  %2690 = vmatpush2.msra.mxu0 0.0
  %2691 = vmatprep.subr.mxu0 0.0
  %2692 = vmatpush2.msra.mxu0 0.0
  %2693 = vmatprep.subr.mxu0 0.0
  %2694 = vmatpush2.msra.mxu0 0.0
  %2695 = vmatprep.subr.mxu0 0.0
  %2696 = vmatpush2.msra.mxu0 0.0
  %2697 = vmatprep.subr.mxu0 0.0
  %2698 = vmatpush2.msra.mxu0 0.0
  %2699 = vmatprep.subr.mxu0 0.0
  %2700 = vmatpush2.msra.mxu0 0.0
  %2701 = vmatprep.subr.mxu0 0.0
  %2702 = vmatpush2.msra.mxu0 0.0
  %2703 = vmatprep.subr.mxu0 0.0
  %2704 = vmatpush2.msra.mxu0 0.0
  %2705 = vmatprep.mubr.f32.mxu0 0.0
  %2706 = vmatmul.mubr.f32.gmra.mxu0 %v2630
  %v2707 = vpop.f32.mrf.mxu0
  %v2708 = vadd.f32 %v2628, %v2707
  %v2709 = vpop.f32.mrf.mxu0
  %2710 = vmatprep.mubr.f32.mxu0 0.0
  %2711 = vmatmul.mubr.f32.gmra.mxu0 %v2633
  %v2712 = vpop.f32.mrf.mxu0
  %v2713 = vadd.f32 %v2628, %v2712
  %v2714 = vpop.f32.mrf.mxu0
  %2715 = vmatprep.mubr.f32.mxu0 0.0
  %2716 = vmatmul.mubr.f32.gmra.mxu0 %v2636
  %v2717 = vpop.f32.mrf.mxu0
  %v2718 = vadd.f32 %v2628, %v2717
  %v2719 = vpop.f32.mrf.mxu0
  %2720 = vmatprep.mubr.f32.mxu0 0.0
  %2721 = vmatmul.mubr.f32.gmra.mxu0 %v2639
  %v2722 = vpop.f32.mrf.mxu0
  %v2723 = vadd.f32 %v2628, %v2722
  %v2724 = vpop.f32.mrf.mxu0
  %2725 = vdwg.mxu0
  %v2726 = vmul.f32 %v2708, 0.35355338
  %v2727 = vmul.f32 %v2713, 0.35355338
  %v2728 = vmul.f32 %v2718, 0.35355338
  %v2729 = vmul.f32 %v2723, 0.35355338
  %2732 = vrot.lane.b32.xlu0 %v2708, 96
  %v2733 = vpop.permute.xlu0 %2732
  %2734 = vrot.lane.b32.xlu0 %v2713, 96
  %v2735 = vpop.permute.xlu0 %2734
  %vm2736 = vcmask 64512
  %v2738 = vsel %vm2736, %v2726, 0
  %v2741 = vsel %vm2736, %v2727, 0
  %v2743 = vsel %vm2736, %v2733, 0
  %v2745 = vsel %vm2736, %v2735, 0
  %2747 = vmatprep.subr.mxu0 0.0
  %2748 = vmatpush1.xpose.msra.mxu0 0.0
  %2749 = vmatprep.subr.mxu0 0.0
  %2750 = vmatpush1.xpose.msra.mxu0 0.0
  %2751 = vmatprep.subr.mxu0 0.0
  %2752 = vmatpush1.xpose.msra.mxu0 0.0
  %2753 = vmatprep.subr.mxu0 0.0
  %2754 = vmatpush1.xpose.msra.mxu0 0.0
  %2755 = vmatprep.subr.mxu0 0.0
  %2756 = vmatpush1.xpose.msra.mxu0 0.0
  %2757 = vmatprep.subr.mxu0 0.0
  %2758 = vmatpush1.xpose.msra.mxu0 0.0
  %2759 = vmatprep.subr.mxu0 0.0
  %2760 = vmatpush1.xpose.msra.mxu0 0.0
  %2761 = vmatprep.subr.mxu0 0.0
  %2762 = vmatpush1.xpose.msra.mxu0 0.0
  %2763 = vmatprep.subr.mxu0 0.0
  %2764 = vmatpush1.xpose.msra.mxu0 0.0
  %2765 = vmatprep.subr.mxu0 0.0
  %2766 = vmatpush1.xpose.msra.mxu0 0.0
  %2767 = vmatprep.subr.mxu0 0.0
  %2768 = vmatpush1.xpose.msra.mxu0 0.0
  %2769 = vmatprep.subr.mxu0 0.0
  %2770 = vmatpush1.xpose.msra.mxu0 0.0
  %2771 = vmatprep.subr.mxu0 0.0
  %2772 = vmatpush1.xpose.msra.mxu0 0.0
  %2773 = vmatprep.subr.mxu0 0.0
  %2774 = vmatpush1.xpose.msra.mxu0 0.0
  %2775 = vmatprep.subr.mxu0 0.0
  %2776 = vmatpush1.xpose.msra.mxu0 %v2745
  %2777 = vmatprep.subr.mxu0 0.0
  %2778 = vmatpush1.xpose.msra.mxu0 %v2743
  %2779 = vmatprep.subr.mxu0 0.0
  %2780 = vmatpush2.xpose.msra.mxu0 0.0
  %2781 = vmatprep.subr.mxu0 0.0
  %2782 = vmatpush2.xpose.msra.mxu0 0.0
  %2783 = vmatprep.subr.mxu0 0.0
  %2784 = vmatpush2.xpose.msra.mxu0 0.0
  %2785 = vmatprep.subr.mxu0 0.0
  %2786 = vmatpush2.xpose.msra.mxu0 0.0
  %2787 = vmatprep.subr.mxu0 0.0
  %2788 = vmatpush2.xpose.msra.mxu0 0.0
  %2789 = vmatprep.subr.mxu0 0.0
  %2790 = vmatpush2.xpose.msra.mxu0 0.0
  %2791 = vmatprep.subr.mxu0 0.0
  %2792 = vmatpush2.xpose.msra.mxu0 0.0
  %2793 = vmatprep.subr.mxu0 0.0
  %2794 = vmatpush2.xpose.msra.mxu0 0.0
  %2795 = vmatprep.subr.mxu0 0.0
  %2796 = vmatpush2.xpose.msra.mxu0 0.0
  %2797 = vmatprep.subr.mxu0 0.0
  %2798 = vmatpush2.xpose.msra.mxu0 0.0
  %2799 = vmatprep.subr.mxu0 0.0
  %2800 = vmatpush2.xpose.msra.mxu0 0.0
  %2801 = vmatprep.subr.mxu0 0.0
  %2802 = vmatpush2.xpose.msra.mxu0 0.0
  %2803 = vmatprep.subr.mxu0 0.0
  %2804 = vmatpush2.xpose.msra.mxu0 0.0
  %2805 = vmatprep.subr.mxu0 0.0
  %2806 = vmatpush2.xpose.msra.mxu0 0.0
  %2807 = vmatprep.subr.mxu0 0.0
  %2808 = vmatpush2.xpose.msra.mxu0 0.0
  %2809 = vmatprep.subr.mxu0 0.0
  %2810 = vmatpush2.xpose.msra.mxu0 0.0
  %2811 = vmatprep.mubr.f32.mxu0 0.0
  %2812 = vmatmul.mubr.f32.gmra.mxu0 %v2738
  %v2813 = vpop.f32.mrf.mxu0
  %v2814 = vadd.f32 0.0, %v2813
  %v2815 = vpop.f32.mrf.mxu0
  %2816 = vmatprep.mubr.f32.mxu0 0.0
  %2817 = vmatmul.mubr.f32.gmra.mxu0 %v2741
  %v2818 = vpop.f32.mrf.mxu0
  %v2819 = vadd.f32 0.0, %v2818
  %v2820 = vpop.f32.mrf.mxu0
  %2821 = vdwg.mxu0
  %2824 = vrot.lane.b32.xlu0 %v2718, 96
  %v2825 = vpop.permute.xlu0 %2824
  %2826 = vrot.lane.b32.xlu0 %v2723, 96
  %v2827 = vpop.permute.xlu0 %2826
  %v2829 = vsel %vm2736, %v2728, 0
  %v2832 = vsel %vm2736, %v2729, 0
  %v2834 = vsel %vm2736, %v2825, 0
  %v2836 = vsel %vm2736, %v2827, 0
  %2838 = vmatprep.subr.mxu0 0.0
  %2839 = vmatpush1.xpose.msra.mxu0 0.0
  %2840 = vmatprep.subr.mxu0 0.0
  %2841 = vmatpush1.xpose.msra.mxu0 0.0
  %2842 = vmatprep.subr.mxu0 0.0
  %2843 = vmatpush1.xpose.msra.mxu0 0.0
  %2844 = vmatprep.subr.mxu0 0.0
  %2845 = vmatpush1.xpose.msra.mxu0 0.0
  %2846 = vmatprep.subr.mxu0 0.0
  %2847 = vmatpush1.xpose.msra.mxu0 0.0
  %2848 = vmatprep.subr.mxu0 0.0
  %2849 = vmatpush1.xpose.msra.mxu0 0.0
  %2850 = vmatprep.subr.mxu0 0.0
  %2851 = vmatpush1.xpose.msra.mxu0 0.0
  %2852 = vmatprep.subr.mxu0 0.0
  %2853 = vmatpush1.xpose.msra.mxu0 0.0
  %2854 = vmatprep.subr.mxu0 0.0
  %2855 = vmatpush1.xpose.msra.mxu0 0.0
  %2856 = vmatprep.subr.mxu0 0.0
  %2857 = vmatpush1.xpose.msra.mxu0 0.0
  %2858 = vmatprep.subr.mxu0 0.0
  %2859 = vmatpush1.xpose.msra.mxu0 0.0
  %2860 = vmatprep.subr.mxu0 0.0
  %2861 = vmatpush1.xpose.msra.mxu0 0.0
  %2862 = vmatprep.subr.mxu0 0.0
  %2863 = vmatpush1.xpose.msra.mxu0 0.0
  %2864 = vmatprep.subr.mxu0 0.0
  %2865 = vmatpush1.xpose.msra.mxu0 0.0
  %2866 = vmatprep.subr.mxu0 0.0
  %2867 = vmatpush1.xpose.msra.mxu0 %v2836
  %2868 = vmatprep.subr.mxu0 0.0
  %2869 = vmatpush1.xpose.msra.mxu0 %v2834
  %2870 = vmatprep.subr.mxu0 0.0
  %2871 = vmatpush2.xpose.msra.mxu0 0.0
  %2872 = vmatprep.subr.mxu0 0.0
  %2873 = vmatpush2.xpose.msra.mxu0 0.0
  %2874 = vmatprep.subr.mxu0 0.0
  %2875 = vmatpush2.xpose.msra.mxu0 0.0
  %2876 = vmatprep.subr.mxu0 0.0
  %2877 = vmatpush2.xpose.msra.mxu0 0.0
  %2878 = vmatprep.subr.mxu0 0.0
  %2879 = vmatpush2.xpose.msra.mxu0 0.0
  %2880 = vmatprep.subr.mxu0 0.0
  %2881 = vmatpush2.xpose.msra.mxu0 0.0
  %2882 = vmatprep.subr.mxu0 0.0
  %2883 = vmatpush2.xpose.msra.mxu0 0.0
  %2884 = vmatprep.subr.mxu0 0.0
  %2885 = vmatpush2.xpose.msra.mxu0 0.0
  %2886 = vmatprep.subr.mxu0 0.0
  %2887 = vmatpush2.xpose.msra.mxu0 0.0
  %2888 = vmatprep.subr.mxu0 0.0
  %2889 = vmatpush2.xpose.msra.mxu0 0.0
  %2890 = vmatprep.subr.mxu0 0.0
  %2891 = vmatpush2.xpose.msra.mxu0 0.0
  %2892 = vmatprep.subr.mxu0 0.0
  %2893 = vmatpush2.xpose.msra.mxu0 0.0
  %2894 = vmatprep.subr.mxu0 0.0
  %2895 = vmatpush2.xpose.msra.mxu0 0.0
  %2896 = vmatprep.subr.mxu0 0.0
  %2897 = vmatpush2.xpose.msra.mxu0 0.0
  %2898 = vmatprep.subr.mxu0 0.0
  %2899 = vmatpush2.xpose.msra.mxu0 0.0
  %2900 = vmatprep.subr.mxu0 0.0
  %2901 = vmatpush2.xpose.msra.mxu0 0.0
  %2902 = vmatprep.mubr.f32.mxu0 0.0
  %2903 = vmatmul.mubr.f32.gmra.mxu0 %v2829
  %v2904 = vpop.f32.mrf.mxu0
  %v2905 = vadd.f32 0.0, %v2904
  %v2906 = vpop.f32.mrf.mxu0
  %2907 = vmatprep.mubr.f32.mxu0 0.0
  %2908 = vmatmul.mubr.f32.gmra.mxu0 %v2832
  %v2909 = vpop.f32.mrf.mxu0
  %v2910 = vadd.f32 0.0, %v2909
  %v2911 = vpop.f32.mrf.mxu0
  %2912 = vdwg.mxu0
  %vm2913 = vcmask 130048
  %v2914 = vsel %vm2913, %v2814, -inf
  %2915 = vmax.xlane.f32.xlu0 %v2914
  %v2916 = vpop.xlane.xlu0 %2915
  %v2917 = vsel %vm2913, %v2819, -inf
  %2918 = vmax.xlane.f32.xlu0 %v2917
  %v2919 = vpop.xlane.xlu0 %2918
  %v2920 = vsel %vm2913, %v2905, -inf
  %2921 = vmax.xlane.f32.xlu0 %v2920
  %v2922 = vpop.xlane.xlu0 %2921
  %v2923 = vsel %vm2913, %v2910, -inf
  %2924 = vmax.xlane.f32.xlu0 %v2923
  %v2925 = vpop.xlane.xlu0 %2924
  %v2926 = vsub.f32 %v2814, %v2916
  %v2927 = vsub.f32 %v2819, %v2919
  %v2928 = vsub.f32 %v2905, %v2922
  %v2929 = vsub.f32 %v2910, %v2925
  %v2930 = vmul.f32 %v2926, 1.442695
  %v2931 = vpow.pop %v2930
  %v2932 = vmul.f32 %v2927, 1.442695
  %v2933 = vpow.pop %v2932
  %v2934 = vmul.f32 %v2928, 1.442695
  %v2935 = vpow.pop %v2934
  %v2936 = vmul.f32 %v2929, 1.442695
  %v2937 = vpow.pop %v2936
  %v2938 = vsel %vm2913, %v2931, 0.0
  %2939 = vadd.xlane.f32.xlu0 %v2938
  %v2940 = vpop.xlane.xlu0 %2939
  %v2941 = vsel %vm2913, %v2933, 0.0
  %2942 = vadd.xlane.f32.xlu0 %v2941
  %v2943 = vpop.xlane.xlu0 %2942
  %v2944 = vsel %vm2913, %v2935, 0.0
  %2945 = vadd.xlane.f32.xlu0 %v2944
  %v2946 = vpop.xlane.xlu0 %2945
  %v2947 = vsel %vm2913, %v2937, 0.0
  %2948 = vadd.xlane.f32.xlu0 %v2947
  %v2949 = vpop.xlane.xlu0 %2948
  %v2950 = vrcp.pop %v2940
  %v2951 = vrcp.pop %v2943
  %v2952 = vrcp.pop %v2946
  %v2953 = vrcp.pop %v2949
  %v2954 = vmul.f32 %v2931, %v2950
  %v2955 = vmul.f32 %v2933, %v2951
  %v2956 = vmul.f32 %v2935, %v2952
  %v2957 = vmul.f32 %v2937, %v2953
  %2958 = vrot.lane.b32.xlu0 %v2708, 64
  %v2959 = vpop.permute.xlu0 %2958
  %2960 = vrot.lane.b32.xlu0 %v2713, 64
  %v2961 = vpop.permute.xlu0 %2960
  %v2965 = vsel %vm2913, %v2954, 0
  %v2968 = vsel %vm2913, %v2955, 0
  %2970 = vmatprep.subr.mxu0 0.0
  %2971 = vmatpush1.msra.mxu0 0.0
  %2972 = vmatprep.subr.mxu0 0.0
  %2973 = vmatpush1.msra.mxu0 0.0
  %2974 = vmatprep.subr.mxu0 0.0
  %2975 = vmatpush1.msra.mxu0 0.0
  %2976 = vmatprep.subr.mxu0 0.0
  %2977 = vmatpush1.msra.mxu0 0.0
  %2978 = vmatprep.subr.mxu0 0.0
  %2979 = vmatpush1.msra.mxu0 0.0
  %2980 = vmatprep.subr.mxu0 0.0
  %2981 = vmatpush1.msra.mxu0 0.0
  %2982 = vmatprep.subr.mxu0 0.0
  %2983 = vmatpush1.msra.mxu0 0.0
  %2984 = vmatprep.subr.mxu0 0.0
  %2985 = vmatpush1.msra.mxu0 0.0
  %2986 = vmatprep.subr.mxu0 0.0
  %2987 = vmatpush1.msra.mxu0 0.0
  %2988 = vmatprep.subr.mxu0 0.0
  %2989 = vmatpush1.msra.mxu0 0.0
  %2990 = vmatprep.subr.mxu0 0.0
  %2991 = vmatpush1.msra.mxu0 0.0
  %2992 = vmatprep.subr.mxu0 0.0
  %2993 = vmatpush1.msra.mxu0 0.0
  %2994 = vmatprep.subr.mxu0 0.0
  %2995 = vmatpush1.msra.mxu0 0.0
  %2996 = vmatprep.subr.mxu0 0.0
  %2997 = vmatpush1.msra.mxu0 0.0
  %2998 = vmatprep.subr.mxu0 0.0
  %2999 = vmatpush1.msra.mxu0 %v2961
  %3000 = vmatprep.subr.mxu0 0.0
  %3001 = vmatpush1.msra.mxu0 %v2959
  %3002 = vmatprep.subr.mxu0 0.0
  %3003 = vmatpush2.msra.mxu0 0.0
  %3004 = vmatprep.subr.mxu0 0.0
  %3005 = vmatpush2.msra.mxu0 0.0
  %3006 = vmatprep.subr.mxu0 0.0
  %3007 = vmatpush2.msra.mxu0 0.0
  %3008 = vmatprep.subr.mxu0 0.0
  %3009 = vmatpush2.msra.mxu0 0.0
  %3010 = vmatprep.subr.mxu0 0.0
  %3011 = vmatpush2.msra.mxu0 0.0
  %3012 = vmatprep.subr.mxu0 0.0
  %3013 = vmatpush2.msra.mxu0 0.0
  %3014 = vmatprep.subr.mxu0 0.0
  %3015 = vmatpush2.msra.mxu0 0.0
  %3016 = vmatprep.subr.mxu0 0.0
  %3017 = vmatpush2.msra.mxu0 0.0
  %3018 = vmatprep.subr.mxu0 0.0
  %3019 = vmatpush2.msra.mxu0 0.0
  %3020 = vmatprep.subr.mxu0 0.0
  %3021 = vmatpush2.msra.mxu0 0.0
  %3022 = vmatprep.subr.mxu0 0.0
  %3023 = vmatpush2.msra.mxu0 0.0
  %3024 = vmatprep.subr.mxu0 0.0
  %3025 = vmatpush2.msra.mxu0 0.0
  %3026 = vmatprep.subr.mxu0 0.0
  %3027 = vmatpush2.msra.mxu0 0.0
  %3028 = vmatprep.subr.mxu0 0.0
  %3029 = vmatpush2.msra.mxu0 0.0
  %3030 = vmatprep.subr.mxu0 0.0
  %3031 = vmatpush2.msra.mxu0 0.0
  %3032 = vmatprep.subr.mxu0 0.0
  %3033 = vmatpush2.msra.mxu0 0.0
  %3034 = vmatprep.mubr.f32.mxu0 0.0
  %3035 = vmatmul.mubr.f32.gmra.mxu0 %v2965
  %v3036 = vpop.f32.mrf.mxu0
  %v3037 = vadd.f32 0.0, %v3036
  %v3038 = vpop.f32.mrf.mxu0
  %3039 = vmatprep.mubr.f32.mxu0 0.0
  %3040 = vmatmul.mubr.f32.gmra.mxu0 %v2968
  %v3041 = vpop.f32.mrf.mxu0
  %v3042 = vadd.f32 0.0, %v3041
  %v3043 = vpop.f32.mrf.mxu0
  %3044 = vdwg.mxu0
  %3045 = vrot.lane.b32.xlu0 %v2718, 64
  %v3046 = vpop.permute.xlu0 %3045
  %3047 = vrot.lane.b32.xlu0 %v2723, 64
  %v3048 = vpop.permute.xlu0 %3047
  %v3052 = vsel %vm2913, %v2956, 0
  %v3055 = vsel %vm2913, %v2957, 0
  %3057 = vmatprep.subr.mxu0 0.0
  %3058 = vmatpush1.msra.mxu0 0.0
  %3059 = vmatprep.subr.mxu0 0.0
  %3060 = vmatpush1.msra.mxu0 0.0
  %3061 = vmatprep.subr.mxu0 0.0
  %3062 = vmatpush1.msra.mxu0 0.0
  %3063 = vmatprep.subr.mxu0 0.0
  %3064 = vmatpush1.msra.mxu0 0.0
  %3065 = vmatprep.subr.mxu0 0.0
  %3066 = vmatpush1.msra.mxu0 0.0
  %3067 = vmatprep.subr.mxu0 0.0
  %3068 = vmatpush1.msra.mxu0 0.0
  %3069 = vmatprep.subr.mxu0 0.0
  %3070 = vmatpush1.msra.mxu0 0.0
  %3071 = vmatprep.subr.mxu0 0.0
  %3072 = vmatpush1.msra.mxu0 0.0
  %3073 = vmatprep.subr.mxu0 0.0
  %3074 = vmatpush1.msra.mxu0 0.0
  %3075 = vmatprep.subr.mxu0 0.0
  %3076 = vmatpush1.msra.mxu0 0.0
  %3077 = vmatprep.subr.mxu0 0.0
  %3078 = vmatpush1.msra.mxu0 0.0
  %3079 = vmatprep.subr.mxu0 0.0
  %3080 = vmatpush1.msra.mxu0 0.0
  %3081 = vmatprep.subr.mxu0 0.0
  %3082 = vmatpush1.msra.mxu0 0.0
  %3083 = vmatprep.subr.mxu0 0.0
  %3084 = vmatpush1.msra.mxu0 0.0
  %3085 = vmatprep.subr.mxu0 0.0
  %3086 = vmatpush1.msra.mxu0 %v3048
  %3087 = vmatprep.subr.mxu0 0.0
  %3088 = vmatpush1.msra.mxu0 %v3046
  %3089 = vmatprep.subr.mxu0 0.0
  %3090 = vmatpush2.msra.mxu0 0.0
  %3091 = vmatprep.subr.mxu0 0.0
  %3092 = vmatpush2.msra.mxu0 0.0
  %3093 = vmatprep.subr.mxu0 0.0
  %3094 = vmatpush2.msra.mxu0 0.0
  %3095 = vmatprep.subr.mxu0 0.0
  %3096 = vmatpush2.msra.mxu0 0.0
  %3097 = vmatprep.subr.mxu0 0.0
  %3098 = vmatpush2.msra.mxu0 0.0
  %3099 = vmatprep.subr.mxu0 0.0
  %3100 = vmatpush2.msra.mxu0 0.0
  %3101 = vmatprep.subr.mxu0 0.0
  %3102 = vmatpush2.msra.mxu0 0.0
  %3103 = vmatprep.subr.mxu0 0.0
  %3104 = vmatpush2.msra.mxu0 0.0
  %3105 = vmatprep.subr.mxu0 0.0
  %3106 = vmatpush2.msra.mxu0 0.0
  %3107 = vmatprep.subr.mxu0 0.0
  %3108 = vmatpush2.msra.mxu0 0.0
  %3109 = vmatprep.subr.mxu0 0.0
  %3110 = vmatpush2.msra.mxu0 0.0
  %3111 = vmatprep.subr.mxu0 0.0
  %3112 = vmatpush2.msra.mxu0 0.0
  %3113 = vmatprep.subr.mxu0 0.0
  %3114 = vmatpush2.msra.mxu0 0.0
  %3115 = vmatprep.subr.mxu0 0.0
  %3116 = vmatpush2.msra.mxu0 0.0
  %3117 = vmatprep.subr.mxu0 0.0
  %3118 = vmatpush2.msra.mxu0 0.0
  %3119 = vmatprep.subr.mxu0 0.0
  %3120 = vmatpush2.msra.mxu0 0.0
  %3121 = vmatprep.mubr.f32.mxu0 0.0
  %3122 = vmatmul.mubr.f32.gmra.mxu0 %v3052
  %v3123 = vpop.f32.mrf.mxu0
  %v3124 = vadd.f32 0.0, %v3123
  %v3125 = vpop.f32.mrf.mxu0
  %3126 = vmatprep.mubr.f32.mxu0 0.0
  %3127 = vmatmul.mubr.f32.gmra.mxu0 %v3055
  %v3128 = vpop.f32.mrf.mxu0
  %v3129 = vadd.f32 0.0, %v3128
  %v3130 = vpop.f32.mrf.mxu0
  %3131 = vdwg.mxu0
  %3132 = vrot.lane.b32.xlu0 %v2726, 120
  %v3133 = vpop.permute.xlu0 %3132
  %3134 = vrot.lane.b32.xlu0 %v2727, 120
  %v3135 = vpop.permute.xlu0 %3134
  %3136 = vrot.lane.b32.xlu0 %v2708, 88
  %v3137 = vpop.permute.xlu0 %3136
  %3138 = vrot.lane.b32.xlu0 %v2713, 88
  %v3139 = vpop.permute.xlu0 %3138
  %v3140 = vsel %vm2736, %v3133, 0
  %v3142 = vsel %vm2736, %v3135, 0
  %v3144 = vsel %vm2736, %v3137, 0
  %v3146 = vsel %vm2736, %v3139, 0
  %3148 = vmatprep.subr.mxu0 0.0
  %3149 = vmatpush1.xpose.msra.mxu0 0.0
  %3150 = vmatprep.subr.mxu0 0.0
  %3151 = vmatpush1.xpose.msra.mxu0 0.0
  %3152 = vmatprep.subr.mxu0 0.0
  %3153 = vmatpush1.xpose.msra.mxu0 0.0
  %3154 = vmatprep.subr.mxu0 0.0
  %3155 = vmatpush1.xpose.msra.mxu0 0.0
  %3156 = vmatprep.subr.mxu0 0.0
  %3157 = vmatpush1.xpose.msra.mxu0 0.0
  %3158 = vmatprep.subr.mxu0 0.0
  %3159 = vmatpush1.xpose.msra.mxu0 0.0
  %3160 = vmatprep.subr.mxu0 0.0
  %3161 = vmatpush1.xpose.msra.mxu0 0.0
  %3162 = vmatprep.subr.mxu0 0.0
  %3163 = vmatpush1.xpose.msra.mxu0 0.0
  %3164 = vmatprep.subr.mxu0 0.0
  %3165 = vmatpush1.xpose.msra.mxu0 0.0
  %3166 = vmatprep.subr.mxu0 0.0
  %3167 = vmatpush1.xpose.msra.mxu0 0.0
  %3168 = vmatprep.subr.mxu0 0.0
  %3169 = vmatpush1.xpose.msra.mxu0 0.0
  %3170 = vmatprep.subr.mxu0 0.0
  %3171 = vmatpush1.xpose.msra.mxu0 0.0
  %3172 = vmatprep.subr.mxu0 0.0
  %3173 = vmatpush1.xpose.msra.mxu0 0.0
  %3174 = vmatprep.subr.mxu0 0.0
  %3175 = vmatpush1.xpose.msra.mxu0 0.0
  %3176 = vmatprep.subr.mxu0 0.0
  %3177 = vmatpush1.xpose.msra.mxu0 %v3146
  %3178 = vmatprep.subr.mxu0 0.0
  %3179 = vmatpush1.xpose.msra.mxu0 %v3144
  %3180 = vmatprep.subr.mxu0 0.0
  %3181 = vmatpush2.xpose.msra.mxu0 0.0
  %3182 = vmatprep.subr.mxu0 0.0
  %3183 = vmatpush2.xpose.msra.mxu0 0.0
  %3184 = vmatprep.subr.mxu0 0.0
  %3185 = vmatpush2.xpose.msra.mxu0 0.0
  %3186 = vmatprep.subr.mxu0 0.0
  %3187 = vmatpush2.xpose.msra.mxu0 0.0
  %3188 = vmatprep.subr.mxu0 0.0
  %3189 = vmatpush2.xpose.msra.mxu0 0.0
  %3190 = vmatprep.subr.mxu0 0.0
  %3191 = vmatpush2.xpose.msra.mxu0 0.0
  %3192 = vmatprep.subr.mxu0 0.0
  %3193 = vmatpush2.xpose.msra.mxu0 0.0
  %3194 = vmatprep.subr.mxu0 0.0
  %3195 = vmatpush2.xpose.msra.mxu0 0.0
  %3196 = vmatprep.subr.mxu0 0.0
  %3197 = vmatpush2.xpose.msra.mxu0 0.0
  %3198 = vmatprep.subr.mxu0 0.0
  %3199 = vmatpush2.xpose.msra.mxu0 0.0
  %3200 = vmatprep.subr.mxu0 0.0
  %3201 = vmatpush2.xpose.msra.mxu0 0.0
  %3202 = vmatprep.subr.mxu0 0.0
  %3203 = vmatpush2.xpose.msra.mxu0 0.0
  %3204 = vmatprep.subr.mxu0 0.0
  %3205 = vmatpush2.xpose.msra.mxu0 0.0
  %3206 = vmatprep.subr.mxu0 0.0
  %3207 = vmatpush2.xpose.msra.mxu0 0.0
  %3208 = vmatprep.subr.mxu0 0.0
  %3209 = vmatpush2.xpose.msra.mxu0 0.0
  %3210 = vmatprep.subr.mxu0 0.0
  %3211 = vmatpush2.xpose.msra.mxu0 0.0
  %3212 = vmatprep.mubr.f32.mxu0 0.0
  %3213 = vmatmul.mubr.f32.gmra.mxu0 %v3140
  %v3214 = vpop.f32.mrf.mxu0
  %v3215 = vadd.f32 0.0, %v3214
  %v3216 = vpop.f32.mrf.mxu0
  %3217 = vmatprep.mubr.f32.mxu0 0.0
  %3218 = vmatmul.mubr.f32.gmra.mxu0 %v3142
  %v3219 = vpop.f32.mrf.mxu0
  %v3220 = vadd.f32 0.0, %v3219
  %v3221 = vpop.f32.mrf.mxu0
  %3222 = vdwg.mxu0
  %3223 = vrot.lane.b32.xlu0 %v2728, 120
  %v3224 = vpop.permute.xlu0 %3223
  %3225 = vrot.lane.b32.xlu0 %v2729, 120
  %v3226 = vpop.permute.xlu0 %3225
  %3227 = vrot.lane.b32.xlu0 %v2718, 88
  %v3228 = vpop.permute.xlu0 %3227
  %3229 = vrot.lane.b32.xlu0 %v2723, 88
  %v3230 = vpop.permute.xlu0 %3229
  %v3231 = vsel %vm2736, %v3224, 0
  %v3233 = vsel %vm2736, %v3226, 0
  %v3235 = vsel %vm2736, %v3228, 0
  %v3237 = vsel %vm2736, %v3230, 0
  %3239 = vmatprep.subr.mxu0 0.0
  %3240 = vmatpush1.xpose.msra.mxu0 0.0
  %3241 = vmatprep.subr.mxu0 0.0
  %3242 = vmatpush1.xpose.msra.mxu0 0.0
  %3243 = vmatprep.subr.mxu0 0.0
  %3244 = vmatpush1.xpose.msra.mxu0 0.0
  %3245 = vmatprep.subr.mxu0 0.0
  %3246 = vmatpush1.xpose.msra.mxu0 0.0
  %3247 = vmatprep.subr.mxu0 0.0
  %3248 = vmatpush1.xpose.msra.mxu0 0.0
  %3249 = vmatprep.subr.mxu0 0.0
  %3250 = vmatpush1.xpose.msra.mxu0 0.0
  %3251 = vmatprep.subr.mxu0 0.0
  %3252 = vmatpush1.xpose.msra.mxu0 0.0
  %3253 = vmatprep.subr.mxu0 0.0
  %3254 = vmatpush1.xpose.msra.mxu0 0.0
  %3255 = vmatprep.subr.mxu0 0.0
  %3256 = vmatpush1.xpose.msra.mxu0 0.0
  %3257 = vmatprep.subr.mxu0 0.0
  %3258 = vmatpush1.xpose.msra.mxu0 0.0
  %3259 = vmatprep.subr.mxu0 0.0
  %3260 = vmatpush1.xpose.msra.mxu0 0.0
  %3261 = vmatprep.subr.mxu0 0.0
  %3262 = vmatpush1.xpose.msra.mxu0 0.0
  %3263 = vmatprep.subr.mxu0 0.0
  %3264 = vmatpush1.xpose.msra.mxu0 0.0
  %3265 = vmatprep.subr.mxu0 0.0
  %3266 = vmatpush1.xpose.msra.mxu0 0.0
  %3267 = vmatprep.subr.mxu0 0.0
  %3268 = vmatpush1.xpose.msra.mxu0 %v3237
  %3269 = vmatprep.subr.mxu0 0.0
  %3270 = vmatpush1.xpose.msra.mxu0 %v3235
  %3271 = vmatprep.subr.mxu0 0.0
  %3272 = vmatpush2.xpose.msra.mxu0 0.0
  %3273 = vmatprep.subr.mxu0 0.0
  %3274 = vmatpush2.xpose.msra.mxu0 0.0
  %3275 = vmatprep.subr.mxu0 0.0
  %3276 = vmatpush2.xpose.msra.mxu0 0.0
  %3277 = vmatprep.subr.mxu0 0.0
  %3278 = vmatpush2.xpose.msra.mxu0 0.0
  %3279 = vmatprep.subr.mxu0 0.0
  %3280 = vmatpush2.xpose.msra.mxu0 0.0
  %3281 = vmatprep.subr.mxu0 0.0
  %3282 = vmatpush2.xpose.msra.mxu0 0.0
  %3283 = vmatprep.subr.mxu0 0.0
  %3284 = vmatpush2.xpose.msra.mxu0 0.0
  %3285 = vmatprep.subr.mxu0 0.0
  %3286 = vmatpush2.xpose.msra.mxu0 0.0
  %3287 = vmatprep.subr.mxu0 0.0
  %3288 = vmatpush2.xpose.msra.mxu0 0.0
  %3289 = vmatprep.subr.mxu0 0.0
  %3290 = vmatpush2.xpose.msra.mxu0 0.0
  %3291 = vmatprep.subr.mxu0 0.0
  %3292 = vmatpush2.xpose.msra.mxu0 0.0
  %3293 = vmatprep.subr.mxu0 0.0
  %3294 = vmatpush2.xpose.msra.mxu0 0.0
  %3295 = vmatprep.subr.mxu0 0.0
  %3296 = vmatpush2.xpose.msra.mxu0 0.0
  %3297 = vmatprep.subr.mxu0 0.0
  %3298 = vmatpush2.xpose.msra.mxu0 0.0
  %3299 = vmatprep.subr.mxu0 0.0
  %3300 = vmatpush2.xpose.msra.mxu0 0.0
  %3301 = vmatprep.subr.mxu0 0.0
  %3302 = vmatpush2.xpose.msra.mxu0 0.0
  %3303 = vmatprep.mubr.f32.mxu0 0.0
  %3304 = vmatmul.mubr.f32.gmra.mxu0 %v3231
  %v3305 = vpop.f32.mrf.mxu0
  %v3306 = vadd.f32 0.0, %v3305
  %v3307 = vpop.f32.mrf.mxu0
  %3308 = vmatprep.mubr.f32.mxu0 0.0
  %3309 = vmatmul.mubr.f32.gmra.mxu0 %v3233
  %v3310 = vpop.f32.mrf.mxu0
  %v3311 = vadd.f32 0.0, %v3310
  %v3312 = vpop.f32.mrf.mxu0
  %3313 = vdwg.mxu0
  %v3314 = vsel %vm2913, %v3215, -inf
  %3315 = vmax.xlane.f32.xlu0 %v3314
  %v3316 = vpop.xlane.xlu0 %3315
  %v3317 = vsel %vm2913, %v3220, -inf
  %3318 = vmax.xlane.f32.xlu0 %v3317
  %v3319 = vpop.xlane.xlu0 %3318
  %v3320 = vsel %vm2913, %v3306, -inf
  %3321 = vmax.xlane.f32.xlu0 %v3320
  %v3322 = vpop.xlane.xlu0 %3321
  %v3323 = vsel %vm2913, %v3311, -inf
  %3324 = vmax.xlane.f32.xlu0 %v3323
  %v3325 = vpop.xlane.xlu0 %3324
  %v3326 = vsub.f32 %v3215, %v3316
  %v3327 = vsub.f32 %v3220, %v3319
  %v3328 = vsub.f32 %v3306, %v3322
  %v3329 = vsub.f32 %v3311, %v3325
  %v3330 = vmul.f32 %v3326, 1.442695
  %v3331 = vpow.pop %v3330
  %v3332 = vmul.f32 %v3327, 1.442695
  %v3333 = vpow.pop %v3332
  %v3334 = vmul.f32 %v3328, 1.442695
  %v3335 = vpow.pop %v3334
  %v3336 = vmul.f32 %v3329, 1.442695
  %v3337 = vpow.pop %v3336
  %v3338 = vsel %vm2913, %v3331, 0.0
  %3339 = vadd.xlane.f32.xlu0 %v3338
  %v3340 = vpop.xlane.xlu0 %3339
  %v3341 = vsel %vm2913, %v3333, 0.0
  %3342 = vadd.xlane.f32.xlu0 %v3341
  %v3343 = vpop.xlane.xlu0 %3342
  %v3344 = vsel %vm2913, %v3335, 0.0
  %3345 = vadd.xlane.f32.xlu0 %v3344
  %v3346 = vpop.xlane.xlu0 %3345
  %v3347 = vsel %vm2913, %v3337, 0.0
  %3348 = vadd.xlane.f32.xlu0 %v3347
  %v3349 = vpop.xlane.xlu0 %3348
  %v3350 = vrcp.pop %v3340
  %v3351 = vrcp.pop %v3343
  %v3352 = vrcp.pop %v3346
  %v3353 = vrcp.pop %v3349
  %v3354 = vmul.f32 %v3331, %v3350
  %v3355 = vmul.f32 %v3333, %v3351
  %v3356 = vmul.f32 %v3335, %v3352
  %v3357 = vmul.f32 %v3337, %v3353
  %3358 = vrot.lane.b32.xlu0 %v2708, 56
  %v3359 = vpop.permute.xlu0 %3358
  %3360 = vrot.lane.b32.xlu0 %v2713, 56
  %v3361 = vpop.permute.xlu0 %3360
  %v3365 = vsel %vm2913, %v3354, 0
  %v3368 = vsel %vm2913, %v3355, 0
  %3370 = vmatprep.subr.mxu0 0.0
  %3371 = vmatpush1.msra.mxu0 0.0
  %3372 = vmatprep.subr.mxu0 0.0
  %3373 = vmatpush1.msra.mxu0 0.0
  %3374 = vmatprep.subr.mxu0 0.0
  %3375 = vmatpush1.msra.mxu0 0.0
  %3376 = vmatprep.subr.mxu0 0.0
  %3377 = vmatpush1.msra.mxu0 0.0
  %3378 = vmatprep.subr.mxu0 0.0
  %3379 = vmatpush1.msra.mxu0 0.0
  %3380 = vmatprep.subr.mxu0 0.0
  %3381 = vmatpush1.msra.mxu0 0.0
  %3382 = vmatprep.subr.mxu0 0.0
  %3383 = vmatpush1.msra.mxu0 0.0
  %3384 = vmatprep.subr.mxu0 0.0
  %3385 = vmatpush1.msra.mxu0 0.0
  %3386 = vmatprep.subr.mxu0 0.0
  %3387 = vmatpush1.msra.mxu0 0.0
  %3388 = vmatprep.subr.mxu0 0.0
  %3389 = vmatpush1.msra.mxu0 0.0
  %3390 = vmatprep.subr.mxu0 0.0
  %3391 = vmatpush1.msra.mxu0 0.0
  %3392 = vmatprep.subr.mxu0 0.0
  %3393 = vmatpush1.msra.mxu0 0.0
  %3394 = vmatprep.subr.mxu0 0.0
  %3395 = vmatpush1.msra.mxu0 0.0
  %3396 = vmatprep.subr.mxu0 0.0
  %3397 = vmatpush1.msra.mxu0 0.0
  %3398 = vmatprep.subr.mxu0 0.0
  %3399 = vmatpush1.msra.mxu0 %v3361
  %3400 = vmatprep.subr.mxu0 0.0
  %3401 = vmatpush1.msra.mxu0 %v3359
  %3402 = vmatprep.subr.mxu0 0.0
  %3403 = vmatpush2.msra.mxu0 0.0
  %3404 = vmatprep.subr.mxu0 0.0
  %3405 = vmatpush2.msra.mxu0 0.0
  %3406 = vmatprep.subr.mxu0 0.0
  %3407 = vmatpush2.msra.mxu0 0.0
  %3408 = vmatprep.subr.mxu0 0.0
  %3409 = vmatpush2.msra.mxu0 0.0
  %3410 = vmatprep.subr.mxu0 0.0
  %3411 = vmatpush2.msra.mxu0 0.0
  %3412 = vmatprep.subr.mxu0 0.0
  %3413 = vmatpush2.msra.mxu0 0.0
  %3414 = vmatprep.subr.mxu0 0.0
  %3415 = vmatpush2.msra.mxu0 0.0
  %3416 = vmatprep.subr.mxu0 0.0
  %3417 = vmatpush2.msra.mxu0 0.0
  %3418 = vmatprep.subr.mxu0 0.0
  %3419 = vmatpush2.msra.mxu0 0.0
  %3420 = vmatprep.subr.mxu0 0.0
  %3421 = vmatpush2.msra.mxu0 0.0
  %3422 = vmatprep.subr.mxu0 0.0
  %3423 = vmatpush2.msra.mxu0 0.0
  %3424 = vmatprep.subr.mxu0 0.0
  %3425 = vmatpush2.msra.mxu0 0.0
  %3426 = vmatprep.subr.mxu0 0.0
  %3427 = vmatpush2.msra.mxu0 0.0
  %3428 = vmatprep.subr.mxu0 0.0
  %3429 = vmatpush2.msra.mxu0 0.0
  %3430 = vmatprep.subr.mxu0 0.0
  %3431 = vmatpush2.msra.mxu0 0.0
  %3432 = vmatprep.subr.mxu0 0.0
  %3433 = vmatpush2.msra.mxu0 0.0
  %3434 = vmatprep.mubr.f32.mxu0 0.0
  %3435 = vmatmul.mubr.f32.gmra.mxu0 %v3365
  %v3436 = vpop.f32.mrf.mxu0
  %v3437 = vadd.f32 0.0, %v3436
  %v3438 = vpop.f32.mrf.mxu0
  %3439 = vmatprep.mubr.f32.mxu0 0.0
  %3440 = vmatmul.mubr.f32.gmra.mxu0 %v3368
  %v3441 = vpop.f32.mrf.mxu0
  %v3442 = vadd.f32 0.0, %v3441
  %v3443 = vpop.f32.mrf.mxu0
  %3444 = vdwg.mxu0
  %3445 = vrot.lane.b32.xlu0 %v2718, 56
  %v3446 = vpop.permute.xlu0 %3445
  %3447 = vrot.lane.b32.xlu0 %v2723, 56
  %v3448 = vpop.permute.xlu0 %3447
  %v3452 = vsel %vm2913, %v3356, 0
  %v3455 = vsel %vm2913, %v3357, 0
  %3457 = vmatprep.subr.mxu0 0.0
  %3458 = vmatpush1.msra.mxu0 0.0
  %3459 = vmatprep.subr.mxu0 0.0
  %3460 = vmatpush1.msra.mxu0 0.0
  %3461 = vmatprep.subr.mxu0 0.0
  %3462 = vmatpush1.msra.mxu0 0.0
  %3463 = vmatprep.subr.mxu0 0.0
  %3464 = vmatpush1.msra.mxu0 0.0
  %3465 = vmatprep.subr.mxu0 0.0
  %3466 = vmatpush1.msra.mxu0 0.0
  %3467 = vmatprep.subr.mxu0 0.0
  %3468 = vmatpush1.msra.mxu0 0.0
  %3469 = vmatprep.subr.mxu0 0.0
  %3470 = vmatpush1.msra.mxu0 0.0
  %3471 = vmatprep.subr.mxu0 0.0
  %3472 = vmatpush1.msra.mxu0 0.0
  %3473 = vmatprep.subr.mxu0 0.0
  %3474 = vmatpush1.msra.mxu0 0.0
  %3475 = vmatprep.subr.mxu0 0.0
  %3476 = vmatpush1.msra.mxu0 0.0
  %3477 = vmatprep.subr.mxu0 0.0
  %3478 = vmatpush1.msra.mxu0 0.0
  %3479 = vmatprep.subr.mxu0 0.0
  %3480 = vmatpush1.msra.mxu0 0.0
  %3481 = vmatprep.subr.mxu0 0.0
  %3482 = vmatpush1.msra.mxu0 0.0
  %3483 = vmatprep.subr.mxu0 0.0
  %3484 = vmatpush1.msra.mxu0 0.0
  %3485 = vmatprep.subr.mxu0 0.0
  %3486 = vmatpush1.msra.mxu0 %v3448
  %3487 = vmatprep.subr.mxu0 0.0
  %3488 = vmatpush1.msra.mxu0 %v3446
  %3489 = vmatprep.subr.mxu0 0.0
  %3490 = vmatpush2.msra.mxu0 0.0
  %3491 = vmatprep.subr.mxu0 0.0
  %3492 = vmatpush2.msra.mxu0 0.0
  %3493 = vmatprep.subr.mxu0 0.0
  %3494 = vmatpush2.msra.mxu0 0.0
  %3495 = vmatprep.subr.mxu0 0.0
  %3496 = vmatpush2.msra.mxu0 0.0
  %3497 = vmatprep.subr.mxu0 0.0
  %3498 = vmatpush2.msra.mxu0 0.0
  %3499 = vmatprep.subr.mxu0 0.0
  %3500 = vmatpush2.msra.mxu0 0.0
  %3501 = vmatprep.subr.mxu0 0.0
  %3502 = vmatpush2.msra.mxu0 0.0
  %3503 = vmatprep.subr.mxu0 0.0
  %3504 = vmatpush2.msra.mxu0 0.0
  %3505 = vmatprep.subr.mxu0 0.0
  %3506 = vmatpush2.msra.mxu0 0.0
  %3507 = vmatprep.subr.mxu0 0.0
  %3508 = vmatpush2.msra.mxu0 0.0
  %3509 = vmatprep.subr.mxu0 0.0
  %3510 = vmatpush2.msra.mxu0 0.0
  %3511 = vmatprep.subr.mxu0 0.0
  %3512 = vmatpush2.msra.mxu0 0.0
  %3513 = vmatprep.subr.mxu0 0.0
  %3514 = vmatpush2.msra.mxu0 0.0
  %3515 = vmatprep.subr.mxu0 0.0
  %3516 = vmatpush2.msra.mxu0 0.0
  %3517 = vmatprep.subr.mxu0 0.0
  %3518 = vmatpush2.msra.mxu0 0.0
  %3519 = vmatprep.subr.mxu0 0.0
  %3520 = vmatpush2.msra.mxu0 0.0
  %3521 = vmatprep.mubr.f32.mxu0 0.0
  %3522 = vmatmul.mubr.f32.gmra.mxu0 %v3452
  %v3523 = vpop.f32.mrf.mxu0
  %v3524 = vadd.f32 0.0, %v3523
  %v3525 = vpop.f32.mrf.mxu0
  %3526 = vmatprep.mubr.f32.mxu0 0.0
  %3527 = vmatmul.mubr.f32.gmra.mxu0 %v3455
  %v3528 = vpop.f32.mrf.mxu0
  %v3529 = vadd.f32 0.0, %v3528
  %v3530 = vpop.f32.mrf.mxu0
  %3531 = vdwg.mxu0
  %v3533 = vsel %vm2736, %v3437, 0
  %v3536 = vsel %vm2736, %v3442, 0
  %v3539 = vsel %vm2736, %v3524, 0
  %v3542 = vsel %vm2736, %v3529, 0
  %3544 = vmatprep.subr.mxu0 0.0
  %3545 = vmatpush1.msra.mxu0 0.0
  %3546 = vmatprep.subr.mxu0 0.0
  %3547 = vmatpush1.msra.mxu0 0.0
  %3548 = vmatprep.subr.mxu0 0.0
  %3549 = vmatpush1.msra.mxu0 0.0
  %3550 = vmatprep.subr.mxu0 0.0
  %3551 = vmatpush1.msra.mxu0 0.0
  %3552 = vmatprep.subr.mxu0 0.0
  %3553 = vmatpush1.msra.mxu0 0.0
  %3554 = vmatprep.subr.mxu0 0.0
  %3555 = vmatpush1.msra.mxu0 0.0
  %3556 = vmatprep.subr.mxu0 0.0
  %3557 = vmatpush1.msra.mxu0 0.0
  %3558 = vmatprep.subr.mxu0 0.0
  %3559 = vmatpush1.msra.mxu0 0.0
  %3560 = vmatprep.subr.mxu0 0.0
  %3561 = vmatpush1.msra.mxu0 0.0
  %3562 = vmatprep.subr.mxu0 0.0
  %3563 = vmatpush1.msra.mxu0 0.0
  %3564 = vmatprep.subr.mxu0 0.0
  %3565 = vmatpush1.msra.mxu0 0.0
  %3566 = vmatprep.subr.mxu0 0.0
  %3567 = vmatpush1.msra.mxu0 0.0
  %3568 = vmatprep.subr.mxu0 0.0
  %3569 = vmatpush1.msra.mxu0 0.0
  %3570 = vmatprep.subr.mxu0 0.0
  %3571 = vmatpush1.msra.mxu0 0.0
  %3572 = vmatprep.subr.mxu0 0.0
  %3573 = vmatpush1.msra.mxu0 0.0
  %3574 = vmatprep.subr.mxu0 0.0
  %3575 = vmatpush1.msra.mxu0 %v2622
  %3576 = vmatprep.subr.mxu0 0.0
  %3577 = vmatpush2.msra.mxu0 0.0
  %3578 = vmatprep.subr.mxu0 0.0
  %3579 = vmatpush2.msra.mxu0 0.0
  %3580 = vmatprep.subr.mxu0 0.0
  %3581 = vmatpush2.msra.mxu0 0.0
  %3582 = vmatprep.subr.mxu0 0.0
  %3583 = vmatpush2.msra.mxu0 0.0
  %3584 = vmatprep.subr.mxu0 0.0
  %3585 = vmatpush2.msra.mxu0 0.0
  %3586 = vmatprep.subr.mxu0 0.0
  %3587 = vmatpush2.msra.mxu0 0.0
  %3588 = vmatprep.subr.mxu0 0.0
  %3589 = vmatpush2.msra.mxu0 0.0
  %3590 = vmatprep.subr.mxu0 0.0
  %3591 = vmatpush2.msra.mxu0 0.0
  %3592 = vmatprep.subr.mxu0 0.0
  %3593 = vmatpush2.msra.mxu0 0.0
  %3594 = vmatprep.subr.mxu0 0.0
  %3595 = vmatpush2.msra.mxu0 0.0
  %3596 = vmatprep.subr.mxu0 0.0
  %3597 = vmatpush2.msra.mxu0 0.0
  %3598 = vmatprep.subr.mxu0 0.0
  %3599 = vmatpush2.msra.mxu0 0.0
  %3600 = vmatprep.subr.mxu0 0.0
  %3601 = vmatpush2.msra.mxu0 0.0
  %3602 = vmatprep.subr.mxu0 0.0
  %3603 = vmatpush2.msra.mxu0 0.0
  %3604 = vmatprep.subr.mxu0 0.0
  %3605 = vmatpush2.msra.mxu0 0.0
  %3606 = vmatprep.subr.mxu0 0.0
  %3607 = vmatpush2.msra.mxu0 0.0
  %3608 = vmatprep.mubr.f32.mxu0 0.0
  %3609 = vmatmul.mubr.f32.gmra.mxu0 %v3533
  %v3610 = vpop.f32.mrf.mxu0
  %v3611 = vadd.f32 0.0, %v3610
  %v3612 = vpop.f32.mrf.mxu0
  %3613 = vmatprep.mubr.f32.mxu0 0.0
  %3614 = vmatmul.mubr.f32.gmra.mxu0 %v3536
  %v3615 = vpop.f32.mrf.mxu0
  %v3616 = vadd.f32 0.0, %v3615
  %v3617 = vpop.f32.mrf.mxu0
  %3618 = vmatprep.mubr.f32.mxu0 0.0
  %3619 = vmatmul.mubr.f32.gmra.mxu0 %v3539
  %v3620 = vpop.f32.mrf.mxu0
  %v3621 = vadd.f32 0.0, %v3620
  %v3622 = vpop.f32.mrf.mxu0
  %3623 = vmatprep.mubr.f32.mxu0 0.0
  %3624 = vmatmul.mubr.f32.gmra.mxu0 %v3542
  %v3625 = vpop.f32.mrf.mxu0
  %v3626 = vadd.f32 0.0, %v3625
  %v3627 = vpop.f32.mrf.mxu0
  %3628 = vdwg.mxu0
  %v3630 = vsel %vm2736, %v3037, 0
  %v3633 = vsel %vm2736, %v3042, 0
  %v3636 = vsel %vm2736, %v3124, 0
  %v3639 = vsel %vm2736, %v3129, 0
  %3641 = vmatprep.subr.mxu0 0.0
  %3642 = vmatpush1.msra.mxu0 0.0
  %3643 = vmatprep.subr.mxu0 0.0
  %3644 = vmatpush1.msra.mxu0 0.0
  %3645 = vmatprep.subr.mxu0 0.0
  %3646 = vmatpush1.msra.mxu0 0.0
  %3647 = vmatprep.subr.mxu0 0.0
  %3648 = vmatpush1.msra.mxu0 0.0
  %3649 = vmatprep.subr.mxu0 0.0
  %3650 = vmatpush1.msra.mxu0 0.0
  %3651 = vmatprep.subr.mxu0 0.0
  %3652 = vmatpush1.msra.mxu0 0.0
  %3653 = vmatprep.subr.mxu0 0.0
  %3654 = vmatpush1.msra.mxu0 0.0
  %3655 = vmatprep.subr.mxu0 0.0
  %3656 = vmatpush1.msra.mxu0 0.0
  %3657 = vmatprep.subr.mxu0 0.0
  %3658 = vmatpush1.msra.mxu0 0.0
  %3659 = vmatprep.subr.mxu0 0.0
  %3660 = vmatpush1.msra.mxu0 0.0
  %3661 = vmatprep.subr.mxu0 0.0
  %3662 = vmatpush1.msra.mxu0 0.0
  %3663 = vmatprep.subr.mxu0 0.0
  %3664 = vmatpush1.msra.mxu0 0.0
  %3665 = vmatprep.subr.mxu0 0.0
  %3666 = vmatpush1.msra.mxu0 0.0
  %3667 = vmatprep.subr.mxu0 0.0
  %3668 = vmatpush1.msra.mxu0 0.0
  %3669 = vmatprep.subr.mxu0 0.0
  %3670 = vmatpush1.msra.mxu0 0.0
  %3671 = vmatprep.subr.mxu0 0.0
  %3672 = vmatpush1.msra.mxu0 %v2621
  %3673 = vmatprep.subr.mxu0 0.0
  %3674 = vmatpush2.msra.mxu0 0.0
  %3675 = vmatprep.subr.mxu0 0.0
  %3676 = vmatpush2.msra.mxu0 0.0
  %3677 = vmatprep.subr.mxu0 0.0
  %3678 = vmatpush2.msra.mxu0 0.0
  %3679 = vmatprep.subr.mxu0 0.0
  %3680 = vmatpush2.msra.mxu0 0.0
  %3681 = vmatprep.subr.mxu0 0.0
  %3682 = vmatpush2.msra.mxu0 0.0
  %3683 = vmatprep.subr.mxu0 0.0
  %3684 = vmatpush2.msra.mxu0 0.0
  %3685 = vmatprep.subr.mxu0 0.0
  %3686 = vmatpush2.msra.mxu0 0.0
  %3687 = vmatprep.subr.mxu0 0.0
  %3688 = vmatpush2.msra.mxu0 0.0
  %3689 = vmatprep.subr.mxu0 0.0
  %3690 = vmatpush2.msra.mxu0 0.0
  %3691 = vmatprep.subr.mxu0 0.0
  %3692 = vmatpush2.msra.mxu0 0.0
  %3693 = vmatprep.subr.mxu0 0.0
  %3694 = vmatpush2.msra.mxu0 0.0
  %3695 = vmatprep.subr.mxu0 0.0
  %3696 = vmatpush2.msra.mxu0 0.0
  %3697 = vmatprep.subr.mxu0 0.0
  %3698 = vmatpush2.msra.mxu0 0.0
  %3699 = vmatprep.subr.mxu0 0.0
  %3700 = vmatpush2.msra.mxu0 0.0
  %3701 = vmatprep.subr.mxu0 0.0
  %3702 = vmatpush2.msra.mxu0 0.0
  %3703 = vmatprep.subr.mxu0 0.0
  %3704 = vmatpush2.msra.mxu0 0.0
  %3705 = vmatprep.mubr.f32.mxu0 0.0
  %3706 = vmatmul.mubr.f32.gmra.mxu0 %v3630
  %v3707 = vpop.f32.mrf.mxu0
  %v3708 = vadd.f32 %v3611, %v3707
  %v3709 = vpop.f32.mrf.mxu0
  %3710 = vmatprep.mubr.f32.mxu0 0.0
  %3711 = vmatmul.mubr.f32.gmra.mxu0 %v3633
  %v3712 = vpop.f32.mrf.mxu0
  %v3713 = vadd.f32 %v3616, %v3712
  %v3714 = vpop.f32.mrf.mxu0
  %3715 = vmatprep.mubr.f32.mxu0 0.0
  %3716 = vmatmul.mubr.f32.gmra.mxu0 %v3636
  %v3717 = vpop.f32.mrf.mxu0
  %v3718 = vadd.f32 %v3621, %v3717
  %v3719 = vpop.f32.mrf.mxu0
  %3720 = vmatprep.mubr.f32.mxu0 0.0
  %3721 = vmatmul.mubr.f32.gmra.mxu0 %v3639
  %v3722 = vpop.f32.mrf.mxu0
  %v3723 = vadd.f32 %v3626, %v3722
  %v3724 = vpop.f32.mrf.mxu0
  %3725 = vdwg.mxu0
  %3726 = vrot.lane.b32.xlu0 %v2726, 112
  %v3727 = vpop.permute.xlu0 %3726
  %3728 = vrot.lane.b32.xlu0 %v2727, 112
  %v3729 = vpop.permute.xlu0 %3728
  %3730 = vrot.lane.b32.xlu0 %v2708, 80
  %v3731 = vpop.permute.xlu0 %3730
  %3732 = vrot.lane.b32.xlu0 %v2713, 80
  %v3733 = vpop.permute.xlu0 %3732
  %v3734 = vsel %vm2736, %v3727, 0
  %v3736 = vsel %vm2736, %v3729, 0
  %v3738 = vsel %vm2736, %v3731, 0
  %v3740 = vsel %vm2736, %v3733, 0
  %3742 = vmatprep.subr.mxu0 0.0
  %3743 = vmatpush1.xpose.msra.mxu0 0.0
  %3744 = vmatprep.subr.mxu0 0.0
  %3745 = vmatpush1.xpose.msra.mxu0 0.0
  %3746 = vmatprep.subr.mxu0 0.0
  %3747 = vmatpush1.xpose.msra.mxu0 0.0
  %3748 = vmatprep.subr.mxu0 0.0
  %3749 = vmatpush1.xpose.msra.mxu0 0.0
  %3750 = vmatprep.subr.mxu0 0.0
  %3751 = vmatpush1.xpose.msra.mxu0 0.0
  %3752 = vmatprep.subr.mxu0 0.0
  %3753 = vmatpush1.xpose.msra.mxu0 0.0
  %3754 = vmatprep.subr.mxu0 0.0
  %3755 = vmatpush1.xpose.msra.mxu0 0.0
  %3756 = vmatprep.subr.mxu0 0.0
  %3757 = vmatpush1.xpose.msra.mxu0 0.0
  %3758 = vmatprep.subr.mxu0 0.0
  %3759 = vmatpush1.xpose.msra.mxu0 0.0
  %3760 = vmatprep.subr.mxu0 0.0
  %3761 = vmatpush1.xpose.msra.mxu0 0.0
  %3762 = vmatprep.subr.mxu0 0.0
  %3763 = vmatpush1.xpose.msra.mxu0 0.0
  %3764 = vmatprep.subr.mxu0 0.0
  %3765 = vmatpush1.xpose.msra.mxu0 0.0
  %3766 = vmatprep.subr.mxu0 0.0
  %3767 = vmatpush1.xpose.msra.mxu0 0.0
  %3768 = vmatprep.subr.mxu0 0.0
  %3769 = vmatpush1.xpose.msra.mxu0 0.0
  %3770 = vmatprep.subr.mxu0 0.0
  %3771 = vmatpush1.xpose.msra.mxu0 %v3740
  %3772 = vmatprep.subr.mxu0 0.0
  %3773 = vmatpush1.xpose.msra.mxu0 %v3738
  %3774 = vmatprep.subr.mxu0 0.0
  %3775 = vmatpush2.xpose.msra.mxu0 0.0
  %3776 = vmatprep.subr.mxu0 0.0
  %3777 = vmatpush2.xpose.msra.mxu0 0.0
  %3778 = vmatprep.subr.mxu0 0.0
  %3779 = vmatpush2.xpose.msra.mxu0 0.0
  %3780 = vmatprep.subr.mxu0 0.0
  %3781 = vmatpush2.xpose.msra.mxu0 0.0
  %3782 = vmatprep.subr.mxu0 0.0
  %3783 = vmatpush2.xpose.msra.mxu0 0.0
  %3784 = vmatprep.subr.mxu0 0.0
  %3785 = vmatpush2.xpose.msra.mxu0 0.0
  %3786 = vmatprep.subr.mxu0 0.0
  %3787 = vmatpush2.xpose.msra.mxu0 0.0
  %3788 = vmatprep.subr.mxu0 0.0
  %3789 = vmatpush2.xpose.msra.mxu0 0.0
  %3790 = vmatprep.subr.mxu0 0.0
  %3791 = vmatpush2.xpose.msra.mxu0 0.0
  %3792 = vmatprep.subr.mxu0 0.0
  %3793 = vmatpush2.xpose.msra.mxu0 0.0
  %3794 = vmatprep.subr.mxu0 0.0
  %3795 = vmatpush2.xpose.msra.mxu0 0.0
  %3796 = vmatprep.subr.mxu0 0.0
  %3797 = vmatpush2.xpose.msra.mxu0 0.0
  %3798 = vmatprep.subr.mxu0 0.0
  %3799 = vmatpush2.xpose.msra.mxu0 0.0
  %3800 = vmatprep.subr.mxu0 0.0
  %3801 = vmatpush2.xpose.msra.mxu0 0.0
  %3802 = vmatprep.subr.mxu0 0.0
  %3803 = vmatpush2.xpose.msra.mxu0 0.0
  %3804 = vmatprep.subr.mxu0 0.0
  %3805 = vmatpush2.xpose.msra.mxu0 0.0
  %3806 = vmatprep.mubr.f32.mxu0 0.0
  %3807 = vmatmul.mubr.f32.gmra.mxu0 %v3734
  %v3808 = vpop.f32.mrf.mxu0
  %v3809 = vadd.f32 0.0, %v3808
  %v3810 = vpop.f32.mrf.mxu0
  %3811 = vmatprep.mubr.f32.mxu0 0.0
  %3812 = vmatmul.mubr.f32.gmra.mxu0 %v3736
  %v3813 = vpop.f32.mrf.mxu0
  %v3814 = vadd.f32 0.0, %v3813
  %v3815 = vpop.f32.mrf.mxu0
  %3816 = vdwg.mxu0
  %3817 = vrot.lane.b32.xlu0 %v2728, 112
  %v3818 = vpop.permute.xlu0 %3817
  %3819 = vrot.lane.b32.xlu0 %v2729, 112
  %v3820 = vpop.permute.xlu0 %3819
  %3821 = vrot.lane.b32.xlu0 %v2718, 80
  %v3822 = vpop.permute.xlu0 %3821
  %3823 = vrot.lane.b32.xlu0 %v2723, 80
  %v3824 = vpop.permute.xlu0 %3823
  %v3825 = vsel %vm2736, %v3818, 0
  %v3827 = vsel %vm2736, %v3820, 0
  %v3829 = vsel %vm2736, %v3822, 0
  %v3831 = vsel %vm2736, %v3824, 0
  %3833 = vmatprep.subr.mxu0 0.0
  %3834 = vmatpush1.xpose.msra.mxu0 0.0
  %3835 = vmatprep.subr.mxu0 0.0
  %3836 = vmatpush1.xpose.msra.mxu0 0.0
  %3837 = vmatprep.subr.mxu0 0.0
  %3838 = vmatpush1.xpose.msra.mxu0 0.0
  %3839 = vmatprep.subr.mxu0 0.0
  %3840 = vmatpush1.xpose.msra.mxu0 0.0
  %3841 = vmatprep.subr.mxu0 0.0
  %3842 = vmatpush1.xpose.msra.mxu0 0.0
  %3843 = vmatprep.subr.mxu0 0.0
  %3844 = vmatpush1.xpose.msra.mxu0 0.0
  %3845 = vmatprep.subr.mxu0 0.0
  %3846 = vmatpush1.xpose.msra.mxu0 0.0
  %3847 = vmatprep.subr.mxu0 0.0
  %3848 = vmatpush1.xpose.msra.mxu0 0.0
  %3849 = vmatprep.subr.mxu0 0.0
  %3850 = vmatpush1.xpose.msra.mxu0 0.0
  %3851 = vmatprep.subr.mxu0 0.0
  %3852 = vmatpush1.xpose.msra.mxu0 0.0
  %3853 = vmatprep.subr.mxu0 0.0
  %3854 = vmatpush1.xpose.msra.mxu0 0.0
  %3855 = vmatprep.subr.mxu0 0.0
  %3856 = vmatpush1.xpose.msra.mxu0 0.0
  %3857 = vmatprep.subr.mxu0 0.0
  %3858 = vmatpush1.xpose.msra.mxu0 0.0
  %3859 = vmatprep.subr.mxu0 0.0
  %3860 = vmatpush1.xpose.msra.mxu0 0.0
  %3861 = vmatprep.subr.mxu0 0.0
  %3862 = vmatpush1.xpose.msra.mxu0 %v3831
  %3863 = vmatprep.subr.mxu0 0.0
  %3864 = vmatpush1.xpose.msra.mxu0 %v3829
  %3865 = vmatprep.subr.mxu0 0.0
  %3866 = vmatpush2.xpose.msra.mxu0 0.0
  %3867 = vmatprep.subr.mxu0 0.0
  %3868 = vmatpush2.xpose.msra.mxu0 0.0
  %3869 = vmatprep.subr.mxu0 0.0
  %3870 = vmatpush2.xpose.msra.mxu0 0.0
  %3871 = vmatprep.subr.mxu0 0.0
  %3872 = vmatpush2.xpose.msra.mxu0 0.0
  %3873 = vmatprep.subr.mxu0 0.0
  %3874 = vmatpush2.xpose.msra.mxu0 0.0
  %3875 = vmatprep.subr.mxu0 0.0
  %3876 = vmatpush2.xpose.msra.mxu0 0.0
  %3877 = vmatprep.subr.mxu0 0.0
  %3878 = vmatpush2.xpose.msra.mxu0 0.0
  %3879 = vmatprep.subr.mxu0 0.0
  %3880 = vmatpush2.xpose.msra.mxu0 0.0
  %3881 = vmatprep.subr.mxu0 0.0
  %3882 = vmatpush2.xpose.msra.mxu0 0.0
  %3883 = vmatprep.subr.mxu0 0.0
  %3884 = vmatpush2.xpose.msra.mxu0 0.0
  %3885 = vmatprep.subr.mxu0 0.0
  %3886 = vmatpush2.xpose.msra.mxu0 0.0
  %3887 = vmatprep.subr.mxu0 0.0
  %3888 = vmatpush2.xpose.msra.mxu0 0.0
  %3889 = vmatprep.subr.mxu0 0.0
  %3890 = vmatpush2.xpose.msra.mxu0 0.0
  %3891 = vmatprep.subr.mxu0 0.0
  %3892 = vmatpush2.xpose.msra.mxu0 0.0
  %3893 = vmatprep.subr.mxu0 0.0
  %3894 = vmatpush2.xpose.msra.mxu0 0.0
  %3895 = vmatprep.subr.mxu0 0.0
  %3896 = vmatpush2.xpose.msra.mxu0 0.0
  %3897 = vmatprep.mubr.f32.mxu0 0.0
  %3898 = vmatmul.mubr.f32.gmra.mxu0 %v3825
  %v3899 = vpop.f32.mrf.mxu0
  %v3900 = vadd.f32 0.0, %v3899
  %v3901 = vpop.f32.mrf.mxu0
  %3902 = vmatprep.mubr.f32.mxu0 0.0
  %3903 = vmatmul.mubr.f32.gmra.mxu0 %v3827
  %v3904 = vpop.f32.mrf.mxu0
  %v3905 = vadd.f32 0.0, %v3904
  %v3906 = vpop.f32.mrf.mxu0
  %3907 = vdwg.mxu0
  %v3908 = vsel %vm2913, %v3809, -inf
  %3909 = vmax.xlane.f32.xlu0 %v3908
  %v3910 = vpop.xlane.xlu0 %3909
  %v3911 = vsel %vm2913, %v3814, -inf
  %3912 = vmax.xlane.f32.xlu0 %v3911
  %v3913 = vpop.xlane.xlu0 %3912
  %v3914 = vsel %vm2913, %v3900, -inf
  %3915 = vmax.xlane.f32.xlu0 %v3914
  %v3916 = vpop.xlane.xlu0 %3915
  %v3917 = vsel %vm2913, %v3905, -inf
  %3918 = vmax.xlane.f32.xlu0 %v3917
  %v3919 = vpop.xlane.xlu0 %3918
  %v3920 = vsub.f32 %v3809, %v3910
  %v3921 = vsub.f32 %v3814, %v3913
  %v3922 = vsub.f32 %v3900, %v3916
  %v3923 = vsub.f32 %v3905, %v3919
  %v3924 = vmul.f32 %v3920, 1.442695
  %v3925 = vpow.pop %v3924
  %v3926 = vmul.f32 %v3921, 1.442695
  %v3927 = vpow.pop %v3926
  %v3928 = vmul.f32 %v3922, 1.442695
  %v3929 = vpow.pop %v3928
  %v3930 = vmul.f32 %v3923, 1.442695
  %v3931 = vpow.pop %v3930
  %v3932 = vsel %vm2913, %v3925, 0.0
  %3933 = vadd.xlane.f32.xlu0 %v3932
  %v3934 = vpop.xlane.xlu0 %3933
  %v3935 = vsel %vm2913, %v3927, 0.0
  %3936 = vadd.xlane.f32.xlu0 %v3935
  %v3937 = vpop.xlane.xlu0 %3936
  %v3938 = vsel %vm2913, %v3929, 0.0
  %3939 = vadd.xlane.f32.xlu0 %v3938
  %v3940 = vpop.xlane.xlu0 %3939
  %v3941 = vsel %vm2913, %v3931, 0.0
  %3942 = vadd.xlane.f32.xlu0 %v3941
  %v3943 = vpop.xlane.xlu0 %3942
  %v3944 = vrcp.pop %v3934
  %v3945 = vrcp.pop %v3937
  %v3946 = vrcp.pop %v3940
  %v3947 = vrcp.pop %v3943
  %v3948 = vmul.f32 %v3925, %v3944
  %v3949 = vmul.f32 %v3927, %v3945
  %v3950 = vmul.f32 %v3929, %v3946
  %v3951 = vmul.f32 %v3931, %v3947
  %3952 = vrot.lane.b32.xlu0 %v2708, 48
  %v3953 = vpop.permute.xlu0 %3952
  %3954 = vrot.lane.b32.xlu0 %v2713, 48
  %v3955 = vpop.permute.xlu0 %3954
  %v3959 = vsel %vm2913, %v3948, 0
  %v3962 = vsel %vm2913, %v3949, 0
  %3964 = vmatprep.subr.mxu0 0.0
  %3965 = vmatpush1.msra.mxu0 0.0
  %3966 = vmatprep.subr.mxu0 0.0
  %3967 = vmatpush1.msra.mxu0 0.0
  %3968 = vmatprep.subr.mxu0 0.0
  %3969 = vmatpush1.msra.mxu0 0.0
  %3970 = vmatprep.subr.mxu0 0.0
  %3971 = vmatpush1.msra.mxu0 0.0
  %3972 = vmatprep.subr.mxu0 0.0
  %3973 = vmatpush1.msra.mxu0 0.0
  %3974 = vmatprep.subr.mxu0 0.0
  %3975 = vmatpush1.msra.mxu0 0.0
  %3976 = vmatprep.subr.mxu0 0.0
  %3977 = vmatpush1.msra.mxu0 0.0
  %3978 = vmatprep.subr.mxu0 0.0
  %3979 = vmatpush1.msra.mxu0 0.0
  %3980 = vmatprep.subr.mxu0 0.0
  %3981 = vmatpush1.msra.mxu0 0.0
  %3982 = vmatprep.subr.mxu0 0.0
  %3983 = vmatpush1.msra.mxu0 0.0
  %3984 = vmatprep.subr.mxu0 0.0
  %3985 = vmatpush1.msra.mxu0 0.0
  %3986 = vmatprep.subr.mxu0 0.0
  %3987 = vmatpush1.msra.mxu0 0.0
  %3988 = vmatprep.subr.mxu0 0.0
  %3989 = vmatpush1.msra.mxu0 0.0
  %3990 = vmatprep.subr.mxu0 0.0
  %3991 = vmatpush1.msra.mxu0 0.0
  %3992 = vmatprep.subr.mxu0 0.0
  %3993 = vmatpush1.msra.mxu0 %v3955
  %3994 = vmatprep.subr.mxu0 0.0
  %3995 = vmatpush1.msra.mxu0 %v3953
  %3996 = vmatprep.subr.mxu0 0.0
  %3997 = vmatpush2.msra.mxu0 0.0
  %3998 = vmatprep.subr.mxu0 0.0
  %3999 = vmatpush2.msra.mxu0 0.0
  %4000 = vmatprep.subr.mxu0 0.0
  %4001 = vmatpush2.msra.mxu0 0.0
  %4002 = vmatprep.subr.mxu0 0.0
  %4003 = vmatpush2.msra.mxu0 0.0
  %4004 = vmatprep.subr.mxu0 0.0
  %4005 = vmatpush2.msra.mxu0 0.0
  %4006 = vmatprep.subr.mxu0 0.0
  %4007 = vmatpush2.msra.mxu0 0.0
  %4008 = vmatprep.subr.mxu0 0.0
  %4009 = vmatpush2.msra.mxu0 0.0
  %4010 = vmatprep.subr.mxu0 0.0
  %4011 = vmatpush2.msra.mxu0 0.0
  %4012 = vmatprep.subr.mxu0 0.0
  %4013 = vmatpush2.msra.mxu0 0.0
  %4014 = vmatprep.subr.mxu0 0.0
  %4015 = vmatpush2.msra.mxu0 0.0
  %4016 = vmatprep.subr.mxu0 0.0
  %4017 = vmatpush2.msra.mxu0 0.0
  %4018 = vmatprep.subr.mxu0 0.0
  %4019 = vmatpush2.msra.mxu0 0.0
  %4020 = vmatprep.subr.mxu0 0.0
  %4021 = vmatpush2.msra.mxu0 0.0
  %4022 = vmatprep.subr.mxu0 0.0
  %4023 = vmatpush2.msra.mxu0 0.0
  %4024 = vmatprep.subr.mxu0 0.0
  %4025 = vmatpush2.msra.mxu0 0.0
  %4026 = vmatprep.subr.mxu0 0.0
  %4027 = vmatpush2.msra.mxu0 0.0
  %4028 = vmatprep.mubr.f32.mxu0 0.0
  %4029 = vmatmul.mubr.f32.gmra.mxu0 %v3959
  %v4030 = vpop.f32.mrf.mxu0
  %v4031 = vadd.f32 0.0, %v4030
  %v4032 = vpop.f32.mrf.mxu0
  %4033 = vmatprep.mubr.f32.mxu0 0.0
  %4034 = vmatmul.mubr.f32.gmra.mxu0 %v3962
  %v4035 = vpop.f32.mrf.mxu0
  %v4036 = vadd.f32 0.0, %v4035
  %v4037 = vpop.f32.mrf.mxu0
  %4038 = vdwg.mxu0
  %4039 = vrot.lane.b32.xlu0 %v2718, 48
  %v4040 = vpop.permute.xlu0 %4039
  %4041 = vrot.lane.b32.xlu0 %v2723, 48
  %v4042 = vpop.permute.xlu0 %4041
  %v4046 = vsel %vm2913, %v3950, 0
  %v4049 = vsel %vm2913, %v3951, 0
  %4051 = vmatprep.subr.mxu0 0.0
  %4052 = vmatpush1.msra.mxu0 0.0
  %4053 = vmatprep.subr.mxu0 0.0
  %4054 = vmatpush1.msra.mxu0 0.0
  %4055 = vmatprep.subr.mxu0 0.0
  %4056 = vmatpush1.msra.mxu0 0.0
  %4057 = vmatprep.subr.mxu0 0.0
  %4058 = vmatpush1.msra.mxu0 0.0
  %4059 = vmatprep.subr.mxu0 0.0
  %4060 = vmatpush1.msra.mxu0 0.0
  %4061 = vmatprep.subr.mxu0 0.0
  %4062 = vmatpush1.msra.mxu0 0.0
  %4063 = vmatprep.subr.mxu0 0.0
  %4064 = vmatpush1.msra.mxu0 0.0
  %4065 = vmatprep.subr.mxu0 0.0
  %4066 = vmatpush1.msra.mxu0 0.0
  %4067 = vmatprep.subr.mxu0 0.0
  %4068 = vmatpush1.msra.mxu0 0.0
  %4069 = vmatprep.subr.mxu0 0.0
  %4070 = vmatpush1.msra.mxu0 0.0
  %4071 = vmatprep.subr.mxu0 0.0
  %4072 = vmatpush1.msra.mxu0 0.0
  %4073 = vmatprep.subr.mxu0 0.0
  %4074 = vmatpush1.msra.mxu0 0.0
  %4075 = vmatprep.subr.mxu0 0.0
  %4076 = vmatpush1.msra.mxu0 0.0
  %4077 = vmatprep.subr.mxu0 0.0
  %4078 = vmatpush1.msra.mxu0 0.0
  %4079 = vmatprep.subr.mxu0 0.0
  %4080 = vmatpush1.msra.mxu0 %v4042
  %4081 = vmatprep.subr.mxu0 0.0
  %4082 = vmatpush1.msra.mxu0 %v4040
  %4083 = vmatprep.subr.mxu0 0.0
  %4084 = vmatpush2.msra.mxu0 0.0
  %4085 = vmatprep.subr.mxu0 0.0
  %4086 = vmatpush2.msra.mxu0 0.0
  %4087 = vmatprep.subr.mxu0 0.0
  %4088 = vmatpush2.msra.mxu0 0.0
  %4089 = vmatprep.subr.mxu0 0.0
  %4090 = vmatpush2.msra.mxu0 0.0
  %4091 = vmatprep.subr.mxu0 0.0
  %4092 = vmatpush2.msra.mxu0 0.0
  %4093 = vmatprep.subr.mxu0 0.0
  %4094 = vmatpush2.msra.mxu0 0.0
  %4095 = vmatprep.subr.mxu0 0.0
  %4096 = vmatpush2.msra.mxu0 0.0
  %4097 = vmatprep.subr.mxu0 0.0
  %4098 = vmatpush2.msra.mxu0 0.0
  %4099 = vmatprep.subr.mxu0 0.0
  %4100 = vmatpush2.msra.mxu0 0.0
  %4101 = vmatprep.subr.mxu0 0.0
  %4102 = vmatpush2.msra.mxu0 0.0
  %4103 = vmatprep.subr.mxu0 0.0
  %4104 = vmatpush2.msra.mxu0 0.0
  %4105 = vmatprep.subr.mxu0 0.0
  %4106 = vmatpush2.msra.mxu0 0.0
  %4107 = vmatprep.subr.mxu0 0.0
  %4108 = vmatpush2.msra.mxu0 0.0
  %4109 = vmatprep.subr.mxu0 0.0
  %4110 = vmatpush2.msra.mxu0 0.0
  %4111 = vmatprep.subr.mxu0 0.0
  %4112 = vmatpush2.msra.mxu0 0.0
  %4113 = vmatprep.subr.mxu0 0.0
  %4114 = vmatpush2.msra.mxu0 0.0
  %4115 = vmatprep.mubr.f32.mxu0 0.0
  %4116 = vmatmul.mubr.f32.gmra.mxu0 %v4046
  %v4117 = vpop.f32.mrf.mxu0
  %v4118 = vadd.f32 0.0, %v4117
  %v4119 = vpop.f32.mrf.mxu0
  %4120 = vmatprep.mubr.f32.mxu0 0.0
  %4121 = vmatmul.mubr.f32.gmra.mxu0 %v4049
  %v4122 = vpop.f32.mrf.mxu0
  %v4123 = vadd.f32 0.0, %v4122
  %v4124 = vpop.f32.mrf.mxu0
  %4125 = vdwg.mxu0
  %v4127 = vsel %vm2736, %v4031, 0
  %v4130 = vsel %vm2736, %v4036, 0
  %v4133 = vsel %vm2736, %v4118, 0
  %v4136 = vsel %vm2736, %v4123, 0
  %4138 = vmatprep.subr.mxu0 0.0
  %4139 = vmatpush1.msra.mxu0 0.0
  %4140 = vmatprep.subr.mxu0 0.0
  %4141 = vmatpush1.msra.mxu0 0.0
  %4142 = vmatprep.subr.mxu0 0.0
  %4143 = vmatpush1.msra.mxu0 0.0
  %4144 = vmatprep.subr.mxu0 0.0
  %4145 = vmatpush1.msra.mxu0 0.0
  %4146 = vmatprep.subr.mxu0 0.0
  %4147 = vmatpush1.msra.mxu0 0.0
  %4148 = vmatprep.subr.mxu0 0.0
  %4149 = vmatpush1.msra.mxu0 0.0
  %4150 = vmatprep.subr.mxu0 0.0
  %4151 = vmatpush1.msra.mxu0 0.0
  %4152 = vmatprep.subr.mxu0 0.0
  %4153 = vmatpush1.msra.mxu0 0.0
  %4154 = vmatprep.subr.mxu0 0.0
  %4155 = vmatpush1.msra.mxu0 0.0
  %4156 = vmatprep.subr.mxu0 0.0
  %4157 = vmatpush1.msra.mxu0 0.0
  %4158 = vmatprep.subr.mxu0 0.0
  %4159 = vmatpush1.msra.mxu0 0.0
  %4160 = vmatprep.subr.mxu0 0.0
  %4161 = vmatpush1.msra.mxu0 0.0
  %4162 = vmatprep.subr.mxu0 0.0
  %4163 = vmatpush1.msra.mxu0 0.0
  %4164 = vmatprep.subr.mxu0 0.0
  %4165 = vmatpush1.msra.mxu0 0.0
  %4166 = vmatprep.subr.mxu0 0.0
  %4167 = vmatpush1.msra.mxu0 0.0
  %4168 = vmatprep.subr.mxu0 0.0
  %4169 = vmatpush1.msra.mxu0 %v2623
  %4170 = vmatprep.subr.mxu0 0.0
  %4171 = vmatpush2.msra.mxu0 0.0
  %4172 = vmatprep.subr.mxu0 0.0
  %4173 = vmatpush2.msra.mxu0 0.0
  %4174 = vmatprep.subr.mxu0 0.0
  %4175 = vmatpush2.msra.mxu0 0.0
  %4176 = vmatprep.subr.mxu0 0.0
  %4177 = vmatpush2.msra.mxu0 0.0
  %4178 = vmatprep.subr.mxu0 0.0
  %4179 = vmatpush2.msra.mxu0 0.0
  %4180 = vmatprep.subr.mxu0 0.0
  %4181 = vmatpush2.msra.mxu0 0.0
  %4182 = vmatprep.subr.mxu0 0.0
  %4183 = vmatpush2.msra.mxu0 0.0
  %4184 = vmatprep.subr.mxu0 0.0
  %4185 = vmatpush2.msra.mxu0 0.0
  %4186 = vmatprep.subr.mxu0 0.0
  %4187 = vmatpush2.msra.mxu0 0.0
  %4188 = vmatprep.subr.mxu0 0.0
  %4189 = vmatpush2.msra.mxu0 0.0
  %4190 = vmatprep.subr.mxu0 0.0
  %4191 = vmatpush2.msra.mxu0 0.0
  %4192 = vmatprep.subr.mxu0 0.0
  %4193 = vmatpush2.msra.mxu0 0.0
  %4194 = vmatprep.subr.mxu0 0.0
  %4195 = vmatpush2.msra.mxu0 0.0
  %4196 = vmatprep.subr.mxu0 0.0
  %4197 = vmatpush2.msra.mxu0 0.0
  %4198 = vmatprep.subr.mxu0 0.0
  %4199 = vmatpush2.msra.mxu0 0.0
  %4200 = vmatprep.subr.mxu0 0.0
  %4201 = vmatpush2.msra.mxu0 0.0
  %4202 = vmatprep.mubr.f32.mxu0 0.0
  %4203 = vmatmul.mubr.f32.gmra.mxu0 %v4127
  %v4204 = vpop.f32.mrf.mxu0
  %v4205 = vadd.f32 0.0, %v4204
  %v4206 = vpop.f32.mrf.mxu0
  %4207 = vmatprep.mubr.f32.mxu0 0.0
  %4208 = vmatmul.mubr.f32.gmra.mxu0 %v4130
  %v4209 = vpop.f32.mrf.mxu0
  %v4210 = vadd.f32 0.0, %v4209
  %v4211 = vpop.f32.mrf.mxu0
  %4212 = vmatprep.mubr.f32.mxu0 0.0
  %4213 = vmatmul.mubr.f32.gmra.mxu0 %v4133
  %v4214 = vpop.f32.mrf.mxu0
  %v4215 = vadd.f32 0.0, %v4214
  %v4216 = vpop.f32.mrf.mxu0
  %4217 = vmatprep.mubr.f32.mxu0 0.0
  %4218 = vmatmul.mubr.f32.gmra.mxu0 %v4136
  %v4219 = vpop.f32.mrf.mxu0
  %v4220 = vadd.f32 0.0, %v4219
  %v4221 = vpop.f32.mrf.mxu0
  %4222 = vdwg.mxu0
  %v4223 = vadd.f32 %v3708, %v4205
  %v4224 = vadd.f32 %v3713, %v4210
  %v4225 = vadd.f32 %v3718, %v4215
  %v4226 = vadd.f32 %v3723, %v4220
  %4227 = vrot.lane.b32.xlu0 %v2726, 104
  %v4228 = vpop.permute.xlu0 %4227
  %4229 = vrot.lane.b32.xlu0 %v2727, 104
  %v4230 = vpop.permute.xlu0 %4229
  %4231 = vrot.lane.b32.xlu0 %v2708, 72
  %v4232 = vpop.permute.xlu0 %4231
  %4233 = vrot.lane.b32.xlu0 %v2713, 72
  %v4234 = vpop.permute.xlu0 %4233
  %v4235 = vsel %vm2736, %v4228, 0
  %v4237 = vsel %vm2736, %v4230, 0
  %v4239 = vsel %vm2736, %v4232, 0
  %v4241 = vsel %vm2736, %v4234, 0
  %4243 = vmatprep.subr.mxu0 0.0
  %4244 = vmatpush1.xpose.msra.mxu0 0.0
  %4245 = vmatprep.subr.mxu0 0.0
  %4246 = vmatpush1.xpose.msra.mxu0 0.0
  %4247 = vmatprep.subr.mxu0 0.0
  %4248 = vmatpush1.xpose.msra.mxu0 0.0
  %4249 = vmatprep.subr.mxu0 0.0
  %4250 = vmatpush1.xpose.msra.mxu0 0.0
  %4251 = vmatprep.subr.mxu0 0.0
  %4252 = vmatpush1.xpose.msra.mxu0 0.0
  %4253 = vmatprep.subr.mxu0 0.0
  %4254 = vmatpush1.xpose.msra.mxu0 0.0
  %4255 = vmatprep.subr.mxu0 0.0
  %4256 = vmatpush1.xpose.msra.mxu0 0.0
  %4257 = vmatprep.subr.mxu0 0.0
  %4258 = vmatpush1.xpose.msra.mxu0 0.0
  %4259 = vmatprep.subr.mxu0 0.0
  %4260 = vmatpush1.xpose.msra.mxu0 0.0
  %4261 = vmatprep.subr.mxu0 0.0
  %4262 = vmatpush1.xpose.msra.mxu0 0.0
  %4263 = vmatprep.subr.mxu0 0.0
  %4264 = vmatpush1.xpose.msra.mxu0 0.0
  %4265 = vmatprep.subr.mxu0 0.0
  %4266 = vmatpush1.xpose.msra.mxu0 0.0
  %4267 = vmatprep.subr.mxu0 0.0
  %4268 = vmatpush1.xpose.msra.mxu0 0.0
  %4269 = vmatprep.subr.mxu0 0.0
  %4270 = vmatpush1.xpose.msra.mxu0 0.0
  %4271 = vmatprep.subr.mxu0 0.0
  %4272 = vmatpush1.xpose.msra.mxu0 %v4241
  %4273 = vmatprep.subr.mxu0 0.0
  %4274 = vmatpush1.xpose.msra.mxu0 %v4239
  %4275 = vmatprep.subr.mxu0 0.0
  %4276 = vmatpush2.xpose.msra.mxu0 0.0
  %4277 = vmatprep.subr.mxu0 0.0
  %4278 = vmatpush2.xpose.msra.mxu0 0.0
  %4279 = vmatprep.subr.mxu0 0.0
  %4280 = vmatpush2.xpose.msra.mxu0 0.0
  %4281 = vmatprep.subr.mxu0 0.0
  %4282 = vmatpush2.xpose.msra.mxu0 0.0
  %4283 = vmatprep.subr.mxu0 0.0
  %4284 = vmatpush2.xpose.msra.mxu0 0.0
  %4285 = vmatprep.subr.mxu0 0.0
  %4286 = vmatpush2.xpose.msra.mxu0 0.0
  %4287 = vmatprep.subr.mxu0 0.0
  %4288 = vmatpush2.xpose.msra.mxu0 0.0
  %4289 = vmatprep.subr.mxu0 0.0
  %4290 = vmatpush2.xpose.msra.mxu0 0.0
  %4291 = vmatprep.subr.mxu0 0.0
  %4292 = vmatpush2.xpose.msra.mxu0 0.0
  %4293 = vmatprep.subr.mxu0 0.0
  %4294 = vmatpush2.xpose.msra.mxu0 0.0
  %4295 = vmatprep.subr.mxu0 0.0
  %4296 = vmatpush2.xpose.msra.mxu0 0.0
  %4297 = vmatprep.subr.mxu0 0.0
  %4298 = vmatpush2.xpose.msra.mxu0 0.0
  %4299 = vmatprep.subr.mxu0 0.0
  %4300 = vmatpush2.xpose.msra.mxu0 0.0
  %4301 = vmatprep.subr.mxu0 0.0
  %4302 = vmatpush2.xpose.msra.mxu0 0.0
  %4303 = vmatprep.subr.mxu0 0.0
  %4304 = vmatpush2.xpose.msra.mxu0 0.0
  %4305 = vmatprep.subr.mxu0 0.0
  %4306 = vmatpush2.xpose.msra.mxu0 0.0
  %4307 = vmatprep.mubr.f32.mxu0 0.0
  %4308 = vmatmul.mubr.f32.gmra.mxu0 %v4235
  %v4309 = vpop.f32.mrf.mxu0
  %v4310 = vadd.f32 0.0, %v4309
  %v4311 = vpop.f32.mrf.mxu0
  %4312 = vmatprep.mubr.f32.mxu0 0.0
  %4313 = vmatmul.mubr.f32.gmra.mxu0 %v4237
  %v4314 = vpop.f32.mrf.mxu0
  %v4315 = vadd.f32 0.0, %v4314
  %v4316 = vpop.f32.mrf.mxu0
  %4317 = vdwg.mxu0
  %4318 = vrot.lane.b32.xlu0 %v2728, 104
  %v4319 = vpop.permute.xlu0 %4318
  %4320 = vrot.lane.b32.xlu0 %v2729, 104
  %v4321 = vpop.permute.xlu0 %4320
  %4322 = vrot.lane.b32.xlu0 %v2718, 72
  %v4323 = vpop.permute.xlu0 %4322
  %4324 = vrot.lane.b32.xlu0 %v2723, 72
  %v4325 = vpop.permute.xlu0 %4324
  %v4326 = vsel %vm2736, %v4319, 0
  %v4328 = vsel %vm2736, %v4321, 0
  %v4330 = vsel %vm2736, %v4323, 0
  %v4332 = vsel %vm2736, %v4325, 0
  %4334 = vmatprep.subr.mxu0 0.0
  %4335 = vmatpush1.xpose.msra.mxu0 0.0
  %4336 = vmatprep.subr.mxu0 0.0
  %4337 = vmatpush1.xpose.msra.mxu0 0.0
  %4338 = vmatprep.subr.mxu0 0.0
  %4339 = vmatpush1.xpose.msra.mxu0 0.0
  %4340 = vmatprep.subr.mxu0 0.0
  %4341 = vmatpush1.xpose.msra.mxu0 0.0
  %4342 = vmatprep.subr.mxu0 0.0
  %4343 = vmatpush1.xpose.msra.mxu0 0.0
  %4344 = vmatprep.subr.mxu0 0.0
  %4345 = vmatpush1.xpose.msra.mxu0 0.0
  %4346 = vmatprep.subr.mxu0 0.0
  %4347 = vmatpush1.xpose.msra.mxu0 0.0
  %4348 = vmatprep.subr.mxu0 0.0
  %4349 = vmatpush1.xpose.msra.mxu0 0.0
  %4350 = vmatprep.subr.mxu0 0.0
  %4351 = vmatpush1.xpose.msra.mxu0 0.0
  %4352 = vmatprep.subr.mxu0 0.0
  %4353 = vmatpush1.xpose.msra.mxu0 0.0
  %4354 = vmatprep.subr.mxu0 0.0
  %4355 = vmatpush1.xpose.msra.mxu0 0.0
  %4356 = vmatprep.subr.mxu0 0.0
  %4357 = vmatpush1.xpose.msra.mxu0 0.0
  %4358 = vmatprep.subr.mxu0 0.0
  %4359 = vmatpush1.xpose.msra.mxu0 0.0
  %4360 = vmatprep.subr.mxu0 0.0
  %4361 = vmatpush1.xpose.msra.mxu0 0.0
  %4362 = vmatprep.subr.mxu0 0.0
  %4363 = vmatpush1.xpose.msra.mxu0 %v4332
  %4364 = vmatprep.subr.mxu0 0.0
  %4365 = vmatpush1.xpose.msra.mxu0 %v4330
  %4366 = vmatprep.subr.mxu0 0.0
  %4367 = vmatpush2.xpose.msra.mxu0 0.0
  %4368 = vmatprep.subr.mxu0 0.0
  %4369 = vmatpush2.xpose.msra.mxu0 0.0
  %4370 = vmatprep.subr.mxu0 0.0
  %4371 = vmatpush2.xpose.msra.mxu0 0.0
  %4372 = vmatprep.subr.mxu0 0.0
  %4373 = vmatpush2.xpose.msra.mxu0 0.0
  %4374 = vmatprep.subr.mxu0 0.0
  %4375 = vmatpush2.xpose.msra.mxu0 0.0
  %4376 = vmatprep.subr.mxu0 0.0
  %4377 = vmatpush2.xpose.msra.mxu0 0.0
  %4378 = vmatprep.subr.mxu0 0.0
  %4379 = vmatpush2.xpose.msra.mxu0 0.0
  %4380 = vmatprep.subr.mxu0 0.0
  %4381 = vmatpush2.xpose.msra.mxu0 0.0
  %4382 = vmatprep.subr.mxu0 0.0
  %4383 = vmatpush2.xpose.msra.mxu0 0.0
  %4384 = vmatprep.subr.mxu0 0.0
  %4385 = vmatpush2.xpose.msra.mxu0 0.0
  %4386 = vmatprep.subr.mxu0 0.0
  %4387 = vmatpush2.xpose.msra.mxu0 0.0
  %4388 = vmatprep.subr.mxu0 0.0
  %4389 = vmatpush2.xpose.msra.mxu0 0.0
  %4390 = vmatprep.subr.mxu0 0.0
  %4391 = vmatpush2.xpose.msra.mxu0 0.0
  %4392 = vmatprep.subr.mxu0 0.0
  %4393 = vmatpush2.xpose.msra.mxu0 0.0
  %4394 = vmatprep.subr.mxu0 0.0
  %4395 = vmatpush2.xpose.msra.mxu0 0.0
  %4396 = vmatprep.subr.mxu0 0.0
  %4397 = vmatpush2.xpose.msra.mxu0 0.0
  %4398 = vmatprep.mubr.f32.mxu0 0.0
  %4399 = vmatmul.mubr.f32.gmra.mxu0 %v4326
  %v4400 = vpop.f32.mrf.mxu0
  %v4401 = vadd.f32 0.0, %v4400
  %v4402 = vpop.f32.mrf.mxu0
  %4403 = vmatprep.mubr.f32.mxu0 0.0
  %4404 = vmatmul.mubr.f32.gmra.mxu0 %v4328
  %v4405 = vpop.f32.mrf.mxu0
  %v4406 = vadd.f32 0.0, %v4405
  %v4407 = vpop.f32.mrf.mxu0
  %4408 = vdwg.mxu0
  %v4409 = vsel %vm2913, %v4310, -inf
  %4410 = vmax.xlane.f32.xlu0 %v4409
  %v4411 = vpop.xlane.xlu0 %4410
  %v4412 = vsel %vm2913, %v4315, -inf
  %4413 = vmax.xlane.f32.xlu0 %v4412
  %v4414 = vpop.xlane.xlu0 %4413
  %v4415 = vsel %vm2913, %v4401, -inf
  %4416 = vmax.xlane.f32.xlu0 %v4415
  %v4417 = vpop.xlane.xlu0 %4416
  %v4418 = vsel %vm2913, %v4406, -inf
  %4419 = vmax.xlane.f32.xlu0 %v4418
  %v4420 = vpop.xlane.xlu0 %4419
  %v4421 = vsub.f32 %v4310, %v4411
  %v4422 = vsub.f32 %v4315, %v4414
  %v4423 = vsub.f32 %v4401, %v4417
  %v4424 = vsub.f32 %v4406, %v4420
  %v4425 = vmul.f32 %v4421, 1.442695
  %v4426 = vpow.pop %v4425
  %v4427 = vmul.f32 %v4422, 1.442695
  %v4428 = vpow.pop %v4427
  %v4429 = vmul.f32 %v4423, 1.442695
  %v4430 = vpow.pop %v4429
  %v4431 = vmul.f32 %v4424, 1.442695
  %v4432 = vpow.pop %v4431
  %v4433 = vsel %vm2913, %v4426, 0.0
  %4434 = vadd.xlane.f32.xlu0 %v4433
  %v4435 = vpop.xlane.xlu0 %4434
  %v4436 = vsel %vm2913, %v4428, 0.0
  %4437 = vadd.xlane.f32.xlu0 %v4436
  %v4438 = vpop.xlane.xlu0 %4437
  %v4439 = vsel %vm2913, %v4430, 0.0
  %4440 = vadd.xlane.f32.xlu0 %v4439
  %v4441 = vpop.xlane.xlu0 %4440
  %v4442 = vsel %vm2913, %v4432, 0.0
  %4443 = vadd.xlane.f32.xlu0 %v4442
  %v4444 = vpop.xlane.xlu0 %4443
  %v4445 = vrcp.pop %v4435
  %v4446 = vrcp.pop %v4438
  %v4447 = vrcp.pop %v4441
  %v4448 = vrcp.pop %v4444
  %v4449 = vmul.f32 %v4426, %v4445
  %v4450 = vmul.f32 %v4428, %v4446
  %v4451 = vmul.f32 %v4430, %v4447
  %v4452 = vmul.f32 %v4432, %v4448
  %4453 = vrot.lane.b32.xlu0 %v2708, 40
  %v4454 = vpop.permute.xlu0 %4453
  %4455 = vrot.lane.b32.xlu0 %v2713, 40
  %v4456 = vpop.permute.xlu0 %4455
  %v4460 = vsel %vm2913, %v4449, 0
  %v4463 = vsel %vm2913, %v4450, 0
  %4465 = vmatprep.subr.mxu0 0.0
  %4466 = vmatpush1.msra.mxu0 0.0
  %4467 = vmatprep.subr.mxu0 0.0
  %4468 = vmatpush1.msra.mxu0 0.0
  %4469 = vmatprep.subr.mxu0 0.0
  %4470 = vmatpush1.msra.mxu0 0.0
  %4471 = vmatprep.subr.mxu0 0.0
  %4472 = vmatpush1.msra.mxu0 0.0
  %4473 = vmatprep.subr.mxu0 0.0
  %4474 = vmatpush1.msra.mxu0 0.0
  %4475 = vmatprep.subr.mxu0 0.0
  %4476 = vmatpush1.msra.mxu0 0.0
  %4477 = vmatprep.subr.mxu0 0.0
  %4478 = vmatpush1.msra.mxu0 0.0
  %4479 = vmatprep.subr.mxu0 0.0
  %4480 = vmatpush1.msra.mxu0 0.0
  %4481 = vmatprep.subr.mxu0 0.0
  %4482 = vmatpush1.msra.mxu0 0.0
  %4483 = vmatprep.subr.mxu0 0.0
  %4484 = vmatpush1.msra.mxu0 0.0
  %4485 = vmatprep.subr.mxu0 0.0
  %4486 = vmatpush1.msra.mxu0 0.0
  %4487 = vmatprep.subr.mxu0 0.0
  %4488 = vmatpush1.msra.mxu0 0.0
  %4489 = vmatprep.subr.mxu0 0.0
  %4490 = vmatpush1.msra.mxu0 0.0
  %4491 = vmatprep.subr.mxu0 0.0
  %4492 = vmatpush1.msra.mxu0 0.0
  %4493 = vmatprep.subr.mxu0 0.0
  %4494 = vmatpush1.msra.mxu0 %v4456
  %4495 = vmatprep.subr.mxu0 0.0
  %4496 = vmatpush1.msra.mxu0 %v4454
  %4497 = vmatprep.subr.mxu0 0.0
  %4498 = vmatpush2.msra.mxu0 0.0
  %4499 = vmatprep.subr.mxu0 0.0
  %4500 = vmatpush2.msra.mxu0 0.0
  %4501 = vmatprep.subr.mxu0 0.0
  %4502 = vmatpush2.msra.mxu0 0.0
  %4503 = vmatprep.subr.mxu0 0.0
  %4504 = vmatpush2.msra.mxu0 0.0
  %4505 = vmatprep.subr.mxu0 0.0
  %4506 = vmatpush2.msra.mxu0 0.0
  %4507 = vmatprep.subr.mxu0 0.0
  %4508 = vmatpush2.msra.mxu0 0.0
  %4509 = vmatprep.subr.mxu0 0.0
  %4510 = vmatpush2.msra.mxu0 0.0
  %4511 = vmatprep.subr.mxu0 0.0
  %4512 = vmatpush2.msra.mxu0 0.0
  %4513 = vmatprep.subr.mxu0 0.0
  %4514 = vmatpush2.msra.mxu0 0.0
  %4515 = vmatprep.subr.mxu0 0.0
  %4516 = vmatpush2.msra.mxu0 0.0
  %4517 = vmatprep.subr.mxu0 0.0
  %4518 = vmatpush2.msra.mxu0 0.0
  %4519 = vmatprep.subr.mxu0 0.0
  %4520 = vmatpush2.msra.mxu0 0.0
  %4521 = vmatprep.subr.mxu0 0.0
  %4522 = vmatpush2.msra.mxu0 0.0
  %4523 = vmatprep.subr.mxu0 0.0
  %4524 = vmatpush2.msra.mxu0 0.0
  %4525 = vmatprep.subr.mxu0 0.0
  %4526 = vmatpush2.msra.mxu0 0.0
  %4527 = vmatprep.subr.mxu0 0.0
  %4528 = vmatpush2.msra.mxu0 0.0
  %4529 = vmatprep.mubr.f32.mxu0 0.0
  %4530 = vmatmul.mubr.f32.gmra.mxu0 %v4460
  %v4531 = vpop.f32.mrf.mxu0
  %v4532 = vadd.f32 0.0, %v4531
  %v4533 = vpop.f32.mrf.mxu0
  %4534 = vmatprep.mubr.f32.mxu0 0.0
  %4535 = vmatmul.mubr.f32.gmra.mxu0 %v4463
  %v4536 = vpop.f32.mrf.mxu0
  %v4537 = vadd.f32 0.0, %v4536
  %v4538 = vpop.f32.mrf.mxu0
  %4539 = vdwg.mxu0
  %4540 = vrot.lane.b32.xlu0 %v2718, 40
  %v4541 = vpop.permute.xlu0 %4540
  %4542 = vrot.lane.b32.xlu0 %v2723, 40
  %v4543 = vpop.permute.xlu0 %4542
  %v4547 = vsel %vm2913, %v4451, 0
  %v4550 = vsel %vm2913, %v4452, 0
  %4552 = vmatprep.subr.mxu0 0.0
  %4553 = vmatpush1.msra.mxu0 0.0
  %4554 = vmatprep.subr.mxu0 0.0
  %4555 = vmatpush1.msra.mxu0 0.0
  %4556 = vmatprep.subr.mxu0 0.0
  %4557 = vmatpush1.msra.mxu0 0.0
  %4558 = vmatprep.subr.mxu0 0.0
  %4559 = vmatpush1.msra.mxu0 0.0
  %4560 = vmatprep.subr.mxu0 0.0
  %4561 = vmatpush1.msra.mxu0 0.0
  %4562 = vmatprep.subr.mxu0 0.0
  %4563 = vmatpush1.msra.mxu0 0.0
  %4564 = vmatprep.subr.mxu0 0.0
  %4565 = vmatpush1.msra.mxu0 0.0
  %4566 = vmatprep.subr.mxu0 0.0
  %4567 = vmatpush1.msra.mxu0 0.0
  %4568 = vmatprep.subr.mxu0 0.0
  %4569 = vmatpush1.msra.mxu0 0.0
  %4570 = vmatprep.subr.mxu0 0.0
  %4571 = vmatpush1.msra.mxu0 0.0
  %4572 = vmatprep.subr.mxu0 0.0
  %4573 = vmatpush1.msra.mxu0 0.0
  %4574 = vmatprep.subr.mxu0 0.0
  %4575 = vmatpush1.msra.mxu0 0.0
  %4576 = vmatprep.subr.mxu0 0.0
  %4577 = vmatpush1.msra.mxu0 0.0
  %4578 = vmatprep.subr.mxu0 0.0
  %4579 = vmatpush1.msra.mxu0 0.0
  %4580 = vmatprep.subr.mxu0 0.0
  %4581 = vmatpush1.msra.mxu0 %v4543
  %4582 = vmatprep.subr.mxu0 0.0
  %4583 = vmatpush1.msra.mxu0 %v4541
  %4584 = vmatprep.subr.mxu0 0.0
  %4585 = vmatpush2.msra.mxu0 0.0
  %4586 = vmatprep.subr.mxu0 0.0
  %4587 = vmatpush2.msra.mxu0 0.0
  %4588 = vmatprep.subr.mxu0 0.0
  %4589 = vmatpush2.msra.mxu0 0.0
  %4590 = vmatprep.subr.mxu0 0.0
  %4591 = vmatpush2.msra.mxu0 0.0
  %4592 = vmatprep.subr.mxu0 0.0
  %4593 = vmatpush2.msra.mxu0 0.0
  %4594 = vmatprep.subr.mxu0 0.0
  %4595 = vmatpush2.msra.mxu0 0.0
  %4596 = vmatprep.subr.mxu0 0.0
  %4597 = vmatpush2.msra.mxu0 0.0
  %4598 = vmatprep.subr.mxu0 0.0
  %4599 = vmatpush2.msra.mxu0 0.0
  %4600 = vmatprep.subr.mxu0 0.0
  %4601 = vmatpush2.msra.mxu0 0.0
  %4602 = vmatprep.subr.mxu0 0.0
  %4603 = vmatpush2.msra.mxu0 0.0
  %4604 = vmatprep.subr.mxu0 0.0
  %4605 = vmatpush2.msra.mxu0 0.0
  %4606 = vmatprep.subr.mxu0 0.0
  %4607 = vmatpush2.msra.mxu0 0.0
  %4608 = vmatprep.subr.mxu0 0.0
  %4609 = vmatpush2.msra.mxu0 0.0
  %4610 = vmatprep.subr.mxu0 0.0
  %4611 = vmatpush2.msra.mxu0 0.0
  %4612 = vmatprep.subr.mxu0 0.0
  %4613 = vmatpush2.msra.mxu0 0.0
  %4614 = vmatprep.subr.mxu0 0.0
  %4615 = vmatpush2.msra.mxu0 0.0
  %4616 = vmatprep.mubr.f32.mxu0 0.0
  %4617 = vmatmul.mubr.f32.gmra.mxu0 %v4547
  %v4618 = vpop.f32.mrf.mxu0
  %v4619 = vadd.f32 0.0, %v4618
  %v4620 = vpop.f32.mrf.mxu0
  %4621 = vmatprep.mubr.f32.mxu0 0.0
  %4622 = vmatmul.mubr.f32.gmra.mxu0 %v4550
  %v4623 = vpop.f32.mrf.mxu0
  %v4624 = vadd.f32 0.0, %v4623
  %v4625 = vpop.f32.mrf.mxu0
  %4626 = vdwg.mxu0
  %v4628 = vsel %vm2736, %v4532, 0
  %v4631 = vsel %vm2736, %v4537, 0
  %v4634 = vsel %vm2736, %v4619, 0
  %v4637 = vsel %vm2736, %v4624, 0
  %4639 = vmatprep.subr.mxu0 0.0
  %4640 = vmatpush1.msra.mxu0 0.0
  %4641 = vmatprep.subr.mxu0 0.0
  %4642 = vmatpush1.msra.mxu0 0.0
  %4643 = vmatprep.subr.mxu0 0.0
  %4644 = vmatpush1.msra.mxu0 0.0
  %4645 = vmatprep.subr.mxu0 0.0
  %4646 = vmatpush1.msra.mxu0 0.0
  %4647 = vmatprep.subr.mxu0 0.0
  %4648 = vmatpush1.msra.mxu0 0.0
  %4649 = vmatprep.subr.mxu0 0.0
  %4650 = vmatpush1.msra.mxu0 0.0
  %4651 = vmatprep.subr.mxu0 0.0
  %4652 = vmatpush1.msra.mxu0 0.0
  %4653 = vmatprep.subr.mxu0 0.0
  %4654 = vmatpush1.msra.mxu0 0.0
  %4655 = vmatprep.subr.mxu0 0.0
  %4656 = vmatpush1.msra.mxu0 0.0
  %4657 = vmatprep.subr.mxu0 0.0
  %4658 = vmatpush1.msra.mxu0 0.0
  %4659 = vmatprep.subr.mxu0 0.0
  %4660 = vmatpush1.msra.mxu0 0.0
  %4661 = vmatprep.subr.mxu0 0.0
  %4662 = vmatpush1.msra.mxu0 0.0
  %4663 = vmatprep.subr.mxu0 0.0
  %4664 = vmatpush1.msra.mxu0 0.0
  %4665 = vmatprep.subr.mxu0 0.0
  %4666 = vmatpush1.msra.mxu0 0.0
  %4667 = vmatprep.subr.mxu0 0.0
  %4668 = vmatpush1.msra.mxu0 0.0
  %4669 = vmatprep.subr.mxu0 0.0
  %4670 = vmatpush1.msra.mxu0 %v2624
  %4671 = vmatprep.subr.mxu0 0.0
  %4672 = vmatpush2.msra.mxu0 0.0
  %4673 = vmatprep.subr.mxu0 0.0
  %4674 = vmatpush2.msra.mxu0 0.0
  %4675 = vmatprep.subr.mxu0 0.0
  %4676 = vmatpush2.msra.mxu0 0.0
  %4677 = vmatprep.subr.mxu0 0.0
  %4678 = vmatpush2.msra.mxu0 0.0
  %4679 = vmatprep.subr.mxu0 0.0
  %4680 = vmatpush2.msra.mxu0 0.0
  %4681 = vmatprep.subr.mxu0 0.0
  %4682 = vmatpush2.msra.mxu0 0.0
  %4683 = vmatprep.subr.mxu0 0.0
  %4684 = vmatpush2.msra.mxu0 0.0
  %4685 = vmatprep.subr.mxu0 0.0
  %4686 = vmatpush2.msra.mxu0 0.0
  %4687 = vmatprep.subr.mxu0 0.0
  %4688 = vmatpush2.msra.mxu0 0.0
  %4689 = vmatprep.subr.mxu0 0.0
  %4690 = vmatpush2.msra.mxu0 0.0
  %4691 = vmatprep.subr.mxu0 0.0
  %4692 = vmatpush2.msra.mxu0 0.0
  %4693 = vmatprep.subr.mxu0 0.0
  %4694 = vmatpush2.msra.mxu0 0.0
  %4695 = vmatprep.subr.mxu0 0.0
  %4696 = vmatpush2.msra.mxu0 0.0
  %4697 = vmatprep.subr.mxu0 0.0
  %4698 = vmatpush2.msra.mxu0 0.0
  %4699 = vmatprep.subr.mxu0 0.0
  %4700 = vmatpush2.msra.mxu0 0.0
  %4701 = vmatprep.subr.mxu0 0.0
  %4702 = vmatpush2.msra.mxu0 0.0
  %4703 = vmatprep.mubr.f32.mxu0 0.0
  %4704 = vmatmul.mubr.f32.gmra.mxu0 %v4628
  %v4705 = vpop.f32.mrf.mxu0
  %v4706 = vadd.f32 0.0, %v4705
  %v4707 = vpop.f32.mrf.mxu0
  %4708 = vmatprep.mubr.f32.mxu0 0.0
  %4709 = vmatmul.mubr.f32.gmra.mxu0 %v4631
  %v4710 = vpop.f32.mrf.mxu0
  %v4711 = vadd.f32 0.0, %v4710
  %v4712 = vpop.f32.mrf.mxu0
  %4713 = vmatprep.mubr.f32.mxu0 0.0
  %4714 = vmatmul.mubr.f32.gmra.mxu0 %v4634
  %v4715 = vpop.f32.mrf.mxu0
  %v4716 = vadd.f32 0.0, %v4715
  %v4717 = vpop.f32.mrf.mxu0
  %4718 = vmatprep.mubr.f32.mxu0 0.0
  %4719 = vmatmul.mubr.f32.gmra.mxu0 %v4637
  %v4720 = vpop.f32.mrf.mxu0
  %v4721 = vadd.f32 0.0, %v4720
  %v4722 = vpop.f32.mrf.mxu0
  %4723 = vdwg.mxu0
  %v4724 = vadd.f32 %v4223, %v4706
  %v4725 = vadd.f32 %v4224, %v4711
  %v4726 = vadd.f32 %v4225, %v4716
  %v4727 = vadd.f32 %v4226, %v4721
  %v4728 = vlaneseq
  %v4729 = vshrl.u32 %v4728, 7
  %v4730 = vsub.s32 2, %v4729
  %v4731 = vrot.slane %v2540, %v4730
  %v4732 = vadd.f32 %v4724, %v4731
  %v4733 = vadd.f32 %v4725, %v4731
  %v4734 = vadd.f32 %v4726, %v4731
  %v4735 = vadd.f32 %v4727, %v4731
  %v4736 = vadd.f32 %v2611, %v4732
  %v4737 = vadd.f32 %v2612, %v4733
  %v4738 = vadd.f32 %v2613, %v4734
  %v4739 = vadd.f32 %v2614, %v4735
  %s4740 = scalar_lea.vmem %s4, 128
  %v4741 = vld [vmem:[%s4740] sm:$0xff]
  %v4742 = vld [vmem:[%s4740 + $0x8] sm:$0xff]
  %v4743 = vld [vmem:[%s4740 + $0x10] sm:$0xff]
  %v4744 = vld [vmem:[%s4740 + $0x18] sm:$0xff]
  %v4745 = vlaneseq
  %v4746 = vshrl.u32 %v4745, 7
  %v4747 = vsub.s32 1, %v4746
  %v4748 = vrot.slane %v2540, %v4747
  %v4750 = vsel %vm2545, %v4736, 0
  %v4753 = vsel %vm2545, %v4737, 0
  %v4756 = vsel %vm2545, %v4738, 0
  %v4759 = vsel %vm2545, %v4739, 0
  %4761 = vmatprep.subr.mxu0 0.0
  %4762 = vmatpush1.msra.mxu0 0.0
  %4763 = vmatprep.subr.mxu0 0.0
  %4764 = vmatpush1.msra.mxu0 0.0
  %4765 = vmatprep.subr.mxu0 0.0
  %4766 = vmatpush1.msra.mxu0 0.0
  %4767 = vmatprep.subr.mxu0 0.0
  %4768 = vmatpush1.msra.mxu0 0.0
  %4769 = vmatprep.subr.mxu0 0.0
  %4770 = vmatpush1.msra.mxu0 0.0
  %4771 = vmatprep.subr.mxu0 0.0
  %4772 = vmatpush1.msra.mxu0 0.0
  %4773 = vmatprep.subr.mxu0 0.0
  %4774 = vmatpush1.msra.mxu0 0.0
  %4775 = vmatprep.subr.mxu0 0.0
  %4776 = vmatpush1.msra.mxu0 0.0
  %4777 = vmatprep.subr.mxu0 0.0
  %4778 = vmatpush1.msra.mxu0 0.0
  %4779 = vmatprep.subr.mxu0 0.0
  %4780 = vmatpush1.msra.mxu0 0.0
  %4781 = vmatprep.subr.mxu0 0.0
  %4782 = vmatpush1.msra.mxu0 0.0
  %4783 = vmatprep.subr.mxu0 0.0
  %4784 = vmatpush1.msra.mxu0 0.0
  %4785 = vmatprep.subr.mxu0 0.0
  %4786 = vmatpush1.msra.mxu0 %v4744
  %4787 = vmatprep.subr.mxu0 0.0
  %4788 = vmatpush1.msra.mxu0 %v4743
  %4789 = vmatprep.subr.mxu0 0.0
  %4790 = vmatpush1.msra.mxu0 %v4742
  %4791 = vmatprep.subr.mxu0 0.0
  %4792 = vmatpush1.msra.mxu0 %v4741
  %4793 = vmatprep.subr.mxu0 0.0
  %4794 = vmatpush2.msra.mxu0 0.0
  %4795 = vmatprep.subr.mxu0 0.0
  %4796 = vmatpush2.msra.mxu0 0.0
  %4797 = vmatprep.subr.mxu0 0.0
  %4798 = vmatpush2.msra.mxu0 0.0
  %4799 = vmatprep.subr.mxu0 0.0
  %4800 = vmatpush2.msra.mxu0 0.0
  %4801 = vmatprep.subr.mxu0 0.0
  %4802 = vmatpush2.msra.mxu0 0.0
  %4803 = vmatprep.subr.mxu0 0.0
  %4804 = vmatpush2.msra.mxu0 0.0
  %4805 = vmatprep.subr.mxu0 0.0
  %4806 = vmatpush2.msra.mxu0 0.0
  %4807 = vmatprep.subr.mxu0 0.0
  %4808 = vmatpush2.msra.mxu0 0.0
  %4809 = vmatprep.subr.mxu0 0.0
  %4810 = vmatpush2.msra.mxu0 0.0
  %4811 = vmatprep.subr.mxu0 0.0
  %4812 = vmatpush2.msra.mxu0 0.0
  %4813 = vmatprep.subr.mxu0 0.0
  %4814 = vmatpush2.msra.mxu0 0.0
  %4815 = vmatprep.subr.mxu0 0.0
  %4816 = vmatpush2.msra.mxu0 0.0
  %4817 = vmatprep.subr.mxu0 0.0
  %4818 = vmatpush2.msra.mxu0 0.0
  %4819 = vmatprep.subr.mxu0 0.0
  %4820 = vmatpush2.msra.mxu0 0.0
  %4821 = vmatprep.subr.mxu0 0.0
  %4822 = vmatpush2.msra.mxu0 0.0
  %4823 = vmatprep.subr.mxu0 0.0
  %4824 = vmatpush2.msra.mxu0 0.0
  %4825 = vmatprep.mubr.f32.mxu0 0.0
  %4826 = vmatmul.mubr.f32.gmra.mxu0 %v4750
  %v4827 = vpop.f32.mrf.mxu0
  %v4828 = vadd.f32 %v4748, %v4827
  %v4829 = vpop.f32.mrf.mxu0
  %4830 = vmatprep.mubr.f32.mxu0 0.0
  %4831 = vmatmul.mubr.f32.gmra.mxu0 %v4753
  %v4832 = vpop.f32.mrf.mxu0
  %v4833 = vadd.f32 %v4748, %v4832
  %v4834 = vpop.f32.mrf.mxu0
  %4835 = vmatprep.mubr.f32.mxu0 0.0
  %4836 = vmatmul.mubr.f32.gmra.mxu0 %v4756
  %v4837 = vpop.f32.mrf.mxu0
  %v4838 = vadd.f32 %v4748, %v4837
  %v4839 = vpop.f32.mrf.mxu0
  %4840 = vmatprep.mubr.f32.mxu0 0.0
  %4841 = vmatmul.mubr.f32.gmra.mxu0 %v4759
  %v4842 = vpop.f32.mrf.mxu0
  %v4843 = vadd.f32 %v4748, %v4842
  %v4844 = vpop.f32.mrf.mxu0
  %4845 = vdwg.mxu0
  %v4846 = vmax.f32 %v4828, 0.0
  %v4847 = vmax.f32 %v4833, 0.0
  %v4848 = vmax.f32 %v4838, 0.0
  %v4849 = vmax.f32 %v4843, 0.0
  %s4850 = scalar_lea.vmem %s5, 256
  %v4851 = vld [vmem:[%s4850] sm:$0xff]
  %v4852 = vld [vmem:[%s4850 + $0x8] sm:$0xff]
  %v4853 = vld [vmem:[%s4850 + $0x10] sm:$0xff]
  %v4854 = vld [vmem:[%s4850 + $0x18] sm:$0xff]
  %v4855 = vld [vmem:[%s4850 + $0x20] sm:$0xff]
  %v4856 = vld [vmem:[%s4850 + $0x28] sm:$0xff]
  %v4857 = vld [vmem:[%s4850 + $0x30] sm:$0xff]
  %v4858 = vld [vmem:[%s4850 + $0x38] sm:$0xff]
  %v4859 = vlaneseq
  %v4860 = vshrl.u32 %v4859, 7
  %v4861 = vsub.s32 3, %v4860
  %v4862 = vrot.slane %v2540, %v4861
  %vm4863 = vcmask 523264
  %v4865 = vsel %vm4863, %v4846, 0
  %v4868 = vsel %vm4863, %v4847, 0
  %v4871 = vsel %vm4863, %v4848, 0
  %v4874 = vsel %vm4863, %v4849, 0
  %4876 = vmatprep.subr.mxu0 0.0
  %4877 = vmatpush1.msra.mxu0 0.0
  %4878 = vmatprep.subr.mxu0 0.0
  %4879 = vmatpush1.msra.mxu0 0.0
  %4880 = vmatprep.subr.mxu0 0.0
  %4881 = vmatpush1.msra.mxu0 0.0
  %4882 = vmatprep.subr.mxu0 0.0
  %4883 = vmatpush1.msra.mxu0 0.0
  %4884 = vmatprep.subr.mxu0 0.0
  %4885 = vmatpush1.msra.mxu0 0.0
  %4886 = vmatprep.subr.mxu0 0.0
  %4887 = vmatpush1.msra.mxu0 0.0
  %4888 = vmatprep.subr.mxu0 0.0
  %4889 = vmatpush1.msra.mxu0 0.0
  %4890 = vmatprep.subr.mxu0 0.0
  %4891 = vmatpush1.msra.mxu0 0.0
  %4892 = vmatprep.subr.mxu0 0.0
  %4893 = vmatpush1.msra.mxu0 %v4858
  %4894 = vmatprep.subr.mxu0 0.0
  %4895 = vmatpush1.msra.mxu0 %v4857
  %4896 = vmatprep.subr.mxu0 0.0
  %4897 = vmatpush1.msra.mxu0 %v4856
  %4898 = vmatprep.subr.mxu0 0.0
  %4899 = vmatpush1.msra.mxu0 %v4855
  %4900 = vmatprep.subr.mxu0 0.0
  %4901 = vmatpush1.msra.mxu0 %v4854
  %4902 = vmatprep.subr.mxu0 0.0
  %4903 = vmatpush1.msra.mxu0 %v4853
  %4904 = vmatprep.subr.mxu0 0.0
  %4905 = vmatpush1.msra.mxu0 %v4852
  %4906 = vmatprep.subr.mxu0 0.0
  %4907 = vmatpush1.msra.mxu0 %v4851
  %4908 = vmatprep.subr.mxu0 0.0
  %4909 = vmatpush2.msra.mxu0 0.0
  %4910 = vmatprep.subr.mxu0 0.0
  %4911 = vmatpush2.msra.mxu0 0.0
  %4912 = vmatprep.subr.mxu0 0.0
  %4913 = vmatpush2.msra.mxu0 0.0
  %4914 = vmatprep.subr.mxu0 0.0
  %4915 = vmatpush2.msra.mxu0 0.0
  %4916 = vmatprep.subr.mxu0 0.0
  %4917 = vmatpush2.msra.mxu0 0.0
  %4918 = vmatprep.subr.mxu0 0.0
  %4919 = vmatpush2.msra.mxu0 0.0
  %4920 = vmatprep.subr.mxu0 0.0
  %4921 = vmatpush2.msra.mxu0 0.0
  %4922 = vmatprep.subr.mxu0 0.0
  %4923 = vmatpush2.msra.mxu0 0.0
  %4924 = vmatprep.subr.mxu0 0.0
  %4925 = vmatpush2.msra.mxu0 0.0
  %4926 = vmatprep.subr.mxu0 0.0
  %4927 = vmatpush2.msra.mxu0 0.0
  %4928 = vmatprep.subr.mxu0 0.0
  %4929 = vmatpush2.msra.mxu0 0.0
  %4930 = vmatprep.subr.mxu0 0.0
  %4931 = vmatpush2.msra.mxu0 0.0
  %4932 = vmatprep.subr.mxu0 0.0
  %4933 = vmatpush2.msra.mxu0 0.0
  %4934 = vmatprep.subr.mxu0 0.0
  %4935 = vmatpush2.msra.mxu0 0.0
  %4936 = vmatprep.subr.mxu0 0.0
  %4937 = vmatpush2.msra.mxu0 0.0
  %4938 = vmatprep.subr.mxu0 0.0
  %4939 = vmatpush2.msra.mxu0 0.0
  %4940 = vmatprep.mubr.f32.mxu0 0.0
  %4941 = vmatmul.mubr.f32.gmra.mxu0 %v4865
  %v4942 = vpop.f32.mrf.mxu0
  %v4943 = vadd.f32 %v4862, %v4942
  %v4944 = vpop.f32.mrf.mxu0
  %4945 = vmatprep.mubr.f32.mxu0 0.0
  %4946 = vmatmul.mubr.f32.gmra.mxu0 %v4868
  %v4947 = vpop.f32.mrf.mxu0
  %v4948 = vadd.f32 %v4862, %v4947
  %v4949 = vpop.f32.mrf.mxu0
  %4950 = vmatprep.mubr.f32.mxu0 0.0
  %4951 = vmatmul.mubr.f32.gmra.mxu0 %v4871
  %v4952 = vpop.f32.mrf.mxu0
  %v4953 = vadd.f32 %v4862, %v4952
  %v4954 = vpop.f32.mrf.mxu0
  %4955 = vmatprep.mubr.f32.mxu0 0.0
  %4956 = vmatmul.mubr.f32.gmra.mxu0 %v4874
  %v4957 = vpop.f32.mrf.mxu0
  %v4958 = vadd.f32 %v4862, %v4957
  %v4959 = vpop.f32.mrf.mxu0
  %4960 = vdwg.mxu0
  %4961 = vst.msk [vmem:[%s7] sm:$0xff] %vm2913, %v4943
  %4962 = vst.msk [vmem:[%s7 + $0x8] sm:$0xff] %vm2913, %v4948
  %4963 = vst.msk [vmem:[%s7 + $0x10] sm:$0xff] %vm2913, %v4953
  %4964 = vst.msk [vmem:[%s7 + $0x18] sm:$0xff] %vm2913, %v4958
  // Predicated region
  $region37: #{transformer_mlp_forward.1} parent=0 // pred_check
    _
  $region38: #{transformer_mlp_forward.1} parent=0 // pred_check_branch
    %4966 = sbr.rel (0) target = $region40
  $region39: #{transformer_mlp_forward.1} parent=0 // pred_region
    _
  $region40: #{transformer_mlp_forward.1} parent=0 // pred_fallthru
    _
  // Predicated region
  $region41: #{transformer_mlp_forward.1} parent=0 // pred_check
    _
  $region42: #{transformer_mlp_forward.1} parent=0 // pred_check_branch
    %4968 = sbr.rel (0) target = $region44
  $region43: #{transformer_mlp_forward.1} parent=0 // pred_region
    _
  $region44: #{transformer_mlp_forward.1} parent=0 // pred_fallthru
    _

</llo_original>
